<compile_context>
chip_gen: v6e
topology: v6e:2x2x1
jax: 0.10.0
libtpu: 0.0.40
codegen_flags: <defaults>
</compile_context>

<pallas_src>
import functools

import jax
import jax.numpy as jnp
from jax import lax
from jax.experimental import pallas as pl
from jax.experimental.pallas import tpu as pltpu


def _gelu_tanh(x):
    # TODO(synk): PyTorch nn.GELU() defaults to the exact erf form; the tanh
    # approximation (max abs diff ~1e-3) is used because it maps onto the TPU
    # EUP cleanly.  The pure-JAX reference below uses the same formula.
    c = 0.7978845608028654  # sqrt(2/pi)
    return 0.5 * x * (1.0 + jnp.tanh(c * (x + 0.044715 * x * x * x)))


def _channel_ln(x, gamma, beta, eps):
    # One-pass mean / mean-of-squares so the two channel-axis (XLU) reductions
    # don't serialize through (x - u).  x: [M, C] f32; gamma/beta: [1, C] f32.
    m = jnp.mean(x, axis=-1, keepdims=True)
    m2 = jnp.mean(x * x, axis=-1, keepdims=True)
    var = jnp.maximum(m2 - m * m, 0.0)
    return (x - m) * lax.rsqrt(var + eps) * gamma + beta


def _res_bottleneck_kernel(x_ref, xt_ref, xb_ref,
                           w1_ref, g1_ref, b1_ref,
                           w2_ref, g2_ref, b2_ref,
                           w3_ref, g3_ref, b3_ref,
                           o_ref, *, th, W, eps, compute_dtype):
    cin = x_ref.shape[-1]
    cb = w1_ref.shape[-1]
    cout = w3_ref.shape[-1]
    i = pl.program_id(1)
    n = pl.num_programs(1)
    mh = (th + 2) * W          # strip rows + 1-row halo on each side
    m = th * W

    # ---- conv1 (1x1) on strip + halo rows, then LN1 + GELU (f32 accum) -------
    x_all = jnp.concatenate([xt_ref[0], x_ref[0], xb_ref[0]], axis=0)   # (th+2, W, cin)
    x_all = x_all.reshape(mh, cin).astype(compute_dtype)
    h1 = jnp.dot(x_all, w1_ref[...], preferred_element_type=jnp.float32)
    h1 = _gelu_tanh(_channel_ln(h1, g1_ref[...], b1_ref[...], eps))
    h1 = h1.reshape(th + 2, W, cb)

    # conv2's zero padding lives in h1-space: kill the halo rows that fall
    # outside the image (top of the first strip / bottom of the last strip).
    row = lax.broadcasted_iota(jnp.int32, h1.shape, 0)
    kill = ((row == 0) & (i == 0)) | ((row == th + 1) & (i == n - 1))
    p32 = jnp.where(kill, 0.0, h1)                                      # (th+2, W, cb) f32

    # ---- conv2 (3x3, pad=1) as ONE stacked-K matmul ---------------------------
    # Column taps: XLU rolls + border zeroing (no sublane-shifted slice copies).
    # Row taps: contiguous leading-axis slices.  Staging stays in compute_dtype.
    col = lax.broadcasted_iota(jnp.int32, p32.shape, 1)
    left = jnp.where(col == 0, 0.0,
                     pltpu.roll(p32, 1, axis=1)).astype(compute_dtype)       # dw=0 tap
    mid = p32.astype(compute_dtype)                                          # dw=1 tap
    right = jnp.where(col == W - 1, 0.0,
                      pltpu.roll(p32, W - 1, axis=1)).astype(compute_dtype)  # dw=2 tap
    pcat = jnp.concatenate([left, mid, right], axis=-1)                 # (th+2, W, 3cb)
    pfull = jnp.concatenate([pcat[0:th], pcat[1:th + 1], pcat[2:th + 2]],
                            axis=-1).reshape(m, 9 * cb)                 # (m, 9cb) im2col
    h2 = jnp.dot(pfull, w2_ref[...], preferred_element_type=jnp.float32)  # (m, cb)
    h2 = _gelu_tanh(_channel_ln(h2, g2_ref[...], b2_ref[...], eps))

    # ---- conv3 (1x1) + LN3 + residual -----------------------------------------
    h3 = jnp.dot(h2.astype(compute_dtype), w3_ref[...],
                 preferred_element_type=jnp.float32)                    # (m, cout)
    h3 = _channel_ln(h3, g3_ref[...], b3_ref[...], eps)
    res = x_ref[0].reshape(m, cout).astype(jnp.float32)   # re-read; no long-lived copy
    o_ref[0] = (res + h3).reshape(th, W, cout).astype(o_ref.dtype)


def _pick_tile_h(H):
    for th in (16, 8):       # (8,128)-friendly strip heights
        if H % th == 0:
            return th
    return H                 # fall back to whole image


def res_bottleneck_block(x, params, *, compute_dtype=jnp.bfloat16,
                         data_format="NCHW", eps=1e-6, tile_h=None):
    """Fused ResBottleneckBlock forward.

    x: [B, C, H, W] ("NCHW", PyTorch layout) or [B, H, W, C] ("NHWC").
    params (PyTorch layouts):
      conv1_w [Cb, Cin, 1, 1], conv2_w [Cb, Cb, 3, 3], conv3_w [Cout, Cb, 1, 1],
      norm{1,2,3}_w / norm{1,2,3}_b [C].
    compute_dtype: dtype of the MXU matmul operands (bf16 recommended);
      accumulation, LayerNorm and the residual stay f32.
    tile_h: output row-strip height (must divide H).
    """
    if data_format == "NCHW":
        x_nhwc = jnp.transpose(x, (0, 2, 3, 1))
    elif data_format == "NHWC":
        x_nhwc = x
    else:
        raise ValueError(f"unknown data_format {data_format}")

    B, H, W, cin = x_nhwc.shape
    th = _pick_tile_h(H) if tile_h is None else tile_h
    assert H % th == 0, f"tile_h={th} must divide H={H}"
    n_strips = H // th

    w1 = params["conv1_w"]
    w2 = params["conv2_w"]
    w3 = params["conv3_w"]
    cb = w1.shape[0]
    cout = w3.shape[0]
    assert cin == cout, "residual add requires in_channels == out_channels"
    assert w2.shape == (cb, cb, 3, 3)

    # Conv weights -> matmul layouts (channels-last contraction), cast once.
    w1m = jnp.transpose(w1.reshape(cb, cin), (1, 0)).astype(compute_dtype)     # [cin, cb]
    # (co, ci, dh, dw) -> (dh, dw, ci, co) -> [9*cb, cb]; rows ordered (dh, dw, ci)
    # to match the in-kernel im2col concat order.
    w2m = jnp.transpose(w2, (2, 3, 1, 0)).reshape(9 * cb, cb).astype(compute_dtype)
    w3m = jnp.transpose(w3.reshape(cout, cb), (1, 0)).astype(compute_dtype)    # [cb, cout]
    g1 = params["norm1_w"].reshape(1, cb).astype(jnp.float32)
    b1 = params["norm1_b"].reshape(1, cb).astype(jnp.float32)
    g2 = params["norm2_w"].reshape(1, cb).astype(jnp.float32)
    b2 = params["norm2_b"].reshape(1, cb).astype(jnp.float32)
    g3 = params["norm3_w"].reshape(1, cout).astype(jnp.float32)
    b3 = params["norm3_b"].reshape(1, cout).astype(jnp.float32)

    kernel = functools.partial(_res_bottleneck_kernel, th=th, W=W, eps=eps,
                               compute_dtype=compute_dtype)

    # Halo row index maps (clamped; out-of-image halo rows are zeroed in-kernel).
    x_spec = pl.BlockSpec((1, th, W, cin), lambda b, i: (b, i, 0, 0))
    xt_spec = pl.BlockSpec((1, 1, W, cin),
                           lambda b, i: (b, jnp.maximum(i * th - 1, 0), 0, 0))
    xb_spec = pl.BlockSpec((1, 1, W, cin),
                           lambda b, i: (b, jnp.minimum((i + 1) * th, H - 1), 0, 0))
    const = lambda b, i: (0, 0)

    # Explicit VMEM budget (capped at 64 MiB so the same tiling fits v7x).
    cs = jnp.dtype(compute_dtype).itemsize
    xs = jnp.dtype(x.dtype).itemsize
    m, mh = th * W, (th + 2) * W
    tile_io = 2 * (mh * cin * xs + m * cout * xs)
    weight_bytes = 2 * ((cin * cb + 9 * cb * cb + cb * cout) * cs
                        + (4 * cb + 2 * cout) * 4)
    work = (mh * cin * cs + mh * cb * (4 + cs) + mh * 3 * cb * cs
            + m * 9 * cb * cs + m * cb * 4 + m * cout * 8)
    vmem_limit = int(min(max(2 * (tile_io + weight_bytes + work), 32 << 20), 64 << 20))

    flops = 2 * B * H * W * (cin * cb + 9 * cb * cb + cb * cout)
    transcendentals = B * H * W * (2 * cb + 3)
    bytes_accessed = (B * H * W * (cin + cout) * xs
                      + B * n_strips * 2 * W * cin * xs
                      + (cin * cb + 9 * cb * cb + cb * cout) * cs
                      + (4 * cb + 2 * cout) * 4)

    out_nhwc = pl.pallas_call(
        kernel,
        out_shape=jax.ShapeDtypeStruct((B, H, W, cout), x.dtype),
        grid_spec=pltpu.PrefetchScalarGridSpec(
            num_scalar_prefetch=0,
            grid=(B, n_strips),
            in_specs=[
                x_spec, xt_spec, xb_spec,
                pl.BlockSpec((cin, cb), const),
                pl.BlockSpec((1, cb), const),
                pl.BlockSpec((1, cb), const),
                pl.BlockSpec((9 * cb, cb), const),
                pl.BlockSpec((1, cb), const),
                pl.BlockSpec((1, cb), const),
                pl.BlockSpec((cb, cout), const),
                pl.BlockSpec((1, cout), const),
                pl.BlockSpec((1, cout), const),
            ],
            out_specs=pl.BlockSpec((1, th, W, cout), lambda b, i: (b, i, 0, 0)),
        ),
        compiler_params=pltpu.CompilerParams(
            dimension_semantics=("parallel", "parallel"),
            vmem_limit_bytes=vmem_limit),
        cost_estimate=pl.CostEstimate(
            flops=flops, transcendentals=transcendentals,
            bytes_accessed=bytes_accessed),
    )(x_nhwc, x_nhwc, x_nhwc, w1m, g1, b1, w2m, g2, b2, w3m, g3, b3)

    if data_format == "NCHW":
        return jnp.transpose(out_nhwc, (0, 3, 1, 2))
    return out_nhwc


def _ref_forward(x, p, eps=1e-6):
    """Pure-JAX NCHW reference with the same semantics as the PyTorch module."""
    def ln(t, g, b):
        u = t.mean(1, keepdims=True)
        s = ((t - u) ** 2).mean(1, keepdims=True)
        t = (t - u) / jnp.sqrt(s + eps)
        return g[None, :, None, None] * t + b[None, :, None, None]

    def conv(t, w, pad):
        return lax.conv_general_dilated(
            t, w, (1, 1), pad, dimension_numbers=("NCHW", "OIHW", "NCHW"),
            precision=lax.Precision.HIGHEST)

    out = conv(x, p["conv1_w"], "VALID")
    out = _gelu_tanh(ln(out, p["norm1_w"], p["norm1_b"]))
    out = conv(out, p["conv2_w"], ((1, 1), (1, 1)))
    out = _gelu_tanh(ln(out, p["norm2_w"], p["norm2_b"]))
    out = conv(out, p["conv3_w"], "VALID")
    out = ln(out, p["norm3_w"], p["norm3_b"])
    return x + out


if __name__ == "__main__":
    # Small deterministic config: in=out=32 channels, bottleneck=16, 2x32x16x16.
    # tile_h=8 -> 2 row strips per image, exercising both interior and boundary halos.
    B, Cin, H, W = 2, 32, 16, 16
    Cb = 16
    Cout = Cin

    key = jax.random.PRNGKey(0)
    ks = jax.random.split(key, 10)
    x = jax.random.normal(ks[0], (B, Cin, H, W), jnp.float32)
    params = {
        "conv1_w": jax.random.normal(ks[1], (Cb, Cin, 1, 1), jnp.float32)
                   * (2.0 / Cin) ** 0.5,
        "conv2_w": jax.random.normal(ks[2], (Cb, Cb, 3, 3), jnp.float32)
                   * (2.0 / (9 * Cb)) ** 0.5,
        "conv3_w": jax.random.normal(ks[3], (Cout, Cb, 1, 1), jnp.float32)
                   * (2.0 / Cb) ** 0.5,
        "norm1_w": 1.0 + 0.1 * jax.random.normal(ks[4], (Cb,), jnp.float32),
        "norm1_b": 0.1 * jax.random.normal(ks[5], (Cb,), jnp.float32),
        "norm2_w": 1.0 + 0.1 * jax.random.normal(ks[6], (Cb,), jnp.float32),
        "norm2_b": 0.1 * jax.random.normal(ks[7], (Cb,), jnp.float32),
        # Module inits norm3 to zero (identity block); use small nonzero values
        # here so the whole numeric path is actually exercised.
        "norm3_w": 0.2 * jax.random.normal(ks[8], (Cout,), jnp.float32),
        "norm3_b": 0.05 * jax.random.normal(ks[9], (Cout,), jnp.float32),
    }

    ref = _ref_forward(x, params)

    # f32 MXU operand path (tight check).
    fwd_f32 = jax.jit(functools.partial(res_bottleneck_block,
                                        compute_dtype=jnp.float32, tile_h=8))
    out_f32 = jax.block_until_ready(fwd_f32(x, params))
    assert out_f32.shape == x.shape
    assert jnp.allclose(out_f32, ref, atol=1e-2, rtol=1e-2), (
        "f32 max abs err", float(jnp.max(jnp.abs(out_f32 - ref))))

    # bf16 MXU operands with f32 accumulation (default / perf-recommended mode).
    fwd_bf16 = jax.jit(functools.partial(res_bottleneck_block,
                                         compute_dtype=jnp.bfloat16, tile_h=8))
    out_bf16 = jax.block_until_ready(fwd_bf16(x, params))
    assert jnp.allclose(out_bf16, ref, atol=5e-2, rtol=5e-2), (
        "bf16 max abs err", float(jnp.max(jnp.abs(out_bf16 - ref))))

    print("KERNEL_OK")
</pallas_src>

<mosaic_0001>
module attributes {stable_mosaic.version = 11 : i64} {
  func.func @_res_bottleneck_kernel(%arg0: i32, %arg1: i32, %arg2: memref<1x8x16x32xf32, #tpu.memory_space<vmem>>, %arg3: memref<1x1x16x32xf32, #tpu.memory_space<vmem>>, %arg4: memref<1x1x16x32xf32, #tpu.memory_space<vmem>>, %arg5: memref<32x16xf32, #tpu.memory_space<vmem>>, %arg6: memref<1x16xf32, #tpu.memory_space<vmem>>, %arg7: memref<1x16xf32, #tpu.memory_space<vmem>>, %arg8: memref<144x16xf32, #tpu.memory_space<vmem>>, %arg9: memref<1x16xf32, #tpu.memory_space<vmem>>, %arg10: memref<1x16xf32, #tpu.memory_space<vmem>>, %arg11: memref<16x32xf32, #tpu.memory_space<vmem>>, %arg12: memref<1x32xf32, #tpu.memory_space<vmem>>, %arg13: memref<1x32xf32, #tpu.memory_space<vmem>>, %arg14: memref<1x8x16x32xf32, #tpu.memory_space<vmem>>) attributes {dimension_semantics = [#tpu.dimension_semantics<parallel>, #tpu.dimension_semantics<parallel>], iteration_bounds = array<i64: 2, 2>, scalar_prefetch = 0 : i64, scratch_operands = 0 : i64, tpu.core_type = #tpu.core_type<tc>, window_params = [{transform_indices = @transform_0, window_bounds = array<i64: 1, 8, 16, 32>}, {transform_indices = @transform_1, window_bounds = array<i64: 1, 1, 16, 32>}, {transform_indices = @transform_2, window_bounds = array<i64: 1, 1, 16, 32>}, {pipeline_mode = #tpu.pipeline_mode<synchronous>, transform_indices = @transform_3, window_bounds = array<i64: 32, 16>}, {pipeline_mode = #tpu.pipeline_mode<synchronous>, transform_indices = @transform_4, window_bounds = array<i64: 1, 16>}, {pipeline_mode = #tpu.pipeline_mode<synchronous>, transform_indices = @transform_5, window_bounds = array<i64: 1, 16>}, {pipeline_mode = #tpu.pipeline_mode<synchronous>, transform_indices = @transform_6, window_bounds = array<i64: 144, 16>}, {pipeline_mode = #tpu.pipeline_mode<synchronous>, transform_indices = @transform_7, window_bounds = array<i64: 1, 16>}, {pipeline_mode = #tpu.pipeline_mode<synchronous>, transform_indices = @transform_8, window_bounds = array<i64: 1, 16>}, {pipeline_mode = #tpu.pipeline_mode<synchronous>, transform_indices = @transform_9, window_bounds = array<i64: 16, 32>}, {pipeline_mode = #tpu.pipeline_mode<synchronous>, transform_indices = @transform_10, window_bounds = array<i64: 1, 32>}, {pipeline_mode = #tpu.pipeline_mode<synchronous>, transform_indices = @transform_11, window_bounds = array<i64: 1, 32>}, {transform_indices = @transform_12, window_bounds = array<i64: 1, 8, 16, 32>}]} {
    %c0 = arith.constant 0 : index
    %c0_0 = arith.constant 0 : index
    %c0_1 = arith.constant 0 : index
    %c0_2 = arith.constant 0 : index
    %0 = vector.load %arg3[%c0, %c0_0, %c0_1, %c0_2] : memref<1x1x16x32xf32, #tpu.memory_space<vmem>>, vector<1x1x16x32xf32>
    %1 = vector.shape_cast %0 : vector<1x1x16x32xf32> to vector<1x16x32xf32>
    %c0_3 = arith.constant 0 : index
    %c0_4 = arith.constant 0 : index
    %c0_5 = arith.constant 0 : index
    %c0_6 = arith.constant 0 : index
    %2 = vector.load %arg2[%c0_3, %c0_4, %c0_5, %c0_6] : memref<1x8x16x32xf32, #tpu.memory_space<vmem>>, vector<1x8x16x32xf32>
    %3 = vector.shape_cast %2 : vector<1x8x16x32xf32> to vector<8x16x32xf32>
    %c0_7 = arith.constant 0 : index
    %c0_8 = arith.constant 0 : index
    %c0_9 = arith.constant 0 : index
    %c0_10 = arith.constant 0 : index
    %4 = vector.load %arg4[%c0_7, %c0_8, %c0_9, %c0_10] : memref<1x1x16x32xf32, #tpu.memory_space<vmem>>, vector<1x1x16x32xf32>
    %5 = vector.shape_cast %4 : vector<1x1x16x32xf32> to vector<1x16x32xf32>
    %6 = tpu.concatenate %1, %3, %5 in 0 : vector<1x16x32xf32>, vector<8x16x32xf32>, vector<1x16x32xf32> -> vector<10x16x32xf32>
    %7 = vector.shape_cast %6 : vector<10x16x32xf32> to vector<160x32xf32>
    %c0_11 = arith.constant 0 : index
    %c0_12 = arith.constant 0 : index
    %8 = vector.load %arg5[%c0_11, %c0_12] : memref<32x16xf32, #tpu.memory_space<vmem>>, vector<32x16xf32>
    %cst = arith.constant dense<0.000000e+00> : vector<160x16xf32>
    %9 = tpu.matmul %7, %8, %cst {dimension_numbers = #tpu.dot_dimension_numbers<[1], [0], [0], [1], [0, 0, 1, 1], [], []>} : vector<160x32xf32>, vector<32x16xf32>, vector<160x16xf32> -> vector<160x16xf32>
    %c0_13 = arith.constant 0 : index
    %c0_14 = arith.constant 0 : index
    %10 = vector.load %arg6[%c0_13, %c0_14] : memref<1x16xf32, #tpu.memory_space<vmem>>, vector<1x16xf32>
    %c0_15 = arith.constant 0 : index
    %c0_16 = arith.constant 0 : index
    %11 = vector.load %arg7[%c0_15, %c0_16] : memref<1x16xf32, #tpu.memory_space<vmem>>, vector<1x16xf32>
    %cst_17 = arith.constant dense<0.000000e+00> : vector<160xf32>
    %12 = vector.multi_reduction <add>, %9, %cst_17 [1] : vector<160x16xf32> to vector<160xf32>
    %13 = vector.shape_cast %12 : vector<160xf32> to vector<160x1xf32>
    %cst_18 = arith.constant 1.600000e+01 : f32
    %14 = vector.broadcast %cst_18 : f32 to vector<160x1xf32>
    %15 = arith.divf %13, %14 : vector<160x1xf32>
    %16 = arith.mulf %9, %9 : vector<160x16xf32>
    %cst_19 = arith.constant dense<0.000000e+00> : vector<160xf32>
    %17 = vector.multi_reduction <add>, %16, %cst_19 [1] : vector<160x16xf32> to vector<160xf32>
    %18 = vector.shape_cast %17 : vector<160xf32> to vector<160x1xf32>
    %cst_20 = arith.constant 1.600000e+01 : f32
    %19 = vector.broadcast %cst_20 : f32 to vector<160x1xf32>
    %20 = arith.divf %18, %19 : vector<160x1xf32>
    %21 = arith.mulf %15, %15 : vector<160x1xf32>
    %22 = arith.subf %20, %21 : vector<160x1xf32>
    %cst_21 = arith.constant 0.000000e+00 : f32
    %23 = vector.broadcast %cst_21 : f32 to vector<160x1xf32>
    %24 = arith.maximumf %22, %23 : vector<160x1xf32>
    %25 = vector.broadcast %15 : vector<160x1xf32> to vector<160x16xf32>
    %26 = arith.subf %9, %25 : vector<160x16xf32>
    %cst_22 = arith.constant 9.99999997E-7 : f32
    %27 = vector.broadcast %cst_22 : f32 to vector<160x1xf32>
    %28 = arith.addf %24, %27 : vector<160x1xf32>
    %29 = math.rsqrt %28 : vector<160x1xf32>
    %30 = vector.broadcast %29 : vector<160x1xf32> to vector<160x16xf32>
    %31 = arith.mulf %26, %30 : vector<160x16xf32>
    %32 = vector.broadcast %10 : vector<1x16xf32> to vector<160x16xf32>
    %33 = arith.mulf %31, %32 : vector<160x16xf32>
    %34 = vector.broadcast %11 : vector<1x16xf32> to vector<160x16xf32>
    %35 = arith.addf %33, %34 : vector<160x16xf32>
    %cst_23 = arith.constant 5.000000e-01 : f32
    %36 = vector.broadcast %cst_23 : f32 to vector<160x16xf32>
    %37 = arith.mulf %36, %35 : vector<160x16xf32>
    %cst_24 = arith.constant 4.471500e-02 : f32
    %38 = vector.broadcast %cst_24 : f32 to vector<160x16xf32>
    %39 = arith.mulf %38, %35 : vector<160x16xf32>
    %40 = arith.mulf %39, %35 : vector<160x16xf32>
    %41 = arith.mulf %40, %35 : vector<160x16xf32>
    %42 = arith.addf %35, %41 : vector<160x16xf32>
    %cst_25 = arith.constant 0.797884583 : f32
    %43 = vector.broadcast %cst_25 : f32 to vector<160x16xf32>
    %44 = arith.mulf %43, %42 : vector<160x16xf32>
    %45 = math.tanh %44 : vector<160x16xf32>
    %cst_26 = arith.constant 1.000000e+00 : f32
    %46 = vector.broadcast %cst_26 : f32 to vector<160x16xf32>
    %47 = arith.addf %46, %45 : vector<160x16xf32>
    %48 = arith.mulf %37, %47 : vector<160x16xf32>
    %49 = vector.shape_cast %48 : vector<160x16xf32> to vector<10x16x16xf32>
    %50 = tpu.iota {dimensions = array<i32: 0>} : vector<10x16x16xi32>
    %c0_i32 = arith.constant 0 : i32
    %51 = vector.broadcast %c0_i32 : i32 to vector<10x16x16xi32>
    %52 = arith.cmpi eq, %50, %51 : vector<10x16x16xi32>
    %c0_i32_27 = arith.constant 0 : i32
    %53 = arith.cmpi eq, %arg1, %c0_i32_27 : i32
    %54 = vector.broadcast %53 : i1 to vector<10x16x16xi1>
    %55 = arith.andi %52, %54 : vector<10x16x16xi1>
    %c9_i32 = arith.constant 9 : i32
    %56 = vector.broadcast %c9_i32 : i32 to vector<10x16x16xi32>
    %57 = arith.cmpi eq, %50, %56 : vector<10x16x16xi32>
    %c1_i32 = arith.constant 1 : i32
    %58 = arith.cmpi eq, %arg1, %c1_i32 : i32
    %59 = vector.broadcast %58 : i1 to vector<10x16x16xi1>
    %60 = arith.andi %57, %59 : vector<10x16x16xi1>
    %61 = arith.ori %55, %60 : vector<10x16x16xi1>
    %cst_28 = arith.constant 0.000000e+00 : f32
    %62 = vector.broadcast %cst_28 : f32 to vector<10x16x16xf32>
    %63 = arith.select %61, %62, %49 : vector<10x16x16xi1>, vector<10x16x16xf32>
    %64 = tpu.iota {dimensions = array<i32: 1>} : vector<10x16x16xi32>
    %c0_i32_29 = arith.constant 0 : i32
    %65 = vector.broadcast %c0_i32_29 : i32 to vector<10x16x16xi32>
    %66 = arith.cmpi eq, %64, %65 : vector<10x16x16xi32>
    %c1_i32_30 = arith.constant 1 : i32
    %67 = tpu.dynamic_rotate %63 by %c1_i32_30 dim 1 : vector<10x16x16xf32>, i32 -> vector<10x16x16xf32>
    %cst_31 = arith.constant 0.000000e+00 : f32
    %68 = vector.broadcast %cst_31 : f32 to vector<10x16x16xf32>
    %69 = arith.select %66, %68, %67 : vector<10x16x16xi1>, vector<10x16x16xf32>
    %c15_i32 = arith.constant 15 : i32
    %70 = vector.broadcast %c15_i32 : i32 to vector<10x16x16xi32>
    %71 = arith.cmpi eq, %64, %70 : vector<10x16x16xi32>
    %c15_i32_32 = arith.constant 15 : i32
    %72 = tpu.dynamic_rotate %63 by %c15_i32_32 dim 1 : vector<10x16x16xf32>, i32 -> vector<10x16x16xf32>
    %cst_33 = arith.constant 0.000000e+00 : f32
    %73 = vector.broadcast %cst_33 : f32 to vector<10x16x16xf32>
    %74 = arith.select %71, %73, %72 : vector<10x16x16xi1>, vector<10x16x16xf32>
    %75 = tpu.concatenate %69, %63, %74 in 2 : vector<10x16x16xf32>, vector<10x16x16xf32>, vector<10x16x16xf32> -> vector<10x16x48xf32>
    %76 = vector.extract_strided_slice %75 {offsets = [0, 0, 0], sizes = [8, 16, 48], strides = [1, 1, 1]} : vector<10x16x48xf32> to vector<8x16x48xf32>
    %77 = vector.extract_strided_slice %75 {offsets = [1, 0, 0], sizes = [8, 16, 48], strides = [1, 1, 1]} : vector<10x16x48xf32> to vector<8x16x48xf32>
    %78 = vector.extract_strided_slice %75 {offsets = [2, 0, 0], sizes = [8, 16, 48], strides = [1, 1, 1]} : vector<10x16x48xf32> to vector<8x16x48xf32>
    %79 = tpu.concatenate %76, %77, %78 in 2 : vector<8x16x48xf32>, vector<8x16x48xf32>, vector<8x16x48xf32> -> vector<8x16x144xf32>
    %80 = vector.shape_cast %79 : vector<8x16x144xf32> to vector<128x144xf32>
    %c0_34 = arith.constant 0 : index
    %c0_35 = arith.constant 0 : index
    %81 = vector.load %arg8[%c0_34, %c0_35] : memref<144x16xf32, #tpu.memory_space<vmem>>, vector<144x16xf32>
    %cst_36 = arith.constant dense<0.000000e+00> : vector<128x16xf32>
    %82 = tpu.matmul %80, %81, %cst_36 {dimension_numbers = #tpu.dot_dimension_numbers<[1], [0], [0], [1], [0, 0, 1, 1], [], []>} : vector<128x144xf32>, vector<144x16xf32>, vector<128x16xf32> -> vector<128x16xf32>
    %c0_37 = arith.constant 0 : index
    %c0_38 = arith.constant 0 : index
    %83 = vector.load %arg9[%c0_37, %c0_38] : memref<1x16xf32, #tpu.memory_space<vmem>>, vector<1x16xf32>
    %c0_39 = arith.constant 0 : index
    %c0_40 = arith.constant 0 : index
    %84 = vector.load %arg10[%c0_39, %c0_40] : memref<1x16xf32, #tpu.memory_space<vmem>>, vector<1x16xf32>
    %cst_41 = arith.constant dense<0.000000e+00> : vector<128xf32>
    %85 = vector.multi_reduction <add>, %82, %cst_41 [1] : vector<128x16xf32> to vector<128xf32>
    %86 = vector.shape_cast %85 : vector<128xf32> to vector<128x1xf32>
    %cst_42 = arith.constant 1.600000e+01 : f32
    %87 = vector.broadcast %cst_42 : f32 to vector<128x1xf32>
    %88 = arith.divf %86, %87 : vector<128x1xf32>
    %89 = arith.mulf %82, %82 : vector<128x16xf32>
    %cst_43 = arith.constant dense<0.000000e+00> : vector<128xf32>
    %90 = vector.multi_reduction <add>, %89, %cst_43 [1] : vector<128x16xf32> to vector<128xf32>
    %91 = vector.shape_cast %90 : vector<128xf32> to vector<128x1xf32>
    %cst_44 = arith.constant 1.600000e+01 : f32
    %92 = vector.broadcast %cst_44 : f32 to vector<128x1xf32>
    %93 = arith.divf %91, %92 : vector<128x1xf32>
    %94 = arith.mulf %88, %88 : vector<128x1xf32>
    %95 = arith.subf %93, %94 : vector<128x1xf32>
    %cst_45 = arith.constant 0.000000e+00 : f32
    %96 = vector.broadcast %cst_45 : f32 to vector<128x1xf32>
    %97 = arith.maximumf %95, %96 : vector<128x1xf32>
    %98 = vector.broadcast %88 : vector<128x1xf32> to vector<128x16xf32>
    %99 = arith.subf %82, %98 : vector<128x16xf32>
    %cst_46 = arith.constant 9.99999997E-7 : f32
    %100 = vector.broadcast %cst_46 : f32 to vector<128x1xf32>
    %101 = arith.addf %97, %100 : vector<128x1xf32>
    %102 = math.rsqrt %101 : vector<128x1xf32>
    %103 = vector.broadcast %102 : vector<128x1xf32> to vector<128x16xf32>
    %104 = arith.mulf %99, %103 : vector<128x16xf32>
    %105 = vector.broadcast %83 : vector<1x16xf32> to vector<128x16xf32>
    %106 = arith.mulf %104, %105 : vector<128x16xf32>
    %107 = vector.broadcast %84 : vector<1x16xf32> to vector<128x16xf32>
    %108 = arith.addf %106, %107 : vector<128x16xf32>
    %cst_47 = arith.constant 5.000000e-01 : f32
    %109 = vector.broadcast %cst_47 : f32 to vector<128x16xf32>
    %110 = arith.mulf %109, %108 : vector<128x16xf32>
    %cst_48 = arith.constant 4.471500e-02 : f32
    %111 = vector.broadcast %cst_48 : f32 to vector<128x16xf32>
    %112 = arith.mulf %111, %108 : vector<128x16xf32>
    %113 = arith.mulf %112, %108 : vector<128x16xf32>
    %114 = arith.mulf %113, %108 : vector<128x16xf32>
    %115 = arith.addf %108, %114 : vector<128x16xf32>
    %cst_49 = arith.constant 0.797884583 : f32
    %116 = vector.broadcast %cst_49 : f32 to vector<128x16xf32>
    %117 = arith.mulf %116, %115 : vector<128x16xf32>
    %118 = math.tanh %117 : vector<128x16xf32>
    %cst_50 = arith.constant 1.000000e+00 : f32
    %119 = vector.broadcast %cst_50 : f32 to vector<128x16xf32>
    %120 = arith.addf %119, %118 : vector<128x16xf32>
    %121 = arith.mulf %110, %120 : vector<128x16xf32>
    %c0_51 = arith.constant 0 : index
    %c0_52 = arith.constant 0 : index
    %122 = vector.load %arg11[%c0_51, %c0_52] : memref<16x32xf32, #tpu.memory_space<vmem>>, vector<16x32xf32>
    %cst_53 = arith.constant dense<0.000000e+00> : vector<128x32xf32>
    %123 = tpu.matmul %121, %122, %cst_53 {dimension_numbers = #tpu.dot_dimension_numbers<[1], [0], [0], [1], [0, 0, 1, 1], [], []>} : vector<128x16xf32>, vector<16x32xf32>, vector<128x32xf32> -> vector<128x32xf32>
    %c0_54 = arith.constant 0 : index
    %c0_55 = arith.constant 0 : index
    %124 = vector.load %arg12[%c0_54, %c0_55] : memref<1x32xf32, #tpu.memory_space<vmem>>, vector<1x32xf32>
    %c0_56 = arith.constant 0 : index
    %c0_57 = arith.constant 0 : index
    %125 = vector.load %arg13[%c0_56, %c0_57] : memref<1x32xf32, #tpu.memory_space<vmem>>, vector<1x32xf32>
    %cst_58 = arith.constant dense<0.000000e+00> : vector<128xf32>
    %126 = vector.multi_reduction <add>, %123, %cst_58 [1] : vector<128x32xf32> to vector<128xf32>
    %127 = vector.shape_cast %126 : vector<128xf32> to vector<128x1xf32>
    %cst_59 = arith.constant 3.200000e+01 : f32
    %128 = vector.broadcast %cst_59 : f32 to vector<128x1xf32>
    %129 = arith.divf %127, %128 : vector<128x1xf32>
    %130 = arith.mulf %123, %123 : vector<128x32xf32>
    %cst_60 = arith.constant dense<0.000000e+00> : vector<128xf32>
    %131 = vector.multi_reduction <add>, %130, %cst_60 [1] : vector<128x32xf32> to vector<128xf32>
    %132 = vector.shape_cast %131 : vector<128xf32> to vector<128x1xf32>
    %cst_61 = arith.constant 3.200000e+01 : f32
    %133 = vector.broadcast %cst_61 : f32 to vector<128x1xf32>
    %134 = arith.divf %132, %133 : vector<128x1xf32>
    %135 = arith.mulf %129, %129 : vector<128x1xf32>
    %136 = arith.subf %134, %135 : vector<128x1xf32>
    %cst_62 = arith.constant 0.000000e+00 : f32
    %137 = vector.broadcast %cst_62 : f32 to vector<128x1xf32>
    %138 = arith.maximumf %136, %137 : vector<128x1xf32>
    %139 = vector.broadcast %129 : vector<128x1xf32> to vector<128x32xf32>
    %140 = arith.subf %123, %139 : vector<128x32xf32>
    %cst_63 = arith.constant 9.99999997E-7 : f32
    %141 = vector.broadcast %cst_63 : f32 to vector<128x1xf32>
    %142 = arith.addf %138, %141 : vector<128x1xf32>
    %143 = math.rsqrt %142 : vector<128x1xf32>
    %144 = vector.broadcast %143 : vector<128x1xf32> to vector<128x32xf32>
    %145 = arith.mulf %140, %144 : vector<128x32xf32>
    %146 = vector.broadcast %124 : vector<1x32xf32> to vector<128x32xf32>
    %147 = arith.mulf %145, %146 : vector<128x32xf32>
    %148 = vector.broadcast %125 : vector<1x32xf32> to vector<128x32xf32>
    %149 = arith.addf %147, %148 : vector<128x32xf32>
    %c0_64 = arith.constant 0 : index
    %c0_65 = arith.constant 0 : index
    %c0_66 = arith.constant 0 : index
    %c0_67 = arith.constant 0 : index
    %150 = vector.load %arg2[%c0_64, %c0_65, %c0_66, %c0_67] : memref<1x8x16x32xf32, #tpu.memory_space<vmem>>, vector<1x8x16x32xf32>
    %151 = vector.shape_cast %150 : vector<1x8x16x32xf32> to vector<8x16x32xf32>
    %152 = vector.shape_cast %151 : vector<8x16x32xf32> to vector<128x32xf32>
    %153 = arith.addf %152, %149 : vector<128x32xf32>
    %154 = vector.shape_cast %153 : vector<128x32xf32> to vector<8x16x32xf32>
    %c0_68 = arith.constant 0 : index
    %c0_69 = arith.constant 0 : index
    %c0_70 = arith.constant 0 : index
    %c0_71 = arith.constant 0 : index
    %155 = vector.load %arg14[%c0_68, %c0_69, %c0_70, %c0_71] : memref<1x8x16x32xf32, #tpu.memory_space<vmem>>, vector<1x8x16x32xf32>
    %156 = vector.shape_cast %155 : vector<1x8x16x32xf32> to vector<8x16x32xf32>
    %157 = vector.shape_cast %154 : vector<8x16x32xf32> to vector<1x8x16x32xf32>
    tpu.vector_store %arg14[%c0_68, %c0_69, %c0_70, %c0_71], %157 {strides = array<i32>} : memref<1x8x16x32xf32, #tpu.memory_space<vmem>>, vector<1x8x16x32xf32>,
    return
  }
  func.func @transform_0(%arg0: i32, %arg1: i32) -> (i32, i32, i32, i32) {
    %c0_i32 = arith.constant 0 : i32
    %c0_i32_0 = arith.constant 0 : i32
    %c0_i32_1 = arith.constant 0 : i32
    return %arg0, %arg1, %c0_i32, %c0_i32_0 : i32, i32, i32, i32
  }
  func.func @transform_1(%arg0: i32, %arg1: i32) -> (i32, i32, i32, i32) {
    %c8_i32 = arith.constant 8 : i32
    %0 = arith.muli %arg1, %c8_i32 : i32
    %c1_i32 = arith.constant 1 : i32
    %1 = arith.subi %0, %c1_i32 : i32
    %c0_i32 = arith.constant 0 : i32
    %2 = arith.maxsi %1, %c0_i32 : i32
    %c0_i32_0 = arith.constant 0 : i32
    %c0_i32_1 = arith.constant 0 : i32
    %c0_i32_2 = arith.constant 0 : i32
    return %arg0, %2, %c0_i32_0, %c0_i32_1 : i32, i32, i32, i32
  }
  func.func @transform_2(%arg0: i32, %arg1: i32) -> (i32, i32, i32, i32) {
    %c1_i32 = arith.constant 1 : i32
    %0 = arith.addi %arg1, %c1_i32 : i32
    %c8_i32 = arith.constant 8 : i32
    %1 = arith.muli %0, %c8_i32 : i32
    %c15_i32 = arith.constant 15 : i32
    %2 = arith.minsi %1, %c15_i32 : i32
    %c0_i32 = arith.constant 0 : i32
    %c0_i32_0 = arith.constant 0 : i32
    %c0_i32_1 = arith.constant 0 : i32
    return %arg0, %2, %c0_i32, %c0_i32_0 : i32, i32, i32, i32
  }
  func.func @transform_3(%arg0: i32, %arg1: i32) -> (i32, i32) {
    %c0_i32 = arith.constant 0 : i32
    %c0_i32_0 = arith.constant 0 : i32
    %c0_i32_1 = arith.constant 0 : i32
    return %c0_i32, %c0_i32_0 : i32, i32
  }
  func.func @transform_4(%arg0: i32, %arg1: i32) -> (i32, i32) {
    %c0_i32 = arith.constant 0 : i32
    %c0_i32_0 = arith.constant 0 : i32
    %c0_i32_1 = arith.constant 0 : i32
    return %c0_i32, %c0_i32_0 : i32, i32
  }
  func.func @transform_5(%arg0: i32, %arg1: i32) -> (i32, i32) {
    %c0_i32 = arith.constant 0 : i32
    %c0_i32_0 = arith.constant 0 : i32
    %c0_i32_1 = arith.constant 0 : i32
    return %c0_i32, %c0_i32_0 : i32, i32
  }
  func.func @transform_6(%arg0: i32, %arg1: i32) -> (i32, i32) {
    %c0_i32 = arith.constant 0 : i32
    %c0_i32_0 = arith.constant 0 : i32
    %c0_i32_1 = arith.constant 0 : i32
    return %c0_i32, %c0_i32_0 : i32, i32
  }
  func.func @transform_7(%arg0: i32, %arg1: i32) -> (i32, i32) {
    %c0_i32 = arith.constant 0 : i32
    %c0_i32_0 = arith.constant 0 : i32
    %c0_i32_1 = arith.constant 0 : i32
    return %c0_i32, %c0_i32_0 : i32, i32
  }
  func.func @transform_8(%arg0: i32, %arg1: i32) -> (i32, i32) {
    %c0_i32 = arith.constant 0 : i32
    %c0_i32_0 = arith.constant 0 : i32
    %c0_i32_1 = arith.constant 0 : i32
    return %c0_i32, %c0_i32_0 : i32, i32
  }
  func.func @transform_9(%arg0: i32, %arg1: i32) -> (i32, i32) {
    %c0_i32 = arith.constant 0 : i32
    %c0_i32_0 = arith.constant 0 : i32
    %c0_i32_1 = arith.constant 0 : i32
    return %c0_i32, %c0_i32_0 : i32, i32
  }
  func.func @transform_10(%arg0: i32, %arg1: i32) -> (i32, i32) {
    %c0_i32 = arith.constant 0 : i32
    %c0_i32_0 = arith.constant 0 : i32
    %c0_i32_1 = arith.constant 0 : i32
    return %c0_i32, %c0_i32_0 : i32, i32
  }
  func.func @transform_11(%arg0: i32, %arg1: i32) -> (i32, i32) {
    %c0_i32 = arith.constant 0 : i32
    %c0_i32_0 = arith.constant 0 : i32
    %c0_i32_1 = arith.constant 0 : i32
    return %c0_i32, %c0_i32_0 : i32, i32
  }
  func.func @transform_12(%arg0: i32, %arg1: i32) -> (i32, i32, i32, i32) {
    %c0_i32 = arith.constant 0 : i32
    %c0_i32_0 = arith.constant 0 : i32
    %c0_i32_1 = arith.constant 0 : i32
    return %arg0, %arg1, %c0_i32, %c0_i32_0 : i32, i32, i32, i32
  }
}

</mosaic_0001>

<llo_original>
// kernel: res_bottleneck_block.1
$region0: #{res_bottleneck_block.1}
  #allocation0 [shape = 'u32[]', space=smem, size = 0x4, offset = 0x4, fixed_abs, tag = 'smem constant byte address 0x4 - core index']
  #allocation1 [shape = 'u32[144,128]{1,0:T(1,128)}', space=vmem, size = 0x12000, scoped, tag = 'internal scratch']
  %s0 = inlined_call_operand.hbm [shape: f32[2,16,16,32], index: 0, kind: input, shape index: {}, may-alias: {0,1,2}]
  %s1 = inlined_call_operand.hbm [shape: f32[2,16,16,32], index: 1, kind: input, shape index: {}, may-alias: {0,1,2}]
  %s2 = inlined_call_operand.hbm [shape: f32[2,16,16,32], index: 2, kind: input, shape index: {}, may-alias: {0,1,2}]
  %s3 = inlined_call_operand.vmem [shape: f32[32,16], index: 3, kind: input, shape index: {}]
  %s4 = inlined_call_operand.vmem [shape: f32[1,16], index: 4, kind: input, shape index: {}]
  %s5 = inlined_call_operand.vmem [shape: f32[1,16], index: 5, kind: input, shape index: {}]
  %s6 = inlined_call_operand.vmem [shape: f32[144,16], index: 6, kind: input, shape index: {}]
  %s7 = inlined_call_operand.vmem [shape: f32[1,16], index: 7, kind: input, shape index: {}]
  %s8 = inlined_call_operand.vmem [shape: f32[1,16], index: 8, kind: input, shape index: {}]
  %s9 = inlined_call_operand.vmem [shape: f32[16,32], index: 9, kind: input, shape index: {}]
  %s10 = inlined_call_operand.vmem [shape: f32[1,32], index: 10, kind: input, shape index: {}]
  %s11 = inlined_call_operand.vmem [shape: f32[1,32], index: 11, kind: input, shape index: {}]
  %s12 = inlined_call_operand.hbm [shape: f32[2,16,16,32], index: 12, kind: output, shape index: {}]
  %s13 = sld [smem:[#allocation0]]
  $region93: #{res_bottleneck_block.1} parent=0
    _
  %s15 = ssub.s32 1, %s13
  %s16 = scalar_select 0, %s15, %s13
  $region1: #{res_bottleneck_block.1} parent=0
    #allocation2 [shape = 'u8[131072]{0}', space=vmem, size = 0x20000, scoped, tag = 'input window, operand 0']
    #allocation3 [shape = 's32[2]{0}', space=sflag, size = 0x8, scoped, tag = 'scoped memory for res_bottleneck_block.1']
    #allocation4 [shape = 's32[2]{0}', space=sflag, size = 0x8, scoped, tag = 'scoped memory for res_bottleneck_block.1']
    #allocation5 [shape = 'u8[16384]{0}', space=vmem, size = 0x4000, scoped, tag = 'input window, operand 1']
    #allocation6 [shape = 's32[2]{0}', space=sflag, size = 0x8, scoped, tag = 'scoped memory for res_bottleneck_block.1']
    #allocation7 [shape = 'u8[16384]{0}', space=vmem, size = 0x4000, scoped, tag = 'input window, operand 2']
    #allocation8 [shape = 'u8[131072]{0}', space=vmem, size = 0x20000, scoped, tag = 'output window, operand 0']
    %17 = vsyncpa [#allocation3], 0
    %s18 = scalar_lea.sflag [#allocation3], 1
    %19 = vsyncpa %s18, 0
    %20 = vsyncpa [#allocation6], 0
    %s21 = scalar_lea.sflag [#allocation6], 1
    %22 = vsyncpa %s21, 0
    %23 = vsyncpa [#allocation4], 0
    %s24 = scalar_lea.sflag [#allocation4], 1
    %25 = vsyncpa %s24, 0
    loop: start=0, step=1, limit=6
    $region2: #{res_bottleneck_block.1} parent=1 // loop_pre_header
      _
    $region3: #{res_bottleneck_block.1} parent=1 // loop_header
      %s27 = sphi 0, %s31
      %p28 = scmp.ge.s32.totalorder %s27, 6
      %s34 = sphi 0, %s46
      %s35 = sphi 0, %s42
      %s36 = sphi 0, %s34
      %s37 = sphi 0, %s35
      %s38 = sphi 0, %s36
      %s39 = sphi 0, %s37
      %s51 = sphi 0, %s53
      %s54 = sphi 0, %s51
      %s55 = sphi 0, %s54
      %s71 = sphi 0, %s55
      %s87 = sphi 0, %s89
      %s90 = sphi 0, %s87
      %s91 = sphi 0, %s90
      %s107 = sphi 0, %s91
      %s123 = sphi 0, %s125
      %s126 = sphi 0, %s123
      %s127 = sphi 0, %s126
      %s143 = sphi 0, %s127
      %s147 = sphi 0, %s147
      %s149 = sphi 0, %s147
      %s150 = sphi 0, %s149
      %s164 = sphi 0, %s150
      %s168 = sphi 0, %s168
      %s170 = sphi 0, %s168
      %s171 = sphi 0, %s170
      %s185 = sphi 0, %s171
      %s189 = sphi 0, %s189
      %s191 = sphi 0, %s189
      %s192 = sphi 0, %s191
      %s206 = sphi 0, %s192
      %s210 = sphi 0, %s210
      %s212 = sphi 0, %s210
      %s213 = sphi 0, %s212
      %s227 = sphi 0, %s213
      %s231 = sphi 0, %s231
      %s233 = sphi 0, %s231
      %s234 = sphi 0, %s233
      %s248 = sphi 0, %s234
      %s252 = sphi 0, %s252
      %s254 = sphi 0, %s252
      %s255 = sphi 0, %s254
      %s269 = sphi 0, %s255
      %s273 = sphi 0, %s273
      %s275 = sphi 0, %s273
      %s276 = sphi 0, %s275
      %s290 = sphi 0, %s276
      %s294 = sphi 0, %s294
      %s296 = sphi 0, %s294
      %s297 = sphi 0, %s296
      %s311 = sphi 0, %s297
      %s315 = sphi 0, %s315
      %s317 = sphi 0, %s315
      %s318 = sphi 0, %s317
      %s332 = sphi 0, %s318
      %s340 = sphi 0, %s342
      %s343 = sphi 0, %s340
      %s344 = sphi 0, %s343
      %s360 = sphi 0, %s344
    $region4: #{res_bottleneck_block.1} parent=1 // loop_header_branch
      %30 = sbr.rel (%p28) target = $region8
    $region5: #{res_bottleneck_block.1} parent=1 // loop_body
      %s32 = ssub.s32 %s27, 1
      %s33 = ssub.s32 %s27, 2
      %s40 = sadd.s32 1, %s35
      %p41 = scmp.ge.s32.totalorder %s40, 2
      %s42 = scalar_select %p41, 0, %s40
      %s43 = sadd.s32 1, %s34
      %s44 = scalar_select %p41, %s43, %s34
      %p45 = scmp.ge.s32.totalorder %s44, 2
      %s46 = scalar_select %p45, 0, %s44
      %s47 = ssub.s32 %s34, %s46
      %s48 = ssub.s32 %s35, %s42
      %s49 = sor.u32 %s47, %s48
      %p50 = scmp.eq.s32.totalorder %s49, 0
      %s52 = sadd.s32 %s51, 1
      %s53 = scalar_select %p50, %s51, %s52
      %p56 = pneg %p50
      %p57 = scmp.eq.s32.totalorder %s27, 3
      %p58 = por %p56, %p57
      %p59 = scmp.ne.s32.totalorder %s51, %s54
      %p60 = scmp.eq.s32.totalorder %s27, 0
      %p61 = por %p59, %p60
      %p62 = scmp.ne.s32.totalorder %s51, %s54
      %p63 = scmp.eq.s32.totalorder %s32, 3
      %p64 = por %p62, %p63
      %p65 = scmp.ne.s32.totalorder %s54, %s55
      %p66 = scmp.eq.s32.totalorder %s32, 0
      %p67 = por %p65, %p66
      %p68 = scmp.ne.s32.totalorder %s54, %s55
      %p69 = scmp.eq.s32.totalorder %s33, 3
      %p70 = por %p68, %p69
      %p72 = scmp.ne.s32.totalorder %s55, %s71
      %p73 = scmp.eq.s32.totalorder %s33, 0
      %p74 = por %p72, %p73
      %s75 = smul.u32 %s35, 8
      %s76 = ssub.s32 %s75, 1
      %p77 = scmp.gt.s32.totalorder %s76, 0
      %s78 = scalar_select %p77, %s76, 0
      %s79 = smul.u32 %s42, 8
      %s80 = ssub.s32 %s79, 1
      %p81 = scmp.gt.s32.totalorder %s80, 0
      %s82 = scalar_select %p81, %s80, 0
      %s83 = ssub.s32 %s34, %s46
      %s84 = ssub.s32 %s78, %s82
      %s85 = sor.u32 %s83, %s84
      %p86 = scmp.eq.s32.totalorder %s85, 0
      %s88 = sadd.s32 %s87, 1
      %s89 = scalar_select %p86, %s87, %s88
      %p92 = pneg %p86
      %p93 = scmp.eq.s32.totalorder %s27, 3
      %p94 = por %p92, %p93
      %p95 = scmp.ne.s32.totalorder %s87, %s90
      %p96 = scmp.eq.s32.totalorder %s27, 0
      %p97 = por %p95, %p96
      %p98 = scmp.ne.s32.totalorder %s87, %s90
      %p99 = scmp.eq.s32.totalorder %s32, 3
      %p100 = por %p98, %p99
      %p101 = scmp.ne.s32.totalorder %s90, %s91
      %p102 = scmp.eq.s32.totalorder %s32, 0
      %p103 = por %p101, %p102
      %p104 = scmp.ne.s32.totalorder %s90, %s91
      %p105 = scmp.eq.s32.totalorder %s33, 3
      %p106 = por %p104, %p105
      %p108 = scmp.ne.s32.totalorder %s91, %s107
      %p109 = scmp.eq.s32.totalorder %s33, 0
      %p110 = por %p108, %p109
      %s111 = sadd.s32 %s35, 1
      %s112 = smul.u32 %s111, 8
      %p113 = scmp.lt.s32.totalorder %s112, 15
      %s114 = scalar_select %p113, %s112, 15
      %s115 = sadd.s32 %s42, 1
      %s116 = smul.u32 %s115, 8
      %p117 = scmp.lt.s32.totalorder %s116, 15
      %s118 = scalar_select %p117, %s116, 15
      %s119 = ssub.s32 %s34, %s46
      %s120 = ssub.s32 %s114, %s118
      %s121 = sor.u32 %s119, %s120
      %p122 = scmp.eq.s32.totalorder %s121, 0
      %s124 = sadd.s32 %s123, 1
      %s125 = scalar_select %p122, %s123, %s124
      %p128 = pneg %p122
      %p129 = scmp.eq.s32.totalorder %s27, 3
      %p130 = por %p128, %p129
      %p131 = scmp.ne.s32.totalorder %s123, %s126
      %p132 = scmp.eq.s32.totalorder %s27, 0
      %p133 = por %p131, %p132
      %p134 = scmp.ne.s32.totalorder %s123, %s126
      %p135 = scmp.eq.s32.totalorder %s32, 3
      %p136 = por %p134, %p135
      %p137 = scmp.ne.s32.totalorder %s126, %s127
      %p138 = scmp.eq.s32.totalorder %s32, 0
      %p139 = por %p137, %p138
      %p140 = scmp.ne.s32.totalorder %s126, %s127
      %p141 = scmp.eq.s32.totalorder %s33, 3
      %p142 = por %p140, %p141
      %p144 = scmp.ne.s32.totalorder %s127, %s143
      %p145 = scmp.eq.s32.totalorder %s33, 0
      %p146 = por %p144, %p145
      %s148 = sadd.s32 %s147, 1
      %p151 = scmp.eq.s32.totalorder %s27, 3
      %p152 = scmp.ne.s32.totalorder %s147, %s149
      %p153 = scmp.eq.s32.totalorder %s27, 0
      %p154 = por %p152, %p153
      %p155 = scmp.ne.s32.totalorder %s147, %s149
      %p156 = scmp.eq.s32.totalorder %s32, 3
      %p157 = por %p155, %p156
      %p158 = scmp.ne.s32.totalorder %s149, %s150
      %p159 = scmp.eq.s32.totalorder %s32, 0
      %p160 = por %p158, %p159
      %p161 = scmp.ne.s32.totalorder %s149, %s150
      %p162 = scmp.eq.s32.totalorder %s33, 3
      %p163 = por %p161, %p162
      %p165 = scmp.ne.s32.totalorder %s150, %s164
      %p166 = scmp.eq.s32.totalorder %s33, 0
      %p167 = por %p165, %p166
      %s169 = sadd.s32 %s168, 1
      %p172 = scmp.eq.s32.totalorder %s27, 3
      %p173 = scmp.ne.s32.totalorder %s168, %s170
      %p174 = scmp.eq.s32.totalorder %s27, 0
      %p175 = por %p173, %p174
      %p176 = scmp.ne.s32.totalorder %s168, %s170
      %p177 = scmp.eq.s32.totalorder %s32, 3
      %p178 = por %p176, %p177
      %p179 = scmp.ne.s32.totalorder %s170, %s171
      %p180 = scmp.eq.s32.totalorder %s32, 0
      %p181 = por %p179, %p180
      %p182 = scmp.ne.s32.totalorder %s170, %s171
      %p183 = scmp.eq.s32.totalorder %s33, 3
      %p184 = por %p182, %p183
      %p186 = scmp.ne.s32.totalorder %s171, %s185
      %p187 = scmp.eq.s32.totalorder %s33, 0
      %p188 = por %p186, %p187
      %s190 = sadd.s32 %s189, 1
      %p193 = scmp.eq.s32.totalorder %s27, 3
      %p194 = scmp.ne.s32.totalorder %s189, %s191
      %p195 = scmp.eq.s32.totalorder %s27, 0
      %p196 = por %p194, %p195
      %p197 = scmp.ne.s32.totalorder %s189, %s191
      %p198 = scmp.eq.s32.totalorder %s32, 3
      %p199 = por %p197, %p198
      %p200 = scmp.ne.s32.totalorder %s191, %s192
      %p201 = scmp.eq.s32.totalorder %s32, 0
      %p202 = por %p200, %p201
      %p203 = scmp.ne.s32.totalorder %s191, %s192
      %p204 = scmp.eq.s32.totalorder %s33, 3
      %p205 = por %p203, %p204
      %p207 = scmp.ne.s32.totalorder %s192, %s206
      %p208 = scmp.eq.s32.totalorder %s33, 0
      %p209 = por %p207, %p208
      %s211 = sadd.s32 %s210, 1
      %p214 = scmp.eq.s32.totalorder %s27, 3
      %p215 = scmp.ne.s32.totalorder %s210, %s212
      %p216 = scmp.eq.s32.totalorder %s27, 0
      %p217 = por %p215, %p216
      %p218 = scmp.ne.s32.totalorder %s210, %s212
      %p219 = scmp.eq.s32.totalorder %s32, 3
      %p220 = por %p218, %p219
      %p221 = scmp.ne.s32.totalorder %s212, %s213
      %p222 = scmp.eq.s32.totalorder %s32, 0
      %p223 = por %p221, %p222
      %p224 = scmp.ne.s32.totalorder %s212, %s213
      %p225 = scmp.eq.s32.totalorder %s33, 3
      %p226 = por %p224, %p225
      %p228 = scmp.ne.s32.totalorder %s213, %s227
      %p229 = scmp.eq.s32.totalorder %s33, 0
      %p230 = por %p228, %p229
      %s232 = sadd.s32 %s231, 1
      %p235 = scmp.eq.s32.totalorder %s27, 3
      %p236 = scmp.ne.s32.totalorder %s231, %s233
      %p237 = scmp.eq.s32.totalorder %s27, 0
      %p238 = por %p236, %p237
      %p239 = scmp.ne.s32.totalorder %s231, %s233
      %p240 = scmp.eq.s32.totalorder %s32, 3
      %p241 = por %p239, %p240
      %p242 = scmp.ne.s32.totalorder %s233, %s234
      %p243 = scmp.eq.s32.totalorder %s32, 0
      %p244 = por %p242, %p243
      %p245 = scmp.ne.s32.totalorder %s233, %s234
      %p246 = scmp.eq.s32.totalorder %s33, 3
      %p247 = por %p245, %p246
      %p249 = scmp.ne.s32.totalorder %s234, %s248
      %p250 = scmp.eq.s32.totalorder %s33, 0
      %p251 = por %p249, %p250
      %s253 = sadd.s32 %s252, 1
      %p256 = scmp.eq.s32.totalorder %s27, 3
      %p257 = scmp.ne.s32.totalorder %s252, %s254
      %p258 = scmp.eq.s32.totalorder %s27, 0
      %p259 = por %p257, %p258
      %p260 = scmp.ne.s32.totalorder %s252, %s254
      %p261 = scmp.eq.s32.totalorder %s32, 3
      %p262 = por %p260, %p261
      %p263 = scmp.ne.s32.totalorder %s254, %s255
      %p264 = scmp.eq.s32.totalorder %s32, 0
      %p265 = por %p263, %p264
      %p266 = scmp.ne.s32.totalorder %s254, %s255
      %p267 = scmp.eq.s32.totalorder %s33, 3
      %p268 = por %p266, %p267
      %p270 = scmp.ne.s32.totalorder %s255, %s269
      %p271 = scmp.eq.s32.totalorder %s33, 0
      %p272 = por %p270, %p271
      %s274 = sadd.s32 %s273, 1
      %p277 = scmp.eq.s32.totalorder %s27, 3
      %p278 = scmp.ne.s32.totalorder %s273, %s275
      %p279 = scmp.eq.s32.totalorder %s27, 0
      %p280 = por %p278, %p279
      %p281 = scmp.ne.s32.totalorder %s273, %s275
      %p282 = scmp.eq.s32.totalorder %s32, 3
      %p283 = por %p281, %p282
      %p284 = scmp.ne.s32.totalorder %s275, %s276
      %p285 = scmp.eq.s32.totalorder %s32, 0
      %p286 = por %p284, %p285
      %p287 = scmp.ne.s32.totalorder %s275, %s276
      %p288 = scmp.eq.s32.totalorder %s33, 3
      %p289 = por %p287, %p288
      %p291 = scmp.ne.s32.totalorder %s276, %s290
      %p292 = scmp.eq.s32.totalorder %s33, 0
      %p293 = por %p291, %p292
      %s295 = sadd.s32 %s294, 1
      %p298 = scmp.eq.s32.totalorder %s27, 3
      %p299 = scmp.ne.s32.totalorder %s294, %s296
      %p300 = scmp.eq.s32.totalorder %s27, 0
      %p301 = por %p299, %p300
      %p302 = scmp.ne.s32.totalorder %s294, %s296
      %p303 = scmp.eq.s32.totalorder %s32, 3
      %p304 = por %p302, %p303
      %p305 = scmp.ne.s32.totalorder %s296, %s297
      %p306 = scmp.eq.s32.totalorder %s32, 0
      %p307 = por %p305, %p306
      %p308 = scmp.ne.s32.totalorder %s296, %s297
      %p309 = scmp.eq.s32.totalorder %s33, 3
      %p310 = por %p308, %p309
      %p312 = scmp.ne.s32.totalorder %s297, %s311
      %p313 = scmp.eq.s32.totalorder %s33, 0
      %p314 = por %p312, %p313
      %s316 = sadd.s32 %s315, 1
      %p319 = scmp.eq.s32.totalorder %s27, 3
      %p320 = scmp.ne.s32.totalorder %s315, %s317
      %p321 = scmp.eq.s32.totalorder %s27, 0
      %p322 = por %p320, %p321
      %p323 = scmp.ne.s32.totalorder %s315, %s317
      %p324 = scmp.eq.s32.totalorder %s32, 3
      %p325 = por %p323, %p324
      %p326 = scmp.ne.s32.totalorder %s317, %s318
      %p327 = scmp.eq.s32.totalorder %s32, 0
      %p328 = por %p326, %p327
      %p329 = scmp.ne.s32.totalorder %s317, %s318
      %p330 = scmp.eq.s32.totalorder %s33, 3
      %p331 = por %p329, %p330
      %p333 = scmp.ne.s32.totalorder %s318, %s332
      %p334 = scmp.eq.s32.totalorder %s33, 0
      %p335 = por %p333, %p334
      %s336 = ssub.s32 %s34, %s46
      %s337 = ssub.s32 %s35, %s42
      %s338 = sor.u32 %s336, %s337
      %p339 = scmp.eq.s32.totalorder %s338, 0
      %s341 = sadd.s32 %s340, 1
      %s342 = scalar_select %p339, %s340, %s341
      %p345 = pneg %p339
      %p346 = scmp.eq.s32.totalorder %s27, 3
      %p347 = por %p345, %p346
      %p348 = scmp.ne.s32.totalorder %s340, %s343
      %p349 = scmp.eq.s32.totalorder %s27, 0
      %p350 = por %p348, %p349
      %p351 = scmp.ne.s32.totalorder %s340, %s343
      %p352 = scmp.eq.s32.totalorder %s32, 3
      %p353 = por %p351, %p352
      %p354 = scmp.ne.s32.totalorder %s343, %s344
      %p355 = scmp.eq.s32.totalorder %s32, 0
      %p356 = por %p354, %p355
      %p357 = scmp.ne.s32.totalorder %s343, %s344
      %p358 = scmp.eq.s32.totalorder %s33, 3
      %p359 = por %p357, %p358
      %p361 = scmp.ne.s32.totalorder %s344, %s360
      %p362 = scmp.eq.s32.totalorder %s33, 0
      %p363 = por %p361, %p362
      %p364 = scmp.le.s32.totalorder 1, %s27
      %p365 = scmp.lt.s32.totalorder %s27, 5
      %p366 = pnand %p364, %p365
      %p367 = pneg %p366
      // Predicated region
      $region9: #{res_bottleneck_block.1} parent=5 // pred_check
        _
      $region10: #{res_bottleneck_block.1} parent=5 // pred_check_branch
        %369 = sbr.rel (%p366) target = $region12
      $region11: #{res_bottleneck_block.1} parent=5 // pred_region
        %s370 = ssub.s32 %s27, 1
        // Predicated region
        $region13: #{res_bottleneck_block.1} parent=11 // pred_check
          %p371 = pneg %p160
        $region14: #{res_bottleneck_block.1} parent=11 // pred_check_branch
          %373 = sbr.rel (%p371) target = $region16
        $region15: #{res_bottleneck_block.1} parent=11 // pred_region
          _
        $region16: #{res_bottleneck_block.1} parent=11 // pred_fallthru
          _
        // Predicated region
        $region17: #{res_bottleneck_block.1} parent=11 // pred_check
          %p374 = pneg %p181
        $region18: #{res_bottleneck_block.1} parent=11 // pred_check_branch
          %376 = sbr.rel (%p374) target = $region20
        $region19: #{res_bottleneck_block.1} parent=11 // pred_region
          _
        $region20: #{res_bottleneck_block.1} parent=11 // pred_fallthru
          _
        // Predicated region
        $region21: #{res_bottleneck_block.1} parent=11 // pred_check
          %p377 = pneg %p202
        $region22: #{res_bottleneck_block.1} parent=11 // pred_check_branch
          %379 = sbr.rel (%p377) target = $region24
        $region23: #{res_bottleneck_block.1} parent=11 // pred_region
          _
        $region24: #{res_bottleneck_block.1} parent=11 // pred_fallthru
          _
        // Predicated region
        $region25: #{res_bottleneck_block.1} parent=11 // pred_check
          %p380 = pneg %p223
        $region26: #{res_bottleneck_block.1} parent=11 // pred_check_branch
          %382 = sbr.rel (%p380) target = $region28
        $region27: #{res_bottleneck_block.1} parent=11 // pred_region
          _
        $region28: #{res_bottleneck_block.1} parent=11 // pred_fallthru
          _
        // Predicated region
        $region29: #{res_bottleneck_block.1} parent=11 // pred_check
          %p383 = pneg %p244
        $region30: #{res_bottleneck_block.1} parent=11 // pred_check_branch
          %385 = sbr.rel (%p383) target = $region32
        $region31: #{res_bottleneck_block.1} parent=11 // pred_region
          _
        $region32: #{res_bottleneck_block.1} parent=11 // pred_fallthru
          _
        // Predicated region
        $region33: #{res_bottleneck_block.1} parent=11 // pred_check
          %p386 = pneg %p265
        $region34: #{res_bottleneck_block.1} parent=11 // pred_check_branch
          %388 = sbr.rel (%p386) target = $region36
        $region35: #{res_bottleneck_block.1} parent=11 // pred_region
          _
        $region36: #{res_bottleneck_block.1} parent=11 // pred_fallthru
          _
        // Predicated region
        $region37: #{res_bottleneck_block.1} parent=11 // pred_check
          %p389 = pneg %p286
        $region38: #{res_bottleneck_block.1} parent=11 // pred_check_branch
          %391 = sbr.rel (%p389) target = $region40
        $region39: #{res_bottleneck_block.1} parent=11 // pred_region
          _
        $region40: #{res_bottleneck_block.1} parent=11 // pred_fallthru
          _
        // Predicated region
        $region41: #{res_bottleneck_block.1} parent=11 // pred_check
          %p392 = pneg %p307
        $region42: #{res_bottleneck_block.1} parent=11 // pred_check_branch
          %394 = sbr.rel (%p392) target = $region44
        $region43: #{res_bottleneck_block.1} parent=11 // pred_region
          _
        $region44: #{res_bottleneck_block.1} parent=11 // pred_fallthru
          _
        // Predicated region
        $region45: #{res_bottleneck_block.1} parent=11 // pred_check
          %p395 = pneg %p328
        $region46: #{res_bottleneck_block.1} parent=11 // pred_check_branch
          %397 = sbr.rel (%p395) target = $region48
        $region47: #{res_bottleneck_block.1} parent=11 // pred_region
          _
        $region48: #{res_bottleneck_block.1} parent=11 // pred_fallthru
          _
      $region12: #{res_bottleneck_block.1} parent=5 // pred_fallthru
        _
      %p398 = scmp.lt.s32.totalorder %s27, 4
      // Predicated region
      $region49: #{res_bottleneck_block.1} parent=5 // pred_check
        %p399 = pneg %p398
      $region50: #{res_bottleneck_block.1} parent=5 // pred_check_branch
        %401 = sbr.rel (%p399) target = $region52
      $region51: #{res_bottleneck_block.1} parent=5 // pred_region
        // Predicated region
        $region53: #{res_bottleneck_block.1} parent=51 // pred_check
          %p402 = pneg %p61
        $region54: #{res_bottleneck_block.1} parent=51 // pred_check_branch
          %404 = sbr.rel (%p402) target = $region56
        $region55: #{res_bottleneck_block.1} parent=51 // pred_region
          %s405 = sand.u32 %s51, 1
          %s406 = scalar_lea.sflag [#allocation3], %s405
          %s407 = sand.u32 %s51, 1
          %s408 = smul.addr %s407, 128
          %s409 = scalar_lea.vmem [#allocation2], %s408
          %s410 = smul.u32 8, %s35
          %s412 = ssub.s32 2048, 2048
          %413 = vsyncadd %s406, %s412
          %s414 = smul.addr %s410, 2
          %s415 = smul.addr %s34, 32
          %s416 = sadd.s32 %s414, %s415
          %s417 = smul.addr %s416, 128
          %s418 = scalar_lea.hbm %s0, %s417
          %s419 = sshll.u32 %s409, 4
          %s420 = int_to_ptr.vmem [resolvable:$true] %s419
          %425 = dma.hbm_to_vmem [thread:$0]  %s418, 2048, %s420, %s406, 128, 128, 8
        $region56: #{res_bottleneck_block.1} parent=51 // pred_fallthru
          _
        // Predicated region
        $region57: #{res_bottleneck_block.1} parent=51 // pred_check
          %p426 = pneg %p97
        $region58: #{res_bottleneck_block.1} parent=51 // pred_check_branch
          %428 = sbr.rel (%p426) target = $region60
        $region59: #{res_bottleneck_block.1} parent=51 // pred_region
          %s429 = sand.u32 %s27, 1
          %s430 = scalar_lea.sflag [#allocation6], %s429
          %s431 = sand.u32 %s87, 1
          %s432 = smul.addr %s431, 16
          %s433 = scalar_lea.vmem [#allocation5], %s432
          %s434 = smul.u32 %s35, 8
          %s435 = ssub.s32 %s434, 1
          %p436 = scmp.gt.s32.totalorder %s435, 0
          %s437 = scalar_select %p436, %s435, 0
          %s439 = ssub.s32 256, 256
          %440 = vsyncadd %s430, %s439
          %s441 = smul.addr %s437, 2
          %s442 = smul.addr %s34, 32
          %s443 = sadd.s32 %s441, %s442
          %s444 = smul.addr %s443, 128
          %s445 = scalar_lea.hbm %s1, %s444
          %s446 = sshll.u32 %s433, 4
          %s447 = int_to_ptr.vmem [resolvable:$true] %s446
          %452 = dma.hbm_to_vmem [thread:$0]  %s445, 256, %s447, %s430, 128, 128, 8
        $region60: #{res_bottleneck_block.1} parent=51 // pred_fallthru
          _
        // Predicated region
        $region61: #{res_bottleneck_block.1} parent=51 // pred_check
          %p453 = pneg %p133
        $region62: #{res_bottleneck_block.1} parent=51 // pred_check_branch
          %455 = sbr.rel (%p453) target = $region64
        $region63: #{res_bottleneck_block.1} parent=51 // pred_region
          %s456 = sand.u32 %s27, 1
          %s457 = scalar_lea.sflag [#allocation6], %s456
          %s458 = sand.u32 %s123, 1
          %s459 = smul.addr %s458, 16
          %s460 = scalar_lea.vmem [#allocation7], %s459
          %s461 = sadd.s32 %s35, 1
          %s462 = smul.u32 %s461, 8
          %p463 = scmp.lt.s32.totalorder %s462, 15
          %s464 = scalar_select %p463, %s462, 15
          %s466 = ssub.s32 256, 256
          %467 = vsyncadd %s457, %s466
          %s468 = smul.addr %s464, 2
          %s469 = smul.addr %s34, 32
          %s470 = sadd.s32 %s468, %s469
          %s471 = smul.addr %s470, 128
          %s472 = scalar_lea.hbm %s2, %s471
          %s473 = sshll.u32 %s460, 4
          %s474 = int_to_ptr.vmem [resolvable:$true] %s473
          %479 = dma.hbm_to_vmem [thread:$0]  %s472, 256, %s474, %s457, 128, 128, 8
        $region64: #{res_bottleneck_block.1} parent=51 // pred_fallthru
          _
      $region52: #{res_bottleneck_block.1} parent=5 // pred_fallthru
        _
      %p480 = scmp.le.s32.totalorder 1, %s27
      %p481 = scmp.lt.s32.totalorder %s27, 5
      %p482 = pnand %p480, %p481
      %p483 = pneg %p482
      // Predicated region
      $region65: #{res_bottleneck_block.1} parent=5 // pred_check
        _
      $region66: #{res_bottleneck_block.1} parent=5 // pred_check_branch
        %485 = sbr.rel (%p482) target = $region68
      $region67: #{res_bottleneck_block.1} parent=5 // pred_region
        %s486 = ssub.s32 %s27, 1
        %s487 = sand.u32 %s54, 1
        %s488 = scalar_lea.sflag [#allocation3], %s487
        %s489 = sand.u32 %s54, 1
        %s490 = smul.addr %s489, 128
        %s491 = scalar_lea.vmem [#allocation2], %s490
        // Predicated region
        $region69: #{res_bottleneck_block.1} parent=67 // pred_check
          %p492 = pneg %p67
        $region70: #{res_bottleneck_block.1} parent=67 // pred_check_branch
          %494 = sbr.rel (%p492) target = $region72
        $region71: #{res_bottleneck_block.1} parent=67 // pred_region
          %495 = dma.done %s488, 2048
        $region72: #{res_bottleneck_block.1} parent=67 // pred_fallthru
          _
        %s496 = sand.u32 %s32, 1
        %s497 = scalar_lea.sflag [#allocation6], %s496
        %s498 = sand.u32 %s90, 1
        %s499 = smul.addr %s498, 16
        %s500 = scalar_lea.vmem [#allocation5], %s499
        // Predicated region
        $region73: #{res_bottleneck_block.1} parent=67 // pred_check
          %p501 = pneg %p103
        $region74: #{res_bottleneck_block.1} parent=67 // pred_check_branch
          %503 = sbr.rel (%p501) target = $region76
        $region75: #{res_bottleneck_block.1} parent=67 // pred_region
          %504 = dma.done %s497, 256
        $region76: #{res_bottleneck_block.1} parent=67 // pred_fallthru
          _
        %s505 = sand.u32 %s32, 1
        %s506 = scalar_lea.sflag [#allocation6], %s505
        %s507 = sand.u32 %s126, 1
        %s508 = smul.addr %s507, 16
        %s509 = scalar_lea.vmem [#allocation7], %s508
        // Predicated region
        $region77: #{res_bottleneck_block.1} parent=67 // pred_check
          %p510 = pneg %p139
        $region78: #{res_bottleneck_block.1} parent=67 // pred_check_branch
          %512 = sbr.rel (%p510) target = $region80
        $region79: #{res_bottleneck_block.1} parent=67 // pred_region
          %513 = dma.done %s506, 256
        $region80: #{res_bottleneck_block.1} parent=67 // pred_fallthru
          _
        %s514 = sand.u32 %s54, 1
        %s515 = scalar_lea.sflag [#allocation3], %s514
        %s516 = sand.u32 %s54, 1
        %s517 = smul.addr %s516, 128
        %s518 = scalar_lea.vmem [#allocation2], %s517
        %p519 = pneg %p67
        %p520 = pneg %p64
        %s521 = sand.u32 %s32, 1
        %s522 = scalar_lea.sflag [#allocation6], %s521
        %s523 = sand.u32 %s90, 1
        %s524 = smul.addr %s523, 16
        %s525 = scalar_lea.vmem [#allocation5], %s524
        %p526 = pneg %p103
        %p527 = pneg %p100
        %s528 = sand.u32 %s32, 1
        %s529 = scalar_lea.sflag [#allocation6], %s528
        %s530 = sand.u32 %s126, 1
        %s531 = smul.addr %s530, 16
        %s532 = scalar_lea.vmem [#allocation7], %s531
        %p533 = pneg %p139
        %p534 = pneg %p136
        %p535 = pneg %p160
        %p536 = pneg %p157
        %p537 = pneg %p181
        %p538 = pneg %p178
        %p539 = pneg %p202
        %p540 = pneg %p199
        %p541 = pneg %p223
        %p542 = pneg %p220
        %p543 = pneg %p244
        %p544 = pneg %p241
        %p545 = pneg %p265
        %p546 = pneg %p262
        %p547 = pneg %p286
        %p548 = pneg %p283
        %p549 = pneg %p307
        %p550 = pneg %p304
        %p551 = pneg %p328
        %p552 = pneg %p325
        %p553 = pneg %p356
        %p554 = pneg %p353
        %s555 = sand.u32 %s343, 1
        %s556 = scalar_lea.sflag [#allocation4], %s555
        %s557 = sand.u32 %s343, 1
        %s558 = smul.addr %s557, 128
        %s559 = scalar_lea.vmem [#allocation8], %s558
        %s560 = smul.u32 8, %s37
        %s561 = smul.u32 %s37, 8
        %s562 = ssub.s32 %s561, 1
        %p563 = scmp.gt.s32.totalorder %s562, 0
        %s564 = scalar_select %p563, %s562, 0
        %s565 = sadd.s32 %s37, 1
        %s566 = smul.u32 %s565, 8
        %p567 = scmp.lt.s32.totalorder %s566, 15
        %s568 = scalar_select %p567, %s566, 15
        %s569 = smul.u32 8, %s37
        %v570 = vld [vmem:[%s500] sm:$0xff]
        %v571 = vld [vmem:[%s500 + $0x8] sm:$0xff]
        %v572 = vld [vmem:[%s491] sm:$0xff]
        %v573 = vld [vmem:[%s491 + $0x8] sm:$0xff]
        %v574 = vld [vmem:[%s491 + $0x10] sm:$0xff]
        %v575 = vld [vmem:[%s491 + $0x18] sm:$0xff]
        %v576 = vld [vmem:[%s491 + $0x20] sm:$0xff]
        %v577 = vld [vmem:[%s491 + $0x28] sm:$0xff]
        %v578 = vld [vmem:[%s491 + $0x30] sm:$0xff]
        %v579 = vld [vmem:[%s491 + $0x38] sm:$0xff]
        %v580 = vld [vmem:[%s491 + $0x40] sm:$0xff]
        %v581 = vld [vmem:[%s491 + $0x48] sm:$0xff]
        %v582 = vld [vmem:[%s491 + $0x50] sm:$0xff]
        %v583 = vld [vmem:[%s491 + $0x58] sm:$0xff]
        %v584 = vld [vmem:[%s491 + $0x60] sm:$0xff]
        %v585 = vld [vmem:[%s491 + $0x68] sm:$0xff]
        %v586 = vld [vmem:[%s491 + $0x70] sm:$0xff]
        %v587 = vld [vmem:[%s491 + $0x78] sm:$0xff]
        %v588 = vld [vmem:[%s509] sm:$0xff]
        %v589 = vld [vmem:[%s509 + $0x8] sm:$0xff]
        %v590 = vld [vmem:[%s3] sm:$0xff]
        %v591 = vld [vmem:[%s3 + $0x8] sm:$0xff]
        %v592 = vld [vmem:[%s3 + $0x10] sm:$0xff]
        %v593 = vld [vmem:[%s3 + $0x18] sm:$0xff]
        %vm594 = vcmask 261120
        %v596 = vsel %vm594, %v570, 0
        %v599 = vsel %vm594, %v571, 0
        %v602 = vsel %vm594, %v572, 0
        %v605 = vsel %vm594, %v573, 0
        %v608 = vsel %vm594, %v574, 0
        %v611 = vsel %vm594, %v575, 0
        %v614 = vsel %vm594, %v576, 0
        %v617 = vsel %vm594, %v577, 0
        %v620 = vsel %vm594, %v578, 0
        %v623 = vsel %vm594, %v579, 0
        %v626 = vsel %vm594, %v580, 0
        %v629 = vsel %vm594, %v581, 0
        %v632 = vsel %vm594, %v582, 0
        %v635 = vsel %vm594, %v583, 0
        %v638 = vsel %vm594, %v584, 0
        %v641 = vsel %vm594, %v585, 0
        %v644 = vsel %vm594, %v586, 0
        %v647 = vsel %vm594, %v587, 0
        %v650 = vsel %vm594, %v588, 0
        %v653 = vsel %vm594, %v589, 0
        %655 = vmatprep.subr.mxu0 0.0
        %656 = vmatpush1.msra.mxu0 0.0
        %657 = vmatprep.subr.mxu0 0.0
        %658 = vmatpush1.msra.mxu0 0.0
        %659 = vmatprep.subr.mxu0 0.0
        %660 = vmatpush1.msra.mxu0 0.0
        %661 = vmatprep.subr.mxu0 0.0
        %662 = vmatpush1.msra.mxu0 0.0
        %663 = vmatprep.subr.mxu0 0.0
        %664 = vmatpush1.msra.mxu0 0.0
        %665 = vmatprep.subr.mxu0 0.0
        %666 = vmatpush1.msra.mxu0 0.0
        %667 = vmatprep.subr.mxu0 0.0
        %668 = vmatpush1.msra.mxu0 0.0
        %669 = vmatprep.subr.mxu0 0.0
        %670 = vmatpush1.msra.mxu0 0.0
        %671 = vmatprep.subr.mxu0 0.0
        %672 = vmatpush1.msra.mxu0 0.0
        %673 = vmatprep.subr.mxu0 0.0
        %674 = vmatpush1.msra.mxu0 0.0
        %675 = vmatprep.subr.mxu0 0.0
        %676 = vmatpush1.msra.mxu0 0.0
        %677 = vmatprep.subr.mxu0 0.0
        %678 = vmatpush1.msra.mxu0 0.0
        %679 = vmatprep.subr.mxu0 0.0
        %680 = vmatpush1.msra.mxu0 %v593
        %681 = vmatprep.subr.mxu0 0.0
        %682 = vmatpush1.msra.mxu0 %v592
        %683 = vmatprep.subr.mxu0 0.0
        %684 = vmatpush1.msra.mxu0 %v591
        %685 = vmatprep.subr.mxu0 0.0
        %686 = vmatpush1.msra.mxu0 %v590
        %687 = vmatprep.subr.mxu0 0.0
        %688 = vmatpush2.msra.mxu0 0.0
        %689 = vmatprep.subr.mxu0 0.0
        %690 = vmatpush2.msra.mxu0 0.0
        %691 = vmatprep.subr.mxu0 0.0
        %692 = vmatpush2.msra.mxu0 0.0
        %693 = vmatprep.subr.mxu0 0.0
        %694 = vmatpush2.msra.mxu0 0.0
        %695 = vmatprep.subr.mxu0 0.0
        %696 = vmatpush2.msra.mxu0 0.0
        %697 = vmatprep.subr.mxu0 0.0
        %698 = vmatpush2.msra.mxu0 0.0
        %699 = vmatprep.subr.mxu0 0.0
        %700 = vmatpush2.msra.mxu0 0.0
        %701 = vmatprep.subr.mxu0 0.0
        %702 = vmatpush2.msra.mxu0 0.0
        %703 = vmatprep.subr.mxu0 0.0
        %704 = vmatpush2.msra.mxu0 0.0
        %705 = vmatprep.subr.mxu0 0.0
        %706 = vmatpush2.msra.mxu0 0.0
        %707 = vmatprep.subr.mxu0 0.0
        %708 = vmatpush2.msra.mxu0 0.0
        %709 = vmatprep.subr.mxu0 0.0
        %710 = vmatpush2.msra.mxu0 0.0
        %711 = vmatprep.subr.mxu0 0.0
        %712 = vmatpush2.msra.mxu0 0.0
        %713 = vmatprep.subr.mxu0 0.0
        %714 = vmatpush2.msra.mxu0 0.0
        %715 = vmatprep.subr.mxu0 0.0
        %716 = vmatpush2.msra.mxu0 0.0
        %717 = vmatprep.subr.mxu0 0.0
        %718 = vmatpush2.msra.mxu0 0.0
        %719 = vmatprep.mubr.f32.mxu0 0.0
        %720 = vmatmul.mubr.f32.gmra.mxu0 %v596
        %v721 = vpop.f32.mrf.mxu0
        %v722 = vadd.f32 0.0, %v721
        %v723 = vpop.f32.mrf.mxu0
        %724 = vmatprep.mubr.f32.mxu0 0.0
        %725 = vmatmul.mubr.f32.gmra.mxu0 %v599
        %v726 = vpop.f32.mrf.mxu0
        %v727 = vadd.f32 0.0, %v726
        %v728 = vpop.f32.mrf.mxu0
        %729 = vmatprep.mubr.f32.mxu0 0.0
        %730 = vmatmul.mubr.f32.gmra.mxu0 %v602
        %v731 = vpop.f32.mrf.mxu0
        %v732 = vadd.f32 0.0, %v731
        %v733 = vpop.f32.mrf.mxu0
        %734 = vmatprep.mubr.f32.mxu0 0.0
        %735 = vmatmul.mubr.f32.gmra.mxu0 %v605
        %v736 = vpop.f32.mrf.mxu0
        %v737 = vadd.f32 0.0, %v736
        %v738 = vpop.f32.mrf.mxu0
        %739 = vmatprep.mubr.f32.mxu0 0.0
        %740 = vmatmul.mubr.f32.gmra.mxu0 %v608
        %v741 = vpop.f32.mrf.mxu0
        %v742 = vadd.f32 0.0, %v741
        %v743 = vpop.f32.mrf.mxu0
        %744 = vmatprep.mubr.f32.mxu0 0.0
        %745 = vmatmul.mubr.f32.gmra.mxu0 %v611
        %v746 = vpop.f32.mrf.mxu0
        %v747 = vadd.f32 0.0, %v746
        %v748 = vpop.f32.mrf.mxu0
        %749 = vmatprep.mubr.f32.mxu0 0.0
        %750 = vmatmul.mubr.f32.gmra.mxu0 %v614
        %v751 = vpop.f32.mrf.mxu0
        %v752 = vadd.f32 0.0, %v751
        %v753 = vpop.f32.mrf.mxu0
        %754 = vmatprep.mubr.f32.mxu0 0.0
        %755 = vmatmul.mubr.f32.gmra.mxu0 %v617
        %v756 = vpop.f32.mrf.mxu0
        %v757 = vadd.f32 0.0, %v756
        %v758 = vpop.f32.mrf.mxu0
        %759 = vmatprep.mubr.f32.mxu0 0.0
        %760 = vmatmul.mubr.f32.gmra.mxu0 %v620
        %v761 = vpop.f32.mrf.mxu0
        %v762 = vadd.f32 0.0, %v761
        %v763 = vpop.f32.mrf.mxu0
        %764 = vmatprep.mubr.f32.mxu0 0.0
        %765 = vmatmul.mubr.f32.gmra.mxu0 %v623
        %v766 = vpop.f32.mrf.mxu0
        %v767 = vadd.f32 0.0, %v766
        %v768 = vpop.f32.mrf.mxu0
        %769 = vmatprep.mubr.f32.mxu0 0.0
        %770 = vmatmul.mubr.f32.gmra.mxu0 %v626
        %v771 = vpop.f32.mrf.mxu0
        %v772 = vadd.f32 0.0, %v771
        %v773 = vpop.f32.mrf.mxu0
        %774 = vmatprep.mubr.f32.mxu0 0.0
        %775 = vmatmul.mubr.f32.gmra.mxu0 %v629
        %v776 = vpop.f32.mrf.mxu0
        %v777 = vadd.f32 0.0, %v776
        %v778 = vpop.f32.mrf.mxu0
        %779 = vmatprep.mubr.f32.mxu0 0.0
        %780 = vmatmul.mubr.f32.gmra.mxu0 %v632
        %v781 = vpop.f32.mrf.mxu0
        %v782 = vadd.f32 0.0, %v781
        %v783 = vpop.f32.mrf.mxu0
        %784 = vmatprep.mubr.f32.mxu0 0.0
        %785 = vmatmul.mubr.f32.gmra.mxu0 %v635
        %v786 = vpop.f32.mrf.mxu0
        %v787 = vadd.f32 0.0, %v786
        %v788 = vpop.f32.mrf.mxu0
        %789 = vmatprep.mubr.f32.mxu0 0.0
        %790 = vmatmul.mubr.f32.gmra.mxu0 %v638
        %v791 = vpop.f32.mrf.mxu0
        %v792 = vadd.f32 0.0, %v791
        %v793 = vpop.f32.mrf.mxu0
        %794 = vmatprep.mubr.f32.mxu0 0.0
        %795 = vmatmul.mubr.f32.gmra.mxu0 %v641
        %v796 = vpop.f32.mrf.mxu0
        %v797 = vadd.f32 0.0, %v796
        %v798 = vpop.f32.mrf.mxu0
        %799 = vmatprep.mubr.f32.mxu0 0.0
        %800 = vmatmul.mubr.f32.gmra.mxu0 %v644
        %v801 = vpop.f32.mrf.mxu0
        %v802 = vadd.f32 0.0, %v801
        %v803 = vpop.f32.mrf.mxu0
        %804 = vmatprep.mubr.f32.mxu0 0.0
        %805 = vmatmul.mubr.f32.gmra.mxu0 %v647
        %v806 = vpop.f32.mrf.mxu0
        %v807 = vadd.f32 0.0, %v806
        %v808 = vpop.f32.mrf.mxu0
        %809 = vmatprep.mubr.f32.mxu0 0.0
        %810 = vmatmul.mubr.f32.gmra.mxu0 %v650
        %v811 = vpop.f32.mrf.mxu0
        %v812 = vadd.f32 0.0, %v811
        %v813 = vpop.f32.mrf.mxu0
        %814 = vmatprep.mubr.f32.mxu0 0.0
        %815 = vmatmul.mubr.f32.gmra.mxu0 %v653
        %v816 = vpop.f32.mrf.mxu0
        %v817 = vadd.f32 0.0, %v816
        %v818 = vpop.f32.mrf.mxu0
        %819 = vdwg.mxu0
        %v820 = vld [vmem:[%s4] sm:$0x1]
        %v821 = vld [vmem:[%s5] sm:$0x1]
        %vm822 = vcmask 130048
        %v823 = vsel %vm822, %v722, 0.0
        %824 = vadd.xlane.f32.xlu0 %v823
        %v825 = vpop.xlane.xlu0 %824
        %v826 = vsel %vm822, %v727, 0.0
        %827 = vadd.xlane.f32.xlu0 %v826
        %v828 = vpop.xlane.xlu0 %827
        %v829 = vsel %vm822, %v732, 0.0
        %830 = vadd.xlane.f32.xlu0 %v829
        %v831 = vpop.xlane.xlu0 %830
        %v832 = vsel %vm822, %v737, 0.0
        %833 = vadd.xlane.f32.xlu0 %v832
        %v834 = vpop.xlane.xlu0 %833
        %v835 = vsel %vm822, %v742, 0.0
        %836 = vadd.xlane.f32.xlu0 %v835
        %v837 = vpop.xlane.xlu0 %836
        %v838 = vsel %vm822, %v747, 0.0
        %839 = vadd.xlane.f32.xlu0 %v838
        %v840 = vpop.xlane.xlu0 %839
        %v841 = vsel %vm822, %v752, 0.0
        %842 = vadd.xlane.f32.xlu0 %v841
        %v843 = vpop.xlane.xlu0 %842
        %v844 = vsel %vm822, %v757, 0.0
        %845 = vadd.xlane.f32.xlu0 %v844
        %v846 = vpop.xlane.xlu0 %845
        %v847 = vsel %vm822, %v762, 0.0
        %848 = vadd.xlane.f32.xlu0 %v847
        %v849 = vpop.xlane.xlu0 %848
        %v850 = vsel %vm822, %v767, 0.0
        %851 = vadd.xlane.f32.xlu0 %v850
        %v852 = vpop.xlane.xlu0 %851
        %v853 = vsel %vm822, %v772, 0.0
        %854 = vadd.xlane.f32.xlu0 %v853
        %v855 = vpop.xlane.xlu0 %854
        %v856 = vsel %vm822, %v777, 0.0
        %857 = vadd.xlane.f32.xlu0 %v856
        %v858 = vpop.xlane.xlu0 %857
        %v859 = vsel %vm822, %v782, 0.0
        %860 = vadd.xlane.f32.xlu0 %v859
        %v861 = vpop.xlane.xlu0 %860
        %v862 = vsel %vm822, %v787, 0.0
        %863 = vadd.xlane.f32.xlu0 %v862
        %v864 = vpop.xlane.xlu0 %863
        %v865 = vsel %vm822, %v792, 0.0
        %866 = vadd.xlane.f32.xlu0 %v865
        %v867 = vpop.xlane.xlu0 %866
        %v868 = vsel %vm822, %v797, 0.0
        %869 = vadd.xlane.f32.xlu0 %v868
        %v870 = vpop.xlane.xlu0 %869
        %v871 = vsel %vm822, %v802, 0.0
        %872 = vadd.xlane.f32.xlu0 %v871
        %v873 = vpop.xlane.xlu0 %872
        %v874 = vsel %vm822, %v807, 0.0
        %875 = vadd.xlane.f32.xlu0 %v874
        %v876 = vpop.xlane.xlu0 %875
        %v877 = vsel %vm822, %v812, 0.0
        %878 = vadd.xlane.f32.xlu0 %v877
        %v879 = vpop.xlane.xlu0 %878
        %v880 = vsel %vm822, %v817, 0.0
        %881 = vadd.xlane.f32.xlu0 %v880
        %v882 = vpop.xlane.xlu0 %881
        %v883 = vrcp.pop 16.0
        %v884 = vmul.f32 %v825, %v883
        %v885 = vmul.f32 %v828, %v883
        %v886 = vmul.f32 %v831, %v883
        %v887 = vmul.f32 %v834, %v883
        %v888 = vmul.f32 %v837, %v883
        %v889 = vmul.f32 %v840, %v883
        %v890 = vmul.f32 %v843, %v883
        %v891 = vmul.f32 %v846, %v883
        %v892 = vmul.f32 %v849, %v883
        %v893 = vmul.f32 %v852, %v883
        %v894 = vmul.f32 %v855, %v883
        %v895 = vmul.f32 %v858, %v883
        %v896 = vmul.f32 %v861, %v883
        %v897 = vmul.f32 %v864, %v883
        %v898 = vmul.f32 %v867, %v883
        %v899 = vmul.f32 %v870, %v883
        %v900 = vmul.f32 %v873, %v883
        %v901 = vmul.f32 %v876, %v883
        %v902 = vmul.f32 %v879, %v883
        %v903 = vmul.f32 %v882, %v883
        %v904 = vmul.f32 %v722, %v722
        %v905 = vmul.f32 %v727, %v727
        %v906 = vmul.f32 %v732, %v732
        %v907 = vmul.f32 %v737, %v737
        %v908 = vmul.f32 %v742, %v742
        %v909 = vmul.f32 %v747, %v747
        %v910 = vmul.f32 %v752, %v752
        %v911 = vmul.f32 %v757, %v757
        %v912 = vmul.f32 %v762, %v762
        %v913 = vmul.f32 %v767, %v767
        %v914 = vmul.f32 %v772, %v772
        %v915 = vmul.f32 %v777, %v777
        %v916 = vmul.f32 %v782, %v782
        %v917 = vmul.f32 %v787, %v787
        %v918 = vmul.f32 %v792, %v792
        %v919 = vmul.f32 %v797, %v797
        %v920 = vmul.f32 %v802, %v802
        %v921 = vmul.f32 %v807, %v807
        %v922 = vmul.f32 %v812, %v812
        %v923 = vmul.f32 %v817, %v817
        %v924 = vsel %vm822, %v904, 0.0
        %925 = vadd.xlane.f32.xlu0 %v924
        %v926 = vpop.xlane.xlu0 %925
        %v927 = vsel %vm822, %v905, 0.0
        %928 = vadd.xlane.f32.xlu0 %v927
        %v929 = vpop.xlane.xlu0 %928
        %v930 = vsel %vm822, %v906, 0.0
        %931 = vadd.xlane.f32.xlu0 %v930
        %v932 = vpop.xlane.xlu0 %931
        %v933 = vsel %vm822, %v907, 0.0
        %934 = vadd.xlane.f32.xlu0 %v933
        %v935 = vpop.xlane.xlu0 %934
        %v936 = vsel %vm822, %v908, 0.0
        %937 = vadd.xlane.f32.xlu0 %v936
        %v938 = vpop.xlane.xlu0 %937
        %v939 = vsel %vm822, %v909, 0.0
        %940 = vadd.xlane.f32.xlu0 %v939
        %v941 = vpop.xlane.xlu0 %940
        %v942 = vsel %vm822, %v910, 0.0
        %943 = vadd.xlane.f32.xlu0 %v942
        %v944 = vpop.xlane.xlu0 %943
        %v945 = vsel %vm822, %v911, 0.0
        %946 = vadd.xlane.f32.xlu0 %v945
        %v947 = vpop.xlane.xlu0 %946
        %v948 = vsel %vm822, %v912, 0.0
        %949 = vadd.xlane.f32.xlu0 %v948
        %v950 = vpop.xlane.xlu0 %949
        %v951 = vsel %vm822, %v913, 0.0
        %952 = vadd.xlane.f32.xlu0 %v951
        %v953 = vpop.xlane.xlu0 %952
        %v954 = vsel %vm822, %v914, 0.0
        %955 = vadd.xlane.f32.xlu0 %v954
        %v956 = vpop.xlane.xlu0 %955
        %v957 = vsel %vm822, %v915, 0.0
        %958 = vadd.xlane.f32.xlu0 %v957
        %v959 = vpop.xlane.xlu0 %958
        %v960 = vsel %vm822, %v916, 0.0
        %961 = vadd.xlane.f32.xlu0 %v960
        %v962 = vpop.xlane.xlu0 %961
        %v963 = vsel %vm822, %v917, 0.0
        %964 = vadd.xlane.f32.xlu0 %v963
        %v965 = vpop.xlane.xlu0 %964
        %v966 = vsel %vm822, %v918, 0.0
        %967 = vadd.xlane.f32.xlu0 %v966
        %v968 = vpop.xlane.xlu0 %967
        %v969 = vsel %vm822, %v919, 0.0
        %970 = vadd.xlane.f32.xlu0 %v969
        %v971 = vpop.xlane.xlu0 %970
        %v972 = vsel %vm822, %v920, 0.0
        %973 = vadd.xlane.f32.xlu0 %v972
        %v974 = vpop.xlane.xlu0 %973
        %v975 = vsel %vm822, %v921, 0.0
        %976 = vadd.xlane.f32.xlu0 %v975
        %v977 = vpop.xlane.xlu0 %976
        %v978 = vsel %vm822, %v922, 0.0
        %979 = vadd.xlane.f32.xlu0 %v978
        %v980 = vpop.xlane.xlu0 %979
        %v981 = vsel %vm822, %v923, 0.0
        %982 = vadd.xlane.f32.xlu0 %v981
        %v983 = vpop.xlane.xlu0 %982
        %v984 = vmul.f32 %v926, %v883
        %v985 = vmul.f32 %v929, %v883
        %v986 = vmul.f32 %v932, %v883
        %v987 = vmul.f32 %v935, %v883
        %v988 = vmul.f32 %v938, %v883
        %v989 = vmul.f32 %v941, %v883
        %v990 = vmul.f32 %v944, %v883
        %v991 = vmul.f32 %v947, %v883
        %v992 = vmul.f32 %v950, %v883
        %v993 = vmul.f32 %v953, %v883
        %v994 = vmul.f32 %v956, %v883
        %v995 = vmul.f32 %v959, %v883
        %v996 = vmul.f32 %v962, %v883
        %v997 = vmul.f32 %v965, %v883
        %v998 = vmul.f32 %v968, %v883
        %v999 = vmul.f32 %v971, %v883
        %v1000 = vmul.f32 %v974, %v883
        %v1001 = vmul.f32 %v977, %v883
        %v1002 = vmul.f32 %v980, %v883
        %v1003 = vmul.f32 %v983, %v883
        %v1004 = vmul.f32 %v884, %v884
        %v1005 = vmul.f32 %v885, %v885
        %v1006 = vmul.f32 %v886, %v886
        %v1007 = vmul.f32 %v887, %v887
        %v1008 = vmul.f32 %v888, %v888
        %v1009 = vmul.f32 %v889, %v889
        %v1010 = vmul.f32 %v890, %v890
        %v1011 = vmul.f32 %v891, %v891
        %v1012 = vmul.f32 %v892, %v892
        %v1013 = vmul.f32 %v893, %v893
        %v1014 = vmul.f32 %v894, %v894
        %v1015 = vmul.f32 %v895, %v895
        %v1016 = vmul.f32 %v896, %v896
        %v1017 = vmul.f32 %v897, %v897
        %v1018 = vmul.f32 %v898, %v898
        %v1019 = vmul.f32 %v899, %v899
        %v1020 = vmul.f32 %v900, %v900
        %v1021 = vmul.f32 %v901, %v901
        %v1022 = vmul.f32 %v902, %v902
        %v1023 = vmul.f32 %v903, %v903
        %v1024 = vsub.f32 %v984, %v1004
        %v1025 = vsub.f32 %v985, %v1005
        %v1026 = vsub.f32 %v986, %v1006
        %v1027 = vsub.f32 %v987, %v1007
        %v1028 = vsub.f32 %v988, %v1008
        %v1029 = vsub.f32 %v989, %v1009
        %v1030 = vsub.f32 %v990, %v1010
        %v1031 = vsub.f32 %v991, %v1011
        %v1032 = vsub.f32 %v992, %v1012
        %v1033 = vsub.f32 %v993, %v1013
        %v1034 = vsub.f32 %v994, %v1014
        %v1035 = vsub.f32 %v995, %v1015
        %v1036 = vsub.f32 %v996, %v1016
        %v1037 = vsub.f32 %v997, %v1017
        %v1038 = vsub.f32 %v998, %v1018
        %v1039 = vsub.f32 %v999, %v1019
        %v1040 = vsub.f32 %v1000, %v1020
        %v1041 = vsub.f32 %v1001, %v1021
        %v1042 = vsub.f32 %v1002, %v1022
        %v1043 = vsub.f32 %v1003, %v1023
        %v1044 = vmax.f32 %v1024, 0.0
        %v1045 = vmax.f32 %v1025, 0.0
        %v1046 = vmax.f32 %v1026, 0.0
        %v1047 = vmax.f32 %v1027, 0.0
        %v1048 = vmax.f32 %v1028, 0.0
        %v1049 = vmax.f32 %v1029, 0.0
        %v1050 = vmax.f32 %v1030, 0.0
        %v1051 = vmax.f32 %v1031, 0.0
        %v1052 = vmax.f32 %v1032, 0.0
        %v1053 = vmax.f32 %v1033, 0.0
        %v1054 = vmax.f32 %v1034, 0.0
        %v1055 = vmax.f32 %v1035, 0.0
        %v1056 = vmax.f32 %v1036, 0.0
        %v1057 = vmax.f32 %v1037, 0.0
        %v1058 = vmax.f32 %v1038, 0.0
        %v1059 = vmax.f32 %v1039, 0.0
        %v1060 = vmax.f32 %v1040, 0.0
        %v1061 = vmax.f32 %v1041, 0.0
        %v1062 = vmax.f32 %v1042, 0.0
        %v1063 = vmax.f32 %v1043, 0.0
        %v1064 = vsub.f32 %v722, %v884
        %v1065 = vsub.f32 %v727, %v885
        %v1066 = vsub.f32 %v732, %v886
        %v1067 = vsub.f32 %v737, %v887
        %v1068 = vsub.f32 %v742, %v888
        %v1069 = vsub.f32 %v747, %v889
        %v1070 = vsub.f32 %v752, %v890
        %v1071 = vsub.f32 %v757, %v891
        %v1072 = vsub.f32 %v762, %v892
        %v1073 = vsub.f32 %v767, %v893
        %v1074 = vsub.f32 %v772, %v894
        %v1075 = vsub.f32 %v777, %v895
        %v1076 = vsub.f32 %v782, %v896
        %v1077 = vsub.f32 %v787, %v897
        %v1078 = vsub.f32 %v792, %v898
        %v1079 = vsub.f32 %v797, %v899
        %v1080 = vsub.f32 %v802, %v900
        %v1081 = vsub.f32 %v807, %v901
        %v1082 = vsub.f32 %v812, %v902
        %v1083 = vsub.f32 %v817, %v903
        %v1084 = vadd.f32 %v1044, 1e-06
        %v1085 = vadd.f32 %v1045, 1e-06
        %v1086 = vadd.f32 %v1046, 1e-06
        %v1087 = vadd.f32 %v1047, 1e-06
        %v1088 = vadd.f32 %v1048, 1e-06
        %v1089 = vadd.f32 %v1049, 1e-06
        %v1090 = vadd.f32 %v1050, 1e-06
        %v1091 = vadd.f32 %v1051, 1e-06
        %v1092 = vadd.f32 %v1052, 1e-06
        %v1093 = vadd.f32 %v1053, 1e-06
        %v1094 = vadd.f32 %v1054, 1e-06
        %v1095 = vadd.f32 %v1055, 1e-06
        %v1096 = vadd.f32 %v1056, 1e-06
        %v1097 = vadd.f32 %v1057, 1e-06
        %v1098 = vadd.f32 %v1058, 1e-06
        %v1099 = vadd.f32 %v1059, 1e-06
        %v1100 = vadd.f32 %v1060, 1e-06
        %v1101 = vadd.f32 %v1061, 1e-06
        %v1102 = vadd.f32 %v1062, 1e-06
        %v1103 = vadd.f32 %v1063, 1e-06
        %v1104 = vrsqrt.pop %v1084
        %v1105 = vrsqrt.pop %v1085
        %v1106 = vrsqrt.pop %v1086
        %v1107 = vrsqrt.pop %v1087
        %v1108 = vrsqrt.pop %v1088
        %v1109 = vrsqrt.pop %v1089
        %v1110 = vrsqrt.pop %v1090
        %v1111 = vrsqrt.pop %v1091
        %v1112 = vrsqrt.pop %v1092
        %v1113 = vrsqrt.pop %v1093
        %v1114 = vrsqrt.pop %v1094
        %v1115 = vrsqrt.pop %v1095
        %v1116 = vrsqrt.pop %v1096
        %v1117 = vrsqrt.pop %v1097
        %v1118 = vrsqrt.pop %v1098
        %v1119 = vrsqrt.pop %v1099
        %v1120 = vrsqrt.pop %v1100
        %v1121 = vrsqrt.pop %v1101
        %v1122 = vrsqrt.pop %v1102
        %v1123 = vrsqrt.pop %v1103
        %v1124 = vmul.f32 %v1064, %v1104
        %v1125 = vmul.f32 %v1065, %v1105
        %v1126 = vmul.f32 %v1066, %v1106
        %v1127 = vmul.f32 %v1067, %v1107
        %v1128 = vmul.f32 %v1068, %v1108
        %v1129 = vmul.f32 %v1069, %v1109
        %v1130 = vmul.f32 %v1070, %v1110
        %v1131 = vmul.f32 %v1071, %v1111
        %v1132 = vmul.f32 %v1072, %v1112
        %v1133 = vmul.f32 %v1073, %v1113
        %v1134 = vmul.f32 %v1074, %v1114
        %v1135 = vmul.f32 %v1075, %v1115
        %v1136 = vmul.f32 %v1076, %v1116
        %v1137 = vmul.f32 %v1077, %v1117
        %v1138 = vmul.f32 %v1078, %v1118
        %v1139 = vmul.f32 %v1079, %v1119
        %v1140 = vmul.f32 %v1080, %v1120
        %v1141 = vmul.f32 %v1081, %v1121
        %v1142 = vmul.f32 %v1082, %v1122
        %v1143 = vmul.f32 %v1083, %v1123
        %v1145 = vlaneseq
        %v1146 = vshrl.u32 %v1145, 7
        %v1147 = vsub.s32 0, %v1146
        %v1148 = vrot.slane %v820, %v1147
        %v1150 = vmul.f32 %v1124, %v1148
        %v1151 = vmul.f32 %v1125, %v1148
        %v1152 = vmul.f32 %v1126, %v1148
        %v1153 = vmul.f32 %v1127, %v1148
        %v1154 = vmul.f32 %v1128, %v1148
        %v1155 = vmul.f32 %v1129, %v1148
        %v1156 = vmul.f32 %v1130, %v1148
        %v1157 = vmul.f32 %v1131, %v1148
        %v1158 = vmul.f32 %v1132, %v1148
        %v1159 = vmul.f32 %v1133, %v1148
        %v1160 = vmul.f32 %v1134, %v1148
        %v1161 = vmul.f32 %v1135, %v1148
        %v1162 = vmul.f32 %v1136, %v1148
        %v1163 = vmul.f32 %v1137, %v1148
        %v1164 = vmul.f32 %v1138, %v1148
        %v1165 = vmul.f32 %v1139, %v1148
        %v1166 = vmul.f32 %v1140, %v1148
        %v1167 = vmul.f32 %v1141, %v1148
        %v1168 = vmul.f32 %v1142, %v1148
        %v1169 = vmul.f32 %v1143, %v1148
        %v1171 = vlaneseq
        %v1172 = vshrl.u32 %v1171, 7
        %v1173 = vsub.s32 0, %v1172
        %v1174 = vrot.slane %v821, %v1173
        %v1176 = vadd.f32 %v1150, %v1174
        %v1177 = vadd.f32 %v1151, %v1174
        %v1178 = vadd.f32 %v1152, %v1174
        %v1179 = vadd.f32 %v1153, %v1174
        %v1180 = vadd.f32 %v1154, %v1174
        %v1181 = vadd.f32 %v1155, %v1174
        %v1182 = vadd.f32 %v1156, %v1174
        %v1183 = vadd.f32 %v1157, %v1174
        %v1184 = vadd.f32 %v1158, %v1174
        %v1185 = vadd.f32 %v1159, %v1174
        %v1186 = vadd.f32 %v1160, %v1174
        %v1187 = vadd.f32 %v1161, %v1174
        %v1188 = vadd.f32 %v1162, %v1174
        %v1189 = vadd.f32 %v1163, %v1174
        %v1190 = vadd.f32 %v1164, %v1174
        %v1191 = vadd.f32 %v1165, %v1174
        %v1192 = vadd.f32 %v1166, %v1174
        %v1193 = vadd.f32 %v1167, %v1174
        %v1194 = vadd.f32 %v1168, %v1174
        %v1195 = vadd.f32 %v1169, %v1174
        %v1196 = vmul.f32 %v1176, 0.5
        %v1197 = vmul.f32 %v1177, 0.5
        %v1198 = vmul.f32 %v1178, 0.5
        %v1199 = vmul.f32 %v1179, 0.5
        %v1200 = vmul.f32 %v1180, 0.5
        %v1201 = vmul.f32 %v1181, 0.5
        %v1202 = vmul.f32 %v1182, 0.5
        %v1203 = vmul.f32 %v1183, 0.5
        %v1204 = vmul.f32 %v1184, 0.5
        %v1205 = vmul.f32 %v1185, 0.5
        %v1206 = vmul.f32 %v1186, 0.5
        %v1207 = vmul.f32 %v1187, 0.5
        %v1208 = vmul.f32 %v1188, 0.5
        %v1209 = vmul.f32 %v1189, 0.5
        %v1210 = vmul.f32 %v1190, 0.5
        %v1211 = vmul.f32 %v1191, 0.5
        %v1212 = vmul.f32 %v1192, 0.5
        %v1213 = vmul.f32 %v1193, 0.5
        %v1214 = vmul.f32 %v1194, 0.5
        %v1215 = vmul.f32 %v1195, 0.5
        %v1216 = vmul.f32 %v1176, 0.044715
        %v1217 = vmul.f32 %v1177, 0.044715
        %v1218 = vmul.f32 %v1178, 0.044715
        %v1219 = vmul.f32 %v1179, 0.044715
        %v1220 = vmul.f32 %v1180, 0.044715
        %v1221 = vmul.f32 %v1181, 0.044715
        %v1222 = vmul.f32 %v1182, 0.044715
        %v1223 = vmul.f32 %v1183, 0.044715
        %v1224 = vmul.f32 %v1184, 0.044715
        %v1225 = vmul.f32 %v1185, 0.044715
        %v1226 = vmul.f32 %v1186, 0.044715
        %v1227 = vmul.f32 %v1187, 0.044715
        %v1228 = vmul.f32 %v1188, 0.044715
        %v1229 = vmul.f32 %v1189, 0.044715
        %v1230 = vmul.f32 %v1190, 0.044715
        %v1231 = vmul.f32 %v1191, 0.044715
        %v1232 = vmul.f32 %v1192, 0.044715
        %v1233 = vmul.f32 %v1193, 0.044715
        %v1234 = vmul.f32 %v1194, 0.044715
        %v1235 = vmul.f32 %v1195, 0.044715
        %v1236 = vmul.f32 %v1216, %v1176
        %v1237 = vmul.f32 %v1217, %v1177
        %v1238 = vmul.f32 %v1218, %v1178
        %v1239 = vmul.f32 %v1219, %v1179
        %v1240 = vmul.f32 %v1220, %v1180
        %v1241 = vmul.f32 %v1221, %v1181
        %v1242 = vmul.f32 %v1222, %v1182
        %v1243 = vmul.f32 %v1223, %v1183
        %v1244 = vmul.f32 %v1224, %v1184
        %v1245 = vmul.f32 %v1225, %v1185
        %v1246 = vmul.f32 %v1226, %v1186
        %v1247 = vmul.f32 %v1227, %v1187
        %v1248 = vmul.f32 %v1228, %v1188
        %v1249 = vmul.f32 %v1229, %v1189
        %v1250 = vmul.f32 %v1230, %v1190
        %v1251 = vmul.f32 %v1231, %v1191
        %v1252 = vmul.f32 %v1232, %v1192
        %v1253 = vmul.f32 %v1233, %v1193
        %v1254 = vmul.f32 %v1234, %v1194
        %v1255 = vmul.f32 %v1235, %v1195
        %v1256 = vmul.f32 %v1236, %v1176
        %v1257 = vmul.f32 %v1237, %v1177
        %v1258 = vmul.f32 %v1238, %v1178
        %v1259 = vmul.f32 %v1239, %v1179
        %v1260 = vmul.f32 %v1240, %v1180
        %v1261 = vmul.f32 %v1241, %v1181
        %v1262 = vmul.f32 %v1242, %v1182
        %v1263 = vmul.f32 %v1243, %v1183
        %v1264 = vmul.f32 %v1244, %v1184
        %v1265 = vmul.f32 %v1245, %v1185
        %v1266 = vmul.f32 %v1246, %v1186
        %v1267 = vmul.f32 %v1247, %v1187
        %v1268 = vmul.f32 %v1248, %v1188
        %v1269 = vmul.f32 %v1249, %v1189
        %v1270 = vmul.f32 %v1250, %v1190
        %v1271 = vmul.f32 %v1251, %v1191
        %v1272 = vmul.f32 %v1252, %v1192
        %v1273 = vmul.f32 %v1253, %v1193
        %v1274 = vmul.f32 %v1254, %v1194
        %v1275 = vmul.f32 %v1255, %v1195
        %v1276 = vadd.f32 %v1176, %v1256
        %v1277 = vadd.f32 %v1177, %v1257
        %v1278 = vadd.f32 %v1178, %v1258
        %v1279 = vadd.f32 %v1179, %v1259
        %v1280 = vadd.f32 %v1180, %v1260
        %v1281 = vadd.f32 %v1181, %v1261
        %v1282 = vadd.f32 %v1182, %v1262
        %v1283 = vadd.f32 %v1183, %v1263
        %v1284 = vadd.f32 %v1184, %v1264
        %v1285 = vadd.f32 %v1185, %v1265
        %v1286 = vadd.f32 %v1186, %v1266
        %v1287 = vadd.f32 %v1187, %v1267
        %v1288 = vadd.f32 %v1188, %v1268
        %v1289 = vadd.f32 %v1189, %v1269
        %v1290 = vadd.f32 %v1190, %v1270
        %v1291 = vadd.f32 %v1191, %v1271
        %v1292 = vadd.f32 %v1192, %v1272
        %v1293 = vadd.f32 %v1193, %v1273
        %v1294 = vadd.f32 %v1194, %v1274
        %v1295 = vadd.f32 %v1195, %v1275
        %v1296 = vmul.f32 %v1276, 0.7978846
        %v1297 = vmul.f32 %v1277, 0.7978846
        %v1298 = vmul.f32 %v1278, 0.7978846
        %v1299 = vmul.f32 %v1279, 0.7978846
        %v1300 = vmul.f32 %v1280, 0.7978846
        %v1301 = vmul.f32 %v1281, 0.7978846
        %v1302 = vmul.f32 %v1282, 0.7978846
        %v1303 = vmul.f32 %v1283, 0.7978846
        %v1304 = vmul.f32 %v1284, 0.7978846
        %v1305 = vmul.f32 %v1285, 0.7978846
        %v1306 = vmul.f32 %v1286, 0.7978846
        %v1307 = vmul.f32 %v1287, 0.7978846
        %v1308 = vmul.f32 %v1288, 0.7978846
        %v1309 = vmul.f32 %v1289, 0.7978846
        %v1310 = vmul.f32 %v1290, 0.7978846
        %v1311 = vmul.f32 %v1291, 0.7978846
        %v1312 = vmul.f32 %v1292, 0.7978846
        %v1313 = vmul.f32 %v1293, 0.7978846
        %v1314 = vmul.f32 %v1294, 0.7978846
        %v1315 = vmul.f32 %v1295, 0.7978846
        %v1316 = vtanh.pop %v1296
        %v1317 = vtanh.pop %v1297
        %v1318 = vtanh.pop %v1298
        %v1319 = vtanh.pop %v1299
        %v1320 = vtanh.pop %v1300
        %v1321 = vtanh.pop %v1301
        %v1322 = vtanh.pop %v1302
        %v1323 = vtanh.pop %v1303
        %v1324 = vtanh.pop %v1304
        %v1325 = vtanh.pop %v1305
        %v1326 = vtanh.pop %v1306
        %v1327 = vtanh.pop %v1307
        %v1328 = vtanh.pop %v1308
        %v1329 = vtanh.pop %v1309
        %v1330 = vtanh.pop %v1310
        %v1331 = vtanh.pop %v1311
        %v1332 = vtanh.pop %v1312
        %v1333 = vtanh.pop %v1313
        %v1334 = vtanh.pop %v1314
        %v1335 = vtanh.pop %v1315
        %v1336 = vadd.f32 %v1316, 1.0
        %v1337 = vadd.f32 %v1317, 1.0
        %v1338 = vadd.f32 %v1318, 1.0
        %v1339 = vadd.f32 %v1319, 1.0
        %v1340 = vadd.f32 %v1320, 1.0
        %v1341 = vadd.f32 %v1321, 1.0
        %v1342 = vadd.f32 %v1322, 1.0
        %v1343 = vadd.f32 %v1323, 1.0
        %v1344 = vadd.f32 %v1324, 1.0
        %v1345 = vadd.f32 %v1325, 1.0
        %v1346 = vadd.f32 %v1326, 1.0
        %v1347 = vadd.f32 %v1327, 1.0
        %v1348 = vadd.f32 %v1328, 1.0
        %v1349 = vadd.f32 %v1329, 1.0
        %v1350 = vadd.f32 %v1330, 1.0
        %v1351 = vadd.f32 %v1331, 1.0
        %v1352 = vadd.f32 %v1332, 1.0
        %v1353 = vadd.f32 %v1333, 1.0
        %v1354 = vadd.f32 %v1334, 1.0
        %v1355 = vadd.f32 %v1335, 1.0
        %v1356 = vmul.f32 %v1196, %v1336
        %v1357 = vmul.f32 %v1197, %v1337
        %v1358 = vmul.f32 %v1198, %v1338
        %v1359 = vmul.f32 %v1199, %v1339
        %v1360 = vmul.f32 %v1200, %v1340
        %v1361 = vmul.f32 %v1201, %v1341
        %v1362 = vmul.f32 %v1202, %v1342
        %v1363 = vmul.f32 %v1203, %v1343
        %v1364 = vmul.f32 %v1204, %v1344
        %v1365 = vmul.f32 %v1205, %v1345
        %v1366 = vmul.f32 %v1206, %v1346
        %v1367 = vmul.f32 %v1207, %v1347
        %v1368 = vmul.f32 %v1208, %v1348
        %v1369 = vmul.f32 %v1209, %v1349
        %v1370 = vmul.f32 %v1210, %v1350
        %v1371 = vmul.f32 %v1211, %v1351
        %v1372 = vmul.f32 %v1212, %v1352
        %v1373 = vmul.f32 %v1213, %v1353
        %v1374 = vmul.f32 %v1214, %v1354
        %v1375 = vmul.f32 %v1215, %v1355
        %p1376 = scmp.eq.s32.totalorder %s37, 0
        %s1377 = scalar_select %p1376, 1, 0
        %v1378 = vstv %s1377
        %vm1379 = vcmp.eq.s32.totalorder %v1378, 1
        %p1380 = scmp.eq.s32.totalorder %s37, 1
        %s1381 = scalar_select %p1380, 1, 0
        %v1382 = vstv %s1381
        %vm1383 = vcmp.eq.s32.totalorder %v1382, 1
        %v1384 = vsel %vm1379, 0.0, %v1356
        %v1385 = vsel %vm1379, 0.0, %v1357
        %v1386 = vsel 0, 0.0, %v1358
        %v1387 = vsel 0, 0.0, %v1359
        %v1388 = vsel 0, 0.0, %v1360
        %v1389 = vsel 0, 0.0, %v1361
        %v1390 = vsel 0, 0.0, %v1362
        %v1391 = vsel 0, 0.0, %v1363
        %v1392 = vsel 0, 0.0, %v1364
        %v1393 = vsel 0, 0.0, %v1365
        %v1394 = vsel 0, 0.0, %v1366
        %v1395 = vsel 0, 0.0, %v1367
        %v1396 = vsel 0, 0.0, %v1368
        %v1397 = vsel 0, 0.0, %v1369
        %v1398 = vsel 0, 0.0, %v1370
        %v1399 = vsel 0, 0.0, %v1371
        %v1400 = vsel 0, 0.0, %v1372
        %v1401 = vsel 0, 0.0, %v1373
        %v1402 = vsel %vm1383, 0.0, %v1374
        %v1403 = vsel %vm1383, 0.0, %v1375
        %v1404 = vlaneseq
        %v1405 = vshrl.u32 %v1404, 7
        %v1406 = vadd.s32 %v1405, 8
        %vm1407 = vcmp.eq.s32.totalorder %v1405, 0
        %vm1408 = vcmp.eq.s32.totalorder %v1406, 0
        %v1409 = vrot.slane %v1384, 7
        %v1410 = vrot.slane %v1386, 7
        %v1411 = vrot.slane %v1388, 7
        %v1412 = vrot.slane %v1390, 7
        %v1413 = vrot.slane %v1392, 7
        %v1414 = vrot.slane %v1394, 7
        %v1415 = vrot.slane %v1396, 7
        %v1416 = vrot.slane %v1398, 7
        %v1417 = vrot.slane %v1400, 7
        %v1418 = vrot.slane %v1402, 7
        %v1419 = vrot.slane %v1385, 7
        %v1420 = vrot.slane %v1387, 7
        %v1421 = vrot.slane %v1389, 7
        %v1422 = vrot.slane %v1391, 7
        %v1423 = vrot.slane %v1393, 7
        %v1424 = vrot.slane %v1395, 7
        %v1425 = vrot.slane %v1397, 7
        %v1426 = vrot.slane %v1399, 7
        %v1427 = vrot.slane %v1401, 7
        %v1428 = vrot.slane %v1403, 7
        %vm1429 = vcmp.lt.s32.totalorder %v1405, 1
        %v1430 = vsel %vm1429, %v1409, %v1419
        %v1431 = vsel %vm1429, %v1410, %v1420
        %v1432 = vsel %vm1429, %v1411, %v1421
        %v1433 = vsel %vm1429, %v1412, %v1422
        %v1434 = vsel %vm1429, %v1413, %v1423
        %v1435 = vsel %vm1429, %v1414, %v1424
        %v1436 = vsel %vm1429, %v1415, %v1425
        %v1437 = vsel %vm1429, %v1416, %v1426
        %v1438 = vsel %vm1429, %v1417, %v1427
        %v1439 = vsel %vm1429, %v1418, %v1428
        %v1440 = vsel %vm1429, %v1419, %v1409
        %v1441 = vsel %vm1429, %v1420, %v1410
        %v1442 = vsel %vm1429, %v1421, %v1411
        %v1443 = vsel %vm1429, %v1422, %v1412
        %v1444 = vsel %vm1429, %v1423, %v1413
        %v1445 = vsel %vm1429, %v1424, %v1414
        %v1446 = vsel %vm1429, %v1425, %v1415
        %v1447 = vsel %vm1429, %v1426, %v1416
        %v1448 = vsel %vm1429, %v1427, %v1417
        %v1449 = vsel %vm1429, %v1428, %v1418
        %v1450 = vsel %vm1407, 0.0, %v1440
        %v1451 = vsel %vm1408, 0.0, %v1430
        %v1452 = vsel %vm1407, 0.0, %v1441
        %v1453 = vsel %vm1408, 0.0, %v1431
        %v1454 = vsel %vm1407, 0.0, %v1442
        %v1455 = vsel %vm1408, 0.0, %v1432
        %v1456 = vsel %vm1407, 0.0, %v1443
        %v1457 = vsel %vm1408, 0.0, %v1433
        %v1458 = vsel %vm1407, 0.0, %v1444
        %v1459 = vsel %vm1408, 0.0, %v1434
        %v1460 = vsel %vm1407, 0.0, %v1445
        %v1461 = vsel %vm1408, 0.0, %v1435
        %v1462 = vsel %vm1407, 0.0, %v1446
        %v1463 = vsel %vm1408, 0.0, %v1436
        %v1464 = vsel %vm1407, 0.0, %v1447
        %v1465 = vsel %vm1408, 0.0, %v1437
        %v1466 = vsel %vm1407, 0.0, %v1448
        %v1467 = vsel %vm1408, 0.0, %v1438
        %v1468 = vsel %vm1407, 0.0, %v1449
        %v1469 = vsel %vm1408, 0.0, %v1439
        %vm1470 = vcmp.eq.s32.totalorder %v1405, 15
        %vm1471 = vcmp.eq.s32.totalorder %v1406, 15
        %v1472 = vrot.slane %v1384, 1
        %v1473 = vrot.slane %v1386, 1
        %v1474 = vrot.slane %v1388, 1
        %v1475 = vrot.slane %v1390, 1
        %v1476 = vrot.slane %v1392, 1
        %v1477 = vrot.slane %v1394, 1
        %v1478 = vrot.slane %v1396, 1
        %v1479 = vrot.slane %v1398, 1
        %v1480 = vrot.slane %v1400, 1
        %v1481 = vrot.slane %v1402, 1
        %v1482 = vrot.slane %v1385, 1
        %v1483 = vrot.slane %v1387, 1
        %v1484 = vrot.slane %v1389, 1
        %v1485 = vrot.slane %v1391, 1
        %v1486 = vrot.slane %v1393, 1
        %v1487 = vrot.slane %v1395, 1
        %v1488 = vrot.slane %v1397, 1
        %v1489 = vrot.slane %v1399, 1
        %v1490 = vrot.slane %v1401, 1
        %v1491 = vrot.slane %v1403, 1
        %vm1492 = vcmp.lt.s32.totalorder %v1405, 7
        %v1493 = vsel %vm1492, %v1472, %v1482
        %v1494 = vsel %vm1492, %v1473, %v1483
        %v1495 = vsel %vm1492, %v1474, %v1484
        %v1496 = vsel %vm1492, %v1475, %v1485
        %v1497 = vsel %vm1492, %v1476, %v1486
        %v1498 = vsel %vm1492, %v1477, %v1487
        %v1499 = vsel %vm1492, %v1478, %v1488
        %v1500 = vsel %vm1492, %v1479, %v1489
        %v1501 = vsel %vm1492, %v1480, %v1490
        %v1502 = vsel %vm1492, %v1481, %v1491
        %v1503 = vsel %vm1492, %v1482, %v1472
        %v1504 = vsel %vm1492, %v1483, %v1473
        %v1505 = vsel %vm1492, %v1484, %v1474
        %v1506 = vsel %vm1492, %v1485, %v1475
        %v1507 = vsel %vm1492, %v1486, %v1476
        %v1508 = vsel %vm1492, %v1487, %v1477
        %v1509 = vsel %vm1492, %v1488, %v1478
        %v1510 = vsel %vm1492, %v1489, %v1479
        %v1511 = vsel %vm1492, %v1490, %v1480
        %v1512 = vsel %vm1492, %v1491, %v1481
        %v1513 = vsel %vm1470, 0.0, %v1493
        %v1514 = vsel %vm1471, 0.0, %v1503
        %v1515 = vsel %vm1470, 0.0, %v1494
        %v1516 = vsel %vm1471, 0.0, %v1504
        %v1517 = vsel %vm1470, 0.0, %v1495
        %v1518 = vsel %vm1471, 0.0, %v1505
        %v1519 = vsel %vm1470, 0.0, %v1496
        %v1520 = vsel %vm1471, 0.0, %v1506
        %v1521 = vsel %vm1470, 0.0, %v1497
        %v1522 = vsel %vm1471, 0.0, %v1507
        %v1523 = vsel %vm1470, 0.0, %v1498
        %v1524 = vsel %vm1471, 0.0, %v1508
        %v1525 = vsel %vm1470, 0.0, %v1499
        %v1526 = vsel %vm1471, 0.0, %v1509
        %v1527 = vsel %vm1470, 0.0, %v1500
        %v1528 = vsel %vm1471, 0.0, %v1510
        %v1529 = vsel %vm1470, 0.0, %v1501
        %v1530 = vsel %vm1471, 0.0, %v1511
        %v1531 = vsel %vm1470, 0.0, %v1502
        %v1532 = vsel %vm1471, 0.0, %v1512
        %1553 = vrot.lane.b32.xlu0 %v1384, 16
        %v1554 = vpop.permute.xlu0 %1553
        %1555 = vrot.lane.b32.xlu0 %v1385, 16
        %v1556 = vpop.permute.xlu0 %1555
        %1557 = vrot.lane.b32.xlu0 %v1386, 16
        %v1558 = vpop.permute.xlu0 %1557
        %1559 = vrot.lane.b32.xlu0 %v1387, 16
        %v1560 = vpop.permute.xlu0 %1559
        %1561 = vrot.lane.b32.xlu0 %v1388, 16
        %v1562 = vpop.permute.xlu0 %1561
        %1563 = vrot.lane.b32.xlu0 %v1389, 16
        %v1564 = vpop.permute.xlu0 %1563
        %1565 = vrot.lane.b32.xlu0 %v1390, 16
        %v1566 = vpop.permute.xlu0 %1565
        %1567 = vrot.lane.b32.xlu0 %v1391, 16
        %v1568 = vpop.permute.xlu0 %1567
        %1569 = vrot.lane.b32.xlu0 %v1392, 16
        %v1570 = vpop.permute.xlu0 %1569
        %1571 = vrot.lane.b32.xlu0 %v1393, 16
        %v1572 = vpop.permute.xlu0 %1571
        %1573 = vrot.lane.b32.xlu0 %v1394, 16
        %v1574 = vpop.permute.xlu0 %1573
        %1575 = vrot.lane.b32.xlu0 %v1395, 16
        %v1576 = vpop.permute.xlu0 %1575
        %1577 = vrot.lane.b32.xlu0 %v1396, 16
        %v1578 = vpop.permute.xlu0 %1577
        %1579 = vrot.lane.b32.xlu0 %v1397, 16
        %v1580 = vpop.permute.xlu0 %1579
        %1581 = vrot.lane.b32.xlu0 %v1398, 16
        %v1582 = vpop.permute.xlu0 %1581
        %1583 = vrot.lane.b32.xlu0 %v1399, 16
        %v1584 = vpop.permute.xlu0 %1583
        %1585 = vrot.lane.b32.xlu0 %v1400, 16
        %v1586 = vpop.permute.xlu0 %1585
        %1587 = vrot.lane.b32.xlu0 %v1401, 16
        %v1588 = vpop.permute.xlu0 %1587
        %1589 = vrot.lane.b32.xlu0 %v1402, 16
        %v1590 = vpop.permute.xlu0 %1589
        %1591 = vrot.lane.b32.xlu0 %v1403, 16
        %v1592 = vpop.permute.xlu0 %1591
        %1633 = vrot.lane.b32.xlu0 %v1513, 32
        %v1634 = vpop.permute.xlu0 %1633
        %1635 = vrot.lane.b32.xlu0 %v1514, 32
        %v1636 = vpop.permute.xlu0 %1635
        %1637 = vrot.lane.b32.xlu0 %v1515, 32
        %v1638 = vpop.permute.xlu0 %1637
        %1639 = vrot.lane.b32.xlu0 %v1516, 32
        %v1640 = vpop.permute.xlu0 %1639
        %1641 = vrot.lane.b32.xlu0 %v1517, 32
        %v1642 = vpop.permute.xlu0 %1641
        %1643 = vrot.lane.b32.xlu0 %v1518, 32
        %v1644 = vpop.permute.xlu0 %1643
        %1645 = vrot.lane.b32.xlu0 %v1519, 32
        %v1646 = vpop.permute.xlu0 %1645
        %1647 = vrot.lane.b32.xlu0 %v1520, 32
        %v1648 = vpop.permute.xlu0 %1647
        %1649 = vrot.lane.b32.xlu0 %v1521, 32
        %v1650 = vpop.permute.xlu0 %1649
        %1651 = vrot.lane.b32.xlu0 %v1522, 32
        %v1652 = vpop.permute.xlu0 %1651
        %1653 = vrot.lane.b32.xlu0 %v1523, 32
        %v1654 = vpop.permute.xlu0 %1653
        %1655 = vrot.lane.b32.xlu0 %v1524, 32
        %v1656 = vpop.permute.xlu0 %1655
        %1657 = vrot.lane.b32.xlu0 %v1525, 32
        %v1658 = vpop.permute.xlu0 %1657
        %1659 = vrot.lane.b32.xlu0 %v1526, 32
        %v1660 = vpop.permute.xlu0 %1659
        %1661 = vrot.lane.b32.xlu0 %v1527, 32
        %v1662 = vpop.permute.xlu0 %1661
        %1663 = vrot.lane.b32.xlu0 %v1528, 32
        %v1664 = vpop.permute.xlu0 %1663
        %1665 = vrot.lane.b32.xlu0 %v1529, 32
        %v1666 = vpop.permute.xlu0 %1665
        %1667 = vrot.lane.b32.xlu0 %v1530, 32
        %v1668 = vpop.permute.xlu0 %1667
        %1669 = vrot.lane.b32.xlu0 %v1531, 32
        %v1670 = vpop.permute.xlu0 %1669
        %1671 = vrot.lane.b32.xlu0 %v1532, 32
        %v1672 = vpop.permute.xlu0 %1671
        %v1693 = vsel %vm822, %v1450, %v1554
        %v1694 = vsel %vm822, %v1451, %v1556
        %v1695 = vsel %vm822, %v1452, %v1558
        %v1696 = vsel %vm822, %v1453, %v1560
        %v1697 = vsel %vm822, %v1454, %v1562
        %v1698 = vsel %vm822, %v1455, %v1564
        %v1699 = vsel %vm822, %v1456, %v1566
        %v1700 = vsel %vm822, %v1457, %v1568
        %v1701 = vsel %vm822, %v1458, %v1570
        %v1702 = vsel %vm822, %v1459, %v1572
        %v1703 = vsel %vm822, %v1460, %v1574
        %v1704 = vsel %vm822, %v1461, %v1576
        %v1705 = vsel %vm822, %v1462, %v1578
        %v1706 = vsel %vm822, %v1463, %v1580
        %v1707 = vsel %vm822, %v1464, %v1582
        %v1708 = vsel %vm822, %v1465, %v1584
        %v1709 = vsel %vm822, %v1466, %v1586
        %v1710 = vsel %vm822, %v1467, %v1588
        %v1711 = vsel %vm822, %v1468, %v1590
        %v1712 = vsel %vm822, %v1469, %v1592
        %v1713 = vsel %vm594, %v1693, %v1634
        %v1714 = vsel %vm594, %v1694, %v1636
        %v1715 = vsel %vm594, %v1695, %v1638
        %v1716 = vsel %vm594, %v1696, %v1640
        %v1717 = vsel %vm594, %v1697, %v1642
        %v1718 = vsel %vm594, %v1698, %v1644
        %v1719 = vsel %vm594, %v1699, %v1646
        %v1720 = vsel %vm594, %v1700, %v1648
        %v1721 = vsel %vm594, %v1701, %v1650
        %v1722 = vsel %vm594, %v1702, %v1652
        %v1723 = vsel %vm594, %v1703, %v1654
        %v1724 = vsel %vm594, %v1704, %v1656
        %v1725 = vsel %vm594, %v1705, %v1658
        %v1726 = vsel %vm594, %v1706, %v1660
        %v1727 = vsel %vm594, %v1707, %v1662
        %v1728 = vsel %vm594, %v1708, %v1664
        %v1729 = vsel %vm594, %v1709, %v1666
        %v1730 = vsel %vm594, %v1710, %v1668
        %v1731 = vsel %vm594, %v1711, %v1670
        %v1732 = vsel %vm594, %v1712, %v1672
        %1749 = vrot.lane.b32.xlu0 %v1715, 48
        %v1750 = vpop.permute.xlu0 %1749
        %1751 = vrot.lane.b32.xlu0 %v1716, 48
        %v1752 = vpop.permute.xlu0 %1751
        %1753 = vrot.lane.b32.xlu0 %v1717, 48
        %v1754 = vpop.permute.xlu0 %1753
        %1755 = vrot.lane.b32.xlu0 %v1718, 48
        %v1756 = vpop.permute.xlu0 %1755
        %1757 = vrot.lane.b32.xlu0 %v1719, 48
        %v1758 = vpop.permute.xlu0 %1757
        %1759 = vrot.lane.b32.xlu0 %v1720, 48
        %v1760 = vpop.permute.xlu0 %1759
        %1761 = vrot.lane.b32.xlu0 %v1721, 48
        %v1762 = vpop.permute.xlu0 %1761
        %1763 = vrot.lane.b32.xlu0 %v1722, 48
        %v1764 = vpop.permute.xlu0 %1763
        %1765 = vrot.lane.b32.xlu0 %v1723, 48
        %v1766 = vpop.permute.xlu0 %1765
        %1767 = vrot.lane.b32.xlu0 %v1724, 48
        %v1768 = vpop.permute.xlu0 %1767
        %1769 = vrot.lane.b32.xlu0 %v1725, 48
        %v1770 = vpop.permute.xlu0 %1769
        %1771 = vrot.lane.b32.xlu0 %v1726, 48
        %v1772 = vpop.permute.xlu0 %1771
        %1773 = vrot.lane.b32.xlu0 %v1727, 48
        %v1774 = vpop.permute.xlu0 %1773
        %1775 = vrot.lane.b32.xlu0 %v1728, 48
        %v1776 = vpop.permute.xlu0 %1775
        %1777 = vrot.lane.b32.xlu0 %v1729, 48
        %v1778 = vpop.permute.xlu0 %1777
        %1779 = vrot.lane.b32.xlu0 %v1730, 48
        %v1780 = vpop.permute.xlu0 %1779
        %1799 = vrot.lane.b32.xlu0 %v1717, 96
        %v1800 = vpop.permute.xlu0 %1799
        %1801 = vrot.lane.b32.xlu0 %v1718, 96
        %v1802 = vpop.permute.xlu0 %1801
        %1803 = vrot.lane.b32.xlu0 %v1719, 96
        %v1804 = vpop.permute.xlu0 %1803
        %1805 = vrot.lane.b32.xlu0 %v1720, 96
        %v1806 = vpop.permute.xlu0 %1805
        %1807 = vrot.lane.b32.xlu0 %v1721, 96
        %v1808 = vpop.permute.xlu0 %1807
        %1809 = vrot.lane.b32.xlu0 %v1722, 96
        %v1810 = vpop.permute.xlu0 %1809
        %1811 = vrot.lane.b32.xlu0 %v1723, 96
        %v1812 = vpop.permute.xlu0 %1811
        %1813 = vrot.lane.b32.xlu0 %v1724, 96
        %v1814 = vpop.permute.xlu0 %1813
        %1815 = vrot.lane.b32.xlu0 %v1725, 96
        %v1816 = vpop.permute.xlu0 %1815
        %1817 = vrot.lane.b32.xlu0 %v1726, 96
        %v1818 = vpop.permute.xlu0 %1817
        %1819 = vrot.lane.b32.xlu0 %v1727, 96
        %v1820 = vpop.permute.xlu0 %1819
        %1821 = vrot.lane.b32.xlu0 %v1728, 96
        %v1822 = vpop.permute.xlu0 %1821
        %1823 = vrot.lane.b32.xlu0 %v1729, 96
        %v1824 = vpop.permute.xlu0 %1823
        %1825 = vrot.lane.b32.xlu0 %v1730, 96
        %v1826 = vpop.permute.xlu0 %1825
        %1827 = vrot.lane.b32.xlu0 %v1731, 96
        %v1828 = vpop.permute.xlu0 %1827
        %1829 = vrot.lane.b32.xlu0 %v1732, 96
        %v1830 = vpop.permute.xlu0 %1829
        %vm1847 = vcmask 392192
        %v1848 = vsel %vm1847, %v1713, %v1750
        %v1849 = vsel %vm1847, %v1714, %v1752
        %v1850 = vsel %vm1847, %v1715, %v1754
        %v1851 = vsel %vm1847, %v1716, %v1756
        %v1852 = vsel %vm1847, %v1717, %v1758
        %v1853 = vsel %vm1847, %v1718, %v1760
        %v1854 = vsel %vm1847, %v1719, %v1762
        %v1855 = vsel %vm1847, %v1720, %v1764
        %v1856 = vsel %vm1847, %v1721, %v1766
        %v1857 = vsel %vm1847, %v1722, %v1768
        %v1858 = vsel %vm1847, %v1723, %v1770
        %v1859 = vsel %vm1847, %v1724, %v1772
        %v1860 = vsel %vm1847, %v1725, %v1774
        %v1861 = vsel %vm1847, %v1726, %v1776
        %v1862 = vsel %vm1847, %v1727, %v1778
        %v1863 = vsel %vm1847, %v1728, %v1780
        %vm1864 = vcmask 785408
        %v1865 = vsel %vm1864, %v1848, %v1800
        %v1866 = vsel %vm1864, %v1849, %v1802
        %v1867 = vsel %vm1864, %v1850, %v1804
        %v1868 = vsel %vm1864, %v1851, %v1806
        %v1869 = vsel %vm1864, %v1852, %v1808
        %v1870 = vsel %vm1864, %v1853, %v1810
        %v1871 = vsel %vm1864, %v1854, %v1812
        %v1872 = vsel %vm1864, %v1855, %v1814
        %v1873 = vsel %vm1864, %v1856, %v1816
        %v1874 = vsel %vm1864, %v1857, %v1818
        %v1875 = vsel %vm1864, %v1858, %v1820
        %v1876 = vsel %vm1864, %v1859, %v1822
        %v1877 = vsel %vm1864, %v1860, %v1824
        %v1878 = vsel %vm1864, %v1861, %v1826
        %v1879 = vsel %vm1864, %v1862, %v1828
        %v1880 = vsel %vm1864, %v1863, %v1830
        %v1881 = vld [vmem:[%s6] sm:$0xff]
        %v1882 = vld [vmem:[%s6 + $0x8] sm:$0xff]
        %v1883 = vld [vmem:[%s6 + $0x10] sm:$0xff]
        %v1884 = vld [vmem:[%s6 + $0x18] sm:$0xff]
        %v1885 = vld [vmem:[%s6 + $0x20] sm:$0xff]
        %v1886 = vld [vmem:[%s6 + $0x28] sm:$0xff]
        %v1887 = vld [vmem:[%s6 + $0x30] sm:$0xff]
        %v1888 = vld [vmem:[%s6 + $0x38] sm:$0xff]
        %v1889 = vld [vmem:[%s6 + $0x40] sm:$0xff]
        %v1890 = vld [vmem:[%s6 + $0x48] sm:$0xff]
        %v1891 = vld [vmem:[%s6 + $0x50] sm:$0xff]
        %v1892 = vld [vmem:[%s6 + $0x58] sm:$0xff]
        %v1893 = vld [vmem:[%s6 + $0x60] sm:$0xff]
        %v1894 = vld [vmem:[%s6 + $0x68] sm:$0xff]
        %v1895 = vld [vmem:[%s6 + $0x70] sm:$0xff]
        %v1896 = vld [vmem:[%s6 + $0x78] sm:$0xff]
        %v1897 = vld [vmem:[%s6 + $0x80] sm:$0xff]
        %v1898 = vld [vmem:[%s6 + $0x88] sm:$0xff]
        %v1899 = vsel %vm822, %v1800, 0
        %v1901 = vsel %vm822, %v1802, 0
        %v1903 = vsel %vm822, %v1804, 0
        %v1905 = vsel %vm822, %v1806, 0
        %v1907 = vsel %vm822, %v1808, 0
        %v1909 = vsel %vm822, %v1810, 0
        %v1911 = vsel %vm822, %v1812, 0
        %v1913 = vsel %vm822, %v1814, 0
        %v1915 = vsel %vm822, %v1816, 0
        %v1917 = vsel %vm822, %v1818, 0
        %v1919 = vsel %vm822, %v1820, 0
        %v1921 = vsel %vm822, %v1822, 0
        %v1923 = vsel %vm822, %v1824, 0
        %v1925 = vsel %vm822, %v1826, 0
        %v1927 = vsel %vm822, %v1828, 0
        %v1929 = vsel %vm822, %v1830, 0
        %1931 = vmatprep.subr.mxu0 0.0
        %1932 = vmatpush1.msra.mxu0 %v1896
        %1933 = vmatprep.subr.mxu0 0.0
        %1934 = vmatpush1.msra.mxu0 %v1895
        %1935 = vmatprep.subr.mxu0 0.0
        %1936 = vmatpush1.msra.mxu0 %v1894
        %1937 = vmatprep.subr.mxu0 0.0
        %1938 = vmatpush1.msra.mxu0 %v1893
        %1939 = vmatprep.subr.mxu0 0.0
        %1940 = vmatpush1.msra.mxu0 %v1892
        %1941 = vmatprep.subr.mxu0 0.0
        %1942 = vmatpush1.msra.mxu0 %v1891
        %1943 = vmatprep.subr.mxu0 0.0
        %1944 = vmatpush1.msra.mxu0 %v1890
        %1945 = vmatprep.subr.mxu0 0.0
        %1946 = vmatpush1.msra.mxu0 %v1889
        %1947 = vmatprep.subr.mxu0 0.0
        %1948 = vmatpush1.msra.mxu0 %v1888
        %1949 = vmatprep.subr.mxu0 0.0
        %1950 = vmatpush1.msra.mxu0 %v1887
        %1951 = vmatprep.subr.mxu0 0.0
        %1952 = vmatpush1.msra.mxu0 %v1886
        %1953 = vmatprep.subr.mxu0 0.0
        %1954 = vmatpush1.msra.mxu0 %v1885
        %1955 = vmatprep.subr.mxu0 0.0
        %1956 = vmatpush1.msra.mxu0 %v1884
        %1957 = vmatprep.subr.mxu0 0.0
        %1958 = vmatpush1.msra.mxu0 %v1883
        %1959 = vmatprep.subr.mxu0 0.0
        %1960 = vmatpush1.msra.mxu0 %v1882
        %1961 = vmatprep.subr.mxu0 0.0
        %1962 = vmatpush1.msra.mxu0 %v1881
        %1963 = vmatprep.subr.mxu0 0.0
        %1964 = vmatpush2.msra.mxu0 0.0
        %1965 = vmatprep.subr.mxu0 0.0
        %1966 = vmatpush2.msra.mxu0 0.0
        %1967 = vmatprep.subr.mxu0 0.0
        %1968 = vmatpush2.msra.mxu0 0.0
        %1969 = vmatprep.subr.mxu0 0.0
        %1970 = vmatpush2.msra.mxu0 0.0
        %1971 = vmatprep.subr.mxu0 0.0
        %1972 = vmatpush2.msra.mxu0 0.0
        %1973 = vmatprep.subr.mxu0 0.0
        %1974 = vmatpush2.msra.mxu0 0.0
        %1975 = vmatprep.subr.mxu0 0.0
        %1976 = vmatpush2.msra.mxu0 0.0
        %1977 = vmatprep.subr.mxu0 0.0
        %1978 = vmatpush2.msra.mxu0 0.0
        %1979 = vmatprep.subr.mxu0 0.0
        %1980 = vmatpush2.msra.mxu0 0.0
        %1981 = vmatprep.subr.mxu0 0.0
        %1982 = vmatpush2.msra.mxu0 0.0
        %1983 = vmatprep.subr.mxu0 0.0
        %1984 = vmatpush2.msra.mxu0 0.0
        %1985 = vmatprep.subr.mxu0 0.0
        %1986 = vmatpush2.msra.mxu0 0.0
        %1987 = vmatprep.subr.mxu0 0.0
        %1988 = vmatpush2.msra.mxu0 0.0
        %1989 = vmatprep.subr.mxu0 0.0
        %1990 = vmatpush2.msra.mxu0 0.0
        %1991 = vmatprep.subr.mxu0 0.0
        %1992 = vmatpush2.msra.mxu0 %v1898
        %1993 = vmatprep.subr.mxu0 0.0
        %1994 = vmatpush2.msra.mxu0 %v1897
        %1995 = vmatprep.mubr.f32.mxu0 %v1899
        %1996 = vmatmul.mubr.f32.gmra.mxu0 %v1865
        %v1997 = vpop.f32.mrf.mxu0
        %v1998 = vadd.f32 0.0, %v1997
        %v1999 = vpop.f32.mrf.mxu0
        %2000 = vmatprep.mubr.f32.mxu0 %v1901
        %2001 = vmatmul.mubr.f32.gmra.mxu0 %v1866
        %v2002 = vpop.f32.mrf.mxu0
        %v2003 = vadd.f32 0.0, %v2002
        %v2004 = vpop.f32.mrf.mxu0
        %2005 = vmatprep.mubr.f32.mxu0 %v1903
        %2006 = vmatmul.mubr.f32.gmra.mxu0 %v1867
        %v2007 = vpop.f32.mrf.mxu0
        %v2008 = vadd.f32 0.0, %v2007
        %v2009 = vpop.f32.mrf.mxu0
        %2010 = vmatprep.mubr.f32.mxu0 %v1905
        %2011 = vmatmul.mubr.f32.gmra.mxu0 %v1868
        %v2012 = vpop.f32.mrf.mxu0
        %v2013 = vadd.f32 0.0, %v2012
        %v2014 = vpop.f32.mrf.mxu0
        %2015 = vmatprep.mubr.f32.mxu0 %v1907
        %2016 = vmatmul.mubr.f32.gmra.mxu0 %v1869
        %v2017 = vpop.f32.mrf.mxu0
        %v2018 = vadd.f32 0.0, %v2017
        %v2019 = vpop.f32.mrf.mxu0
        %2020 = vmatprep.mubr.f32.mxu0 %v1909
        %2021 = vmatmul.mubr.f32.gmra.mxu0 %v1870
        %v2022 = vpop.f32.mrf.mxu0
        %v2023 = vadd.f32 0.0, %v2022
        %v2024 = vpop.f32.mrf.mxu0
        %2025 = vmatprep.mubr.f32.mxu0 %v1911
        %2026 = vmatmul.mubr.f32.gmra.mxu0 %v1871
        %v2027 = vpop.f32.mrf.mxu0
        %v2028 = vadd.f32 0.0, %v2027
        %v2029 = vpop.f32.mrf.mxu0
        %2030 = vmatprep.mubr.f32.mxu0 %v1913
        %2031 = vmatmul.mubr.f32.gmra.mxu0 %v1872
        %v2032 = vpop.f32.mrf.mxu0
        %v2033 = vadd.f32 0.0, %v2032
        %v2034 = vpop.f32.mrf.mxu0
        %2035 = vmatprep.mubr.f32.mxu0 %v1915
        %2036 = vmatmul.mubr.f32.gmra.mxu0 %v1873
        %v2037 = vpop.f32.mrf.mxu0
        %v2038 = vadd.f32 0.0, %v2037
        %v2039 = vpop.f32.mrf.mxu0
        %2040 = vmatprep.mubr.f32.mxu0 %v1917
        %2041 = vmatmul.mubr.f32.gmra.mxu0 %v1874
        %v2042 = vpop.f32.mrf.mxu0
        %v2043 = vadd.f32 0.0, %v2042
        %v2044 = vpop.f32.mrf.mxu0
        %2045 = vmatprep.mubr.f32.mxu0 %v1919
        %2046 = vmatmul.mubr.f32.gmra.mxu0 %v1875
        %v2047 = vpop.f32.mrf.mxu0
        %v2048 = vadd.f32 0.0, %v2047
        %v2049 = vpop.f32.mrf.mxu0
        %2050 = vmatprep.mubr.f32.mxu0 %v1921
        %2051 = vmatmul.mubr.f32.gmra.mxu0 %v1876
        %v2052 = vpop.f32.mrf.mxu0
        %v2053 = vadd.f32 0.0, %v2052
        %v2054 = vpop.f32.mrf.mxu0
        %2055 = vmatprep.mubr.f32.mxu0 %v1923
        %2056 = vmatmul.mubr.f32.gmra.mxu0 %v1877
        %v2057 = vpop.f32.mrf.mxu0
        %v2058 = vadd.f32 0.0, %v2057
        %v2059 = vpop.f32.mrf.mxu0
        %2060 = vmatprep.mubr.f32.mxu0 %v1925
        %2061 = vmatmul.mubr.f32.gmra.mxu0 %v1878
        %v2062 = vpop.f32.mrf.mxu0
        %v2063 = vadd.f32 0.0, %v2062
        %v2064 = vpop.f32.mrf.mxu0
        %2065 = vmatprep.mubr.f32.mxu0 %v1927
        %2066 = vmatmul.mubr.f32.gmra.mxu0 %v1879
        %v2067 = vpop.f32.mrf.mxu0
        %v2068 = vadd.f32 0.0, %v2067
        %v2069 = vpop.f32.mrf.mxu0
        %2070 = vmatprep.mubr.f32.mxu0 %v1929
        %2071 = vmatmul.mubr.f32.gmra.mxu0 %v1880
        %v2072 = vpop.f32.mrf.mxu0
        %v2073 = vadd.f32 0.0, %v2072
        %v2074 = vpop.f32.mrf.mxu0
        %2075 = vdwg.mxu0
        %v2076 = vld [vmem:[%s7] sm:$0x1]
        %v2077 = vld [vmem:[%s8] sm:$0x1]
        %v2078 = vsel %vm822, %v1998, 0.0
        %2079 = vadd.xlane.f32.xlu0 %v2078
        %v2080 = vpop.xlane.xlu0 %2079
        %v2081 = vsel %vm822, %v2003, 0.0
        %2082 = vadd.xlane.f32.xlu0 %v2081
        %v2083 = vpop.xlane.xlu0 %2082
        %v2084 = vsel %vm822, %v2008, 0.0
        %2085 = vadd.xlane.f32.xlu0 %v2084
        %v2086 = vpop.xlane.xlu0 %2085
        %v2087 = vsel %vm822, %v2013, 0.0
        %2088 = vadd.xlane.f32.xlu0 %v2087
        %v2089 = vpop.xlane.xlu0 %2088
        %v2090 = vsel %vm822, %v2018, 0.0
        %2091 = vadd.xlane.f32.xlu0 %v2090
        %v2092 = vpop.xlane.xlu0 %2091
        %v2093 = vsel %vm822, %v2023, 0.0
        %2094 = vadd.xlane.f32.xlu0 %v2093
        %v2095 = vpop.xlane.xlu0 %2094
        %v2096 = vsel %vm822, %v2028, 0.0
        %2097 = vadd.xlane.f32.xlu0 %v2096
        %v2098 = vpop.xlane.xlu0 %2097
        %v2099 = vsel %vm822, %v2033, 0.0
        %2100 = vadd.xlane.f32.xlu0 %v2099
        %v2101 = vpop.xlane.xlu0 %2100
        %v2102 = vsel %vm822, %v2038, 0.0
        %2103 = vadd.xlane.f32.xlu0 %v2102
        %v2104 = vpop.xlane.xlu0 %2103
        %v2105 = vsel %vm822, %v2043, 0.0
        %2106 = vadd.xlane.f32.xlu0 %v2105
        %v2107 = vpop.xlane.xlu0 %2106
        %v2108 = vsel %vm822, %v2048, 0.0
        %2109 = vadd.xlane.f32.xlu0 %v2108
        %v2110 = vpop.xlane.xlu0 %2109
        %v2111 = vsel %vm822, %v2053, 0.0
        %2112 = vadd.xlane.f32.xlu0 %v2111
        %v2113 = vpop.xlane.xlu0 %2112
        %v2114 = vsel %vm822, %v2058, 0.0
        %2115 = vadd.xlane.f32.xlu0 %v2114
        %v2116 = vpop.xlane.xlu0 %2115
        %v2117 = vsel %vm822, %v2063, 0.0
        %2118 = vadd.xlane.f32.xlu0 %v2117
        %v2119 = vpop.xlane.xlu0 %2118
        %v2120 = vsel %vm822, %v2068, 0.0
        %2121 = vadd.xlane.f32.xlu0 %v2120
        %v2122 = vpop.xlane.xlu0 %2121
        %v2123 = vsel %vm822, %v2073, 0.0
        %2124 = vadd.xlane.f32.xlu0 %v2123
        %v2125 = vpop.xlane.xlu0 %2124
        %v2126 = vmul.f32 %v2080, %v883
        %v2127 = vmul.f32 %v2083, %v883
        %v2128 = vmul.f32 %v2086, %v883
        %v2129 = vmul.f32 %v2089, %v883
        %v2130 = vmul.f32 %v2092, %v883
        %v2131 = vmul.f32 %v2095, %v883
        %v2132 = vmul.f32 %v2098, %v883
        %v2133 = vmul.f32 %v2101, %v883
        %v2134 = vmul.f32 %v2104, %v883
        %v2135 = vmul.f32 %v2107, %v883
        %v2136 = vmul.f32 %v2110, %v883
        %v2137 = vmul.f32 %v2113, %v883
        %v2138 = vmul.f32 %v2116, %v883
        %v2139 = vmul.f32 %v2119, %v883
        %v2140 = vmul.f32 %v2122, %v883
        %v2141 = vmul.f32 %v2125, %v883
        %v2142 = vmul.f32 %v1998, %v1998
        %v2143 = vmul.f32 %v2003, %v2003
        %v2144 = vmul.f32 %v2008, %v2008
        %v2145 = vmul.f32 %v2013, %v2013
        %v2146 = vmul.f32 %v2018, %v2018
        %v2147 = vmul.f32 %v2023, %v2023
        %v2148 = vmul.f32 %v2028, %v2028
        %v2149 = vmul.f32 %v2033, %v2033
        %v2150 = vmul.f32 %v2038, %v2038
        %v2151 = vmul.f32 %v2043, %v2043
        %v2152 = vmul.f32 %v2048, %v2048
        %v2153 = vmul.f32 %v2053, %v2053
        %v2154 = vmul.f32 %v2058, %v2058
        %v2155 = vmul.f32 %v2063, %v2063
        %v2156 = vmul.f32 %v2068, %v2068
        %v2157 = vmul.f32 %v2073, %v2073
        %v2158 = vsel %vm822, %v2142, 0.0
        %2159 = vadd.xlane.f32.xlu0 %v2158
        %v2160 = vpop.xlane.xlu0 %2159
        %v2161 = vsel %vm822, %v2143, 0.0
        %2162 = vadd.xlane.f32.xlu0 %v2161
        %v2163 = vpop.xlane.xlu0 %2162
        %v2164 = vsel %vm822, %v2144, 0.0
        %2165 = vadd.xlane.f32.xlu0 %v2164
        %v2166 = vpop.xlane.xlu0 %2165
        %v2167 = vsel %vm822, %v2145, 0.0
        %2168 = vadd.xlane.f32.xlu0 %v2167
        %v2169 = vpop.xlane.xlu0 %2168
        %v2170 = vsel %vm822, %v2146, 0.0
        %2171 = vadd.xlane.f32.xlu0 %v2170
        %v2172 = vpop.xlane.xlu0 %2171
        %v2173 = vsel %vm822, %v2147, 0.0
        %2174 = vadd.xlane.f32.xlu0 %v2173
        %v2175 = vpop.xlane.xlu0 %2174
        %v2176 = vsel %vm822, %v2148, 0.0
        %2177 = vadd.xlane.f32.xlu0 %v2176
        %v2178 = vpop.xlane.xlu0 %2177
        %v2179 = vsel %vm822, %v2149, 0.0
        %2180 = vadd.xlane.f32.xlu0 %v2179
        %v2181 = vpop.xlane.xlu0 %2180
        %v2182 = vsel %vm822, %v2150, 0.0
        %2183 = vadd.xlane.f32.xlu0 %v2182
        %v2184 = vpop.xlane.xlu0 %2183
        %v2185 = vsel %vm822, %v2151, 0.0
        %2186 = vadd.xlane.f32.xlu0 %v2185
        %v2187 = vpop.xlane.xlu0 %2186
        %v2188 = vsel %vm822, %v2152, 0.0
        %2189 = vadd.xlane.f32.xlu0 %v2188
        %v2190 = vpop.xlane.xlu0 %2189
        %v2191 = vsel %vm822, %v2153, 0.0
        %2192 = vadd.xlane.f32.xlu0 %v2191
        %v2193 = vpop.xlane.xlu0 %2192
        %v2194 = vsel %vm822, %v2154, 0.0
        %2195 = vadd.xlane.f32.xlu0 %v2194
        %v2196 = vpop.xlane.xlu0 %2195
        %v2197 = vsel %vm822, %v2155, 0.0
        %2198 = vadd.xlane.f32.xlu0 %v2197
        %v2199 = vpop.xlane.xlu0 %2198
        %v2200 = vsel %vm822, %v2156, 0.0
        %2201 = vadd.xlane.f32.xlu0 %v2200
        %v2202 = vpop.xlane.xlu0 %2201
        %v2203 = vsel %vm822, %v2157, 0.0
        %2204 = vadd.xlane.f32.xlu0 %v2203
        %v2205 = vpop.xlane.xlu0 %2204
        %v2206 = vmul.f32 %v2160, %v883
        %v2207 = vmul.f32 %v2163, %v883
        %v2208 = vmul.f32 %v2166, %v883
        %v2209 = vmul.f32 %v2169, %v883
        %v2210 = vmul.f32 %v2172, %v883
        %v2211 = vmul.f32 %v2175, %v883
        %v2212 = vmul.f32 %v2178, %v883
        %v2213 = vmul.f32 %v2181, %v883
        %v2214 = vmul.f32 %v2184, %v883
        %v2215 = vmul.f32 %v2187, %v883
        %v2216 = vmul.f32 %v2190, %v883
        %v2217 = vmul.f32 %v2193, %v883
        %v2218 = vmul.f32 %v2196, %v883
        %v2219 = vmul.f32 %v2199, %v883
        %v2220 = vmul.f32 %v2202, %v883
        %v2221 = vmul.f32 %v2205, %v883
        %v2222 = vmul.f32 %v2126, %v2126
        %v2223 = vmul.f32 %v2127, %v2127
        %v2224 = vmul.f32 %v2128, %v2128
        %v2225 = vmul.f32 %v2129, %v2129
        %v2226 = vmul.f32 %v2130, %v2130
        %v2227 = vmul.f32 %v2131, %v2131
        %v2228 = vmul.f32 %v2132, %v2132
        %v2229 = vmul.f32 %v2133, %v2133
        %v2230 = vmul.f32 %v2134, %v2134
        %v2231 = vmul.f32 %v2135, %v2135
        %v2232 = vmul.f32 %v2136, %v2136
        %v2233 = vmul.f32 %v2137, %v2137
        %v2234 = vmul.f32 %v2138, %v2138
        %v2235 = vmul.f32 %v2139, %v2139
        %v2236 = vmul.f32 %v2140, %v2140
        %v2237 = vmul.f32 %v2141, %v2141
        %v2238 = vsub.f32 %v2206, %v2222
        %v2239 = vsub.f32 %v2207, %v2223
        %v2240 = vsub.f32 %v2208, %v2224
        %v2241 = vsub.f32 %v2209, %v2225
        %v2242 = vsub.f32 %v2210, %v2226
        %v2243 = vsub.f32 %v2211, %v2227
        %v2244 = vsub.f32 %v2212, %v2228
        %v2245 = vsub.f32 %v2213, %v2229
        %v2246 = vsub.f32 %v2214, %v2230
        %v2247 = vsub.f32 %v2215, %v2231
        %v2248 = vsub.f32 %v2216, %v2232
        %v2249 = vsub.f32 %v2217, %v2233
        %v2250 = vsub.f32 %v2218, %v2234
        %v2251 = vsub.f32 %v2219, %v2235
        %v2252 = vsub.f32 %v2220, %v2236
        %v2253 = vsub.f32 %v2221, %v2237
        %v2254 = vmax.f32 %v2238, 0.0
        %v2255 = vmax.f32 %v2239, 0.0
        %v2256 = vmax.f32 %v2240, 0.0
        %v2257 = vmax.f32 %v2241, 0.0
        %v2258 = vmax.f32 %v2242, 0.0
        %v2259 = vmax.f32 %v2243, 0.0
        %v2260 = vmax.f32 %v2244, 0.0
        %v2261 = vmax.f32 %v2245, 0.0
        %v2262 = vmax.f32 %v2246, 0.0
        %v2263 = vmax.f32 %v2247, 0.0
        %v2264 = vmax.f32 %v2248, 0.0
        %v2265 = vmax.f32 %v2249, 0.0
        %v2266 = vmax.f32 %v2250, 0.0
        %v2267 = vmax.f32 %v2251, 0.0
        %v2268 = vmax.f32 %v2252, 0.0
        %v2269 = vmax.f32 %v2253, 0.0
        %v2270 = vsub.f32 %v1998, %v2126
        %v2271 = vsub.f32 %v2003, %v2127
        %v2272 = vsub.f32 %v2008, %v2128
        %v2273 = vsub.f32 %v2013, %v2129
        %v2274 = vsub.f32 %v2018, %v2130
        %v2275 = vsub.f32 %v2023, %v2131
        %v2276 = vsub.f32 %v2028, %v2132
        %v2277 = vsub.f32 %v2033, %v2133
        %v2278 = vsub.f32 %v2038, %v2134
        %v2279 = vsub.f32 %v2043, %v2135
        %v2280 = vsub.f32 %v2048, %v2136
        %v2281 = vsub.f32 %v2053, %v2137
        %v2282 = vsub.f32 %v2058, %v2138
        %v2283 = vsub.f32 %v2063, %v2139
        %v2284 = vsub.f32 %v2068, %v2140
        %v2285 = vsub.f32 %v2073, %v2141
        %v2286 = vadd.f32 %v2254, 1e-06
        %v2287 = vadd.f32 %v2255, 1e-06
        %v2288 = vadd.f32 %v2256, 1e-06
        %v2289 = vadd.f32 %v2257, 1e-06
        %v2290 = vadd.f32 %v2258, 1e-06
        %v2291 = vadd.f32 %v2259, 1e-06
        %v2292 = vadd.f32 %v2260, 1e-06
        %v2293 = vadd.f32 %v2261, 1e-06
        %v2294 = vadd.f32 %v2262, 1e-06
        %v2295 = vadd.f32 %v2263, 1e-06
        %v2296 = vadd.f32 %v2264, 1e-06
        %v2297 = vadd.f32 %v2265, 1e-06
        %v2298 = vadd.f32 %v2266, 1e-06
        %v2299 = vadd.f32 %v2267, 1e-06
        %v2300 = vadd.f32 %v2268, 1e-06
        %v2301 = vadd.f32 %v2269, 1e-06
        %v2302 = vrsqrt.pop %v2286
        %v2303 = vrsqrt.pop %v2287
        %v2304 = vrsqrt.pop %v2288
        %v2305 = vrsqrt.pop %v2289
        %v2306 = vrsqrt.pop %v2290
        %v2307 = vrsqrt.pop %v2291
        %v2308 = vrsqrt.pop %v2292
        %v2309 = vrsqrt.pop %v2293
        %v2310 = vrsqrt.pop %v2294
        %v2311 = vrsqrt.pop %v2295
        %v2312 = vrsqrt.pop %v2296
        %v2313 = vrsqrt.pop %v2297
        %v2314 = vrsqrt.pop %v2298
        %v2315 = vrsqrt.pop %v2299
        %v2316 = vrsqrt.pop %v2300
        %v2317 = vrsqrt.pop %v2301
        %v2318 = vmul.f32 %v2270, %v2302
        %v2319 = vmul.f32 %v2271, %v2303
        %v2320 = vmul.f32 %v2272, %v2304
        %v2321 = vmul.f32 %v2273, %v2305
        %v2322 = vmul.f32 %v2274, %v2306
        %v2323 = vmul.f32 %v2275, %v2307
        %v2324 = vmul.f32 %v2276, %v2308
        %v2325 = vmul.f32 %v2277, %v2309
        %v2326 = vmul.f32 %v2278, %v2310
        %v2327 = vmul.f32 %v2279, %v2311
        %v2328 = vmul.f32 %v2280, %v2312
        %v2329 = vmul.f32 %v2281, %v2313
        %v2330 = vmul.f32 %v2282, %v2314
        %v2331 = vmul.f32 %v2283, %v2315
        %v2332 = vmul.f32 %v2284, %v2316
        %v2333 = vmul.f32 %v2285, %v2317
        %v2335 = vlaneseq
        %v2336 = vshrl.u32 %v2335, 7
        %v2337 = vsub.s32 0, %v2336
        %v2338 = vrot.slane %v2076, %v2337
        %v2340 = vmul.f32 %v2318, %v2338
        %v2341 = vmul.f32 %v2319, %v2338
        %v2342 = vmul.f32 %v2320, %v2338
        %v2343 = vmul.f32 %v2321, %v2338
        %v2344 = vmul.f32 %v2322, %v2338
        %v2345 = vmul.f32 %v2323, %v2338
        %v2346 = vmul.f32 %v2324, %v2338
        %v2347 = vmul.f32 %v2325, %v2338
        %v2348 = vmul.f32 %v2326, %v2338
        %v2349 = vmul.f32 %v2327, %v2338
        %v2350 = vmul.f32 %v2328, %v2338
        %v2351 = vmul.f32 %v2329, %v2338
        %v2352 = vmul.f32 %v2330, %v2338
        %v2353 = vmul.f32 %v2331, %v2338
        %v2354 = vmul.f32 %v2332, %v2338
        %v2355 = vmul.f32 %v2333, %v2338
        %v2357 = vlaneseq
        %v2358 = vshrl.u32 %v2357, 7
        %v2359 = vsub.s32 0, %v2358
        %v2360 = vrot.slane %v2077, %v2359
        %v2362 = vadd.f32 %v2340, %v2360
        %v2363 = vadd.f32 %v2341, %v2360
        %v2364 = vadd.f32 %v2342, %v2360
        %v2365 = vadd.f32 %v2343, %v2360
        %v2366 = vadd.f32 %v2344, %v2360
        %v2367 = vadd.f32 %v2345, %v2360
        %v2368 = vadd.f32 %v2346, %v2360
        %v2369 = vadd.f32 %v2347, %v2360
        %v2370 = vadd.f32 %v2348, %v2360
        %v2371 = vadd.f32 %v2349, %v2360
        %v2372 = vadd.f32 %v2350, %v2360
        %v2373 = vadd.f32 %v2351, %v2360
        %v2374 = vadd.f32 %v2352, %v2360
        %v2375 = vadd.f32 %v2353, %v2360
        %v2376 = vadd.f32 %v2354, %v2360
        %v2377 = vadd.f32 %v2355, %v2360
        %v2378 = vmul.f32 %v2362, 0.5
        %v2379 = vmul.f32 %v2363, 0.5
        %v2380 = vmul.f32 %v2364, 0.5
        %v2381 = vmul.f32 %v2365, 0.5
        %v2382 = vmul.f32 %v2366, 0.5
        %v2383 = vmul.f32 %v2367, 0.5
        %v2384 = vmul.f32 %v2368, 0.5
        %v2385 = vmul.f32 %v2369, 0.5
        %v2386 = vmul.f32 %v2370, 0.5
        %v2387 = vmul.f32 %v2371, 0.5
        %v2388 = vmul.f32 %v2372, 0.5
        %v2389 = vmul.f32 %v2373, 0.5
        %v2390 = vmul.f32 %v2374, 0.5
        %v2391 = vmul.f32 %v2375, 0.5
        %v2392 = vmul.f32 %v2376, 0.5
        %v2393 = vmul.f32 %v2377, 0.5
        %v2394 = vmul.f32 %v2362, 0.044715
        %v2395 = vmul.f32 %v2363, 0.044715
        %v2396 = vmul.f32 %v2364, 0.044715
        %v2397 = vmul.f32 %v2365, 0.044715
        %v2398 = vmul.f32 %v2366, 0.044715
        %v2399 = vmul.f32 %v2367, 0.044715
        %v2400 = vmul.f32 %v2368, 0.044715
        %v2401 = vmul.f32 %v2369, 0.044715
        %v2402 = vmul.f32 %v2370, 0.044715
        %v2403 = vmul.f32 %v2371, 0.044715
        %v2404 = vmul.f32 %v2372, 0.044715
        %v2405 = vmul.f32 %v2373, 0.044715
        %v2406 = vmul.f32 %v2374, 0.044715
        %v2407 = vmul.f32 %v2375, 0.044715
        %v2408 = vmul.f32 %v2376, 0.044715
        %v2409 = vmul.f32 %v2377, 0.044715
        %v2410 = vmul.f32 %v2394, %v2362
        %v2411 = vmul.f32 %v2395, %v2363
        %v2412 = vmul.f32 %v2396, %v2364
        %v2413 = vmul.f32 %v2397, %v2365
        %v2414 = vmul.f32 %v2398, %v2366
        %v2415 = vmul.f32 %v2399, %v2367
        %v2416 = vmul.f32 %v2400, %v2368
        %v2417 = vmul.f32 %v2401, %v2369
        %v2418 = vmul.f32 %v2402, %v2370
        %v2419 = vmul.f32 %v2403, %v2371
        %v2420 = vmul.f32 %v2404, %v2372
        %v2421 = vmul.f32 %v2405, %v2373
        %v2422 = vmul.f32 %v2406, %v2374
        %v2423 = vmul.f32 %v2407, %v2375
        %v2424 = vmul.f32 %v2408, %v2376
        %v2425 = vmul.f32 %v2409, %v2377
        %v2426 = vmul.f32 %v2410, %v2362
        %v2427 = vmul.f32 %v2411, %v2363
        %v2428 = vmul.f32 %v2412, %v2364
        %v2429 = vmul.f32 %v2413, %v2365
        %v2430 = vmul.f32 %v2414, %v2366
        %v2431 = vmul.f32 %v2415, %v2367
        %v2432 = vmul.f32 %v2416, %v2368
        %v2433 = vmul.f32 %v2417, %v2369
        %v2434 = vmul.f32 %v2418, %v2370
        %v2435 = vmul.f32 %v2419, %v2371
        %v2436 = vmul.f32 %v2420, %v2372
        %v2437 = vmul.f32 %v2421, %v2373
        %v2438 = vmul.f32 %v2422, %v2374
        %v2439 = vmul.f32 %v2423, %v2375
        %v2440 = vmul.f32 %v2424, %v2376
        %v2441 = vmul.f32 %v2425, %v2377
        %v2442 = vadd.f32 %v2362, %v2426
        %v2443 = vadd.f32 %v2363, %v2427
        %v2444 = vadd.f32 %v2364, %v2428
        %v2445 = vadd.f32 %v2365, %v2429
        %v2446 = vadd.f32 %v2366, %v2430
        %v2447 = vadd.f32 %v2367, %v2431
        %v2448 = vadd.f32 %v2368, %v2432
        %v2449 = vadd.f32 %v2369, %v2433
        %v2450 = vadd.f32 %v2370, %v2434
        %v2451 = vadd.f32 %v2371, %v2435
        %v2452 = vadd.f32 %v2372, %v2436
        %v2453 = vadd.f32 %v2373, %v2437
        %v2454 = vadd.f32 %v2374, %v2438
        %v2455 = vadd.f32 %v2375, %v2439
        %v2456 = vadd.f32 %v2376, %v2440
        %v2457 = vadd.f32 %v2377, %v2441
        %v2458 = vmul.f32 %v2442, 0.7978846
        %v2459 = vmul.f32 %v2443, 0.7978846
        %v2460 = vmul.f32 %v2444, 0.7978846
        %v2461 = vmul.f32 %v2445, 0.7978846
        %v2462 = vmul.f32 %v2446, 0.7978846
        %v2463 = vmul.f32 %v2447, 0.7978846
        %v2464 = vmul.f32 %v2448, 0.7978846
        %v2465 = vmul.f32 %v2449, 0.7978846
        %v2466 = vmul.f32 %v2450, 0.7978846
        %v2467 = vmul.f32 %v2451, 0.7978846
        %v2468 = vmul.f32 %v2452, 0.7978846
        %v2469 = vmul.f32 %v2453, 0.7978846
        %v2470 = vmul.f32 %v2454, 0.7978846
        %v2471 = vmul.f32 %v2455, 0.7978846
        %v2472 = vmul.f32 %v2456, 0.7978846
        %v2473 = vmul.f32 %v2457, 0.7978846
        %v2474 = vtanh.pop %v2458
        %v2475 = vtanh.pop %v2459
        %v2476 = vtanh.pop %v2460
        %v2477 = vtanh.pop %v2461
        %v2478 = vtanh.pop %v2462
        %v2479 = vtanh.pop %v2463
        %v2480 = vtanh.pop %v2464
        %v2481 = vtanh.pop %v2465
        %v2482 = vtanh.pop %v2466
        %v2483 = vtanh.pop %v2467
        %v2484 = vtanh.pop %v2468
        %v2485 = vtanh.pop %v2469
        %v2486 = vtanh.pop %v2470
        %v2487 = vtanh.pop %v2471
        %v2488 = vtanh.pop %v2472
        %v2489 = vtanh.pop %v2473
        %v2490 = vadd.f32 %v2474, 1.0
        %v2491 = vadd.f32 %v2475, 1.0
        %v2492 = vadd.f32 %v2476, 1.0
        %v2493 = vadd.f32 %v2477, 1.0
        %v2494 = vadd.f32 %v2478, 1.0
        %v2495 = vadd.f32 %v2479, 1.0
        %v2496 = vadd.f32 %v2480, 1.0
        %v2497 = vadd.f32 %v2481, 1.0
        %v2498 = vadd.f32 %v2482, 1.0
        %v2499 = vadd.f32 %v2483, 1.0
        %v2500 = vadd.f32 %v2484, 1.0
        %v2501 = vadd.f32 %v2485, 1.0
        %v2502 = vadd.f32 %v2486, 1.0
        %v2503 = vadd.f32 %v2487, 1.0
        %v2504 = vadd.f32 %v2488, 1.0
        %v2505 = vadd.f32 %v2489, 1.0
        %v2506 = vmul.f32 %v2378, %v2490
        %v2507 = vmul.f32 %v2379, %v2491
        %v2508 = vmul.f32 %v2380, %v2492
        %v2509 = vmul.f32 %v2381, %v2493
        %v2510 = vmul.f32 %v2382, %v2494
        %v2511 = vmul.f32 %v2383, %v2495
        %v2512 = vmul.f32 %v2384, %v2496
        %v2513 = vmul.f32 %v2385, %v2497
        %v2514 = vmul.f32 %v2386, %v2498
        %v2515 = vmul.f32 %v2387, %v2499
        %v2516 = vmul.f32 %v2388, %v2500
        %v2517 = vmul.f32 %v2389, %v2501
        %v2518 = vmul.f32 %v2390, %v2502
        %v2519 = vmul.f32 %v2391, %v2503
        %v2520 = vmul.f32 %v2392, %v2504
        %v2521 = vmul.f32 %v2393, %v2505
        %v2522 = vld [vmem:[%s9] sm:$0xff]
        %v2523 = vld [vmem:[%s9 + $0x8] sm:$0xff]
        %v2525 = vsel %vm822, %v2506, 0
        %v2528 = vsel %vm822, %v2507, 0
        %v2531 = vsel %vm822, %v2508, 0
        %v2534 = vsel %vm822, %v2509, 0
        %v2537 = vsel %vm822, %v2510, 0
        %v2540 = vsel %vm822, %v2511, 0
        %v2543 = vsel %vm822, %v2512, 0
        %v2546 = vsel %vm822, %v2513, 0
        %v2549 = vsel %vm822, %v2514, 0
        %v2552 = vsel %vm822, %v2515, 0
        %v2555 = vsel %vm822, %v2516, 0
        %v2558 = vsel %vm822, %v2517, 0
        %v2561 = vsel %vm822, %v2518, 0
        %v2564 = vsel %vm822, %v2519, 0
        %v2567 = vsel %vm822, %v2520, 0
        %v2570 = vsel %vm822, %v2521, 0
        %2572 = vmatprep.subr.mxu0 0.0
        %2573 = vmatpush1.msra.mxu0 0.0
        %2574 = vmatprep.subr.mxu0 0.0
        %2575 = vmatpush1.msra.mxu0 0.0
        %2576 = vmatprep.subr.mxu0 0.0
        %2577 = vmatpush1.msra.mxu0 0.0
        %2578 = vmatprep.subr.mxu0 0.0
        %2579 = vmatpush1.msra.mxu0 0.0
        %2580 = vmatprep.subr.mxu0 0.0
        %2581 = vmatpush1.msra.mxu0 0.0
        %2582 = vmatprep.subr.mxu0 0.0
        %2583 = vmatpush1.msra.mxu0 0.0
        %2584 = vmatprep.subr.mxu0 0.0
        %2585 = vmatpush1.msra.mxu0 0.0
        %2586 = vmatprep.subr.mxu0 0.0
        %2587 = vmatpush1.msra.mxu0 0.0
        %2588 = vmatprep.subr.mxu0 0.0
        %2589 = vmatpush1.msra.mxu0 0.0
        %2590 = vmatprep.subr.mxu0 0.0
        %2591 = vmatpush1.msra.mxu0 0.0
        %2592 = vmatprep.subr.mxu0 0.0
        %2593 = vmatpush1.msra.mxu0 0.0
        %2594 = vmatprep.subr.mxu0 0.0
        %2595 = vmatpush1.msra.mxu0 0.0
        %2596 = vmatprep.subr.mxu0 0.0
        %2597 = vmatpush1.msra.mxu0 0.0
        %2598 = vmatprep.subr.mxu0 0.0
        %2599 = vmatpush1.msra.mxu0 0.0
        %2600 = vmatprep.subr.mxu0 0.0
        %2601 = vmatpush1.msra.mxu0 %v2523
        %2602 = vmatprep.subr.mxu0 0.0
        %2603 = vmatpush1.msra.mxu0 %v2522
        %2604 = vmatprep.subr.mxu0 0.0
        %2605 = vmatpush2.msra.mxu0 0.0
        %2606 = vmatprep.subr.mxu0 0.0
        %2607 = vmatpush2.msra.mxu0 0.0
        %2608 = vmatprep.subr.mxu0 0.0
        %2609 = vmatpush2.msra.mxu0 0.0
        %2610 = vmatprep.subr.mxu0 0.0
        %2611 = vmatpush2.msra.mxu0 0.0
        %2612 = vmatprep.subr.mxu0 0.0
        %2613 = vmatpush2.msra.mxu0 0.0
        %2614 = vmatprep.subr.mxu0 0.0
        %2615 = vmatpush2.msra.mxu0 0.0
        %2616 = vmatprep.subr.mxu0 0.0
        %2617 = vmatpush2.msra.mxu0 0.0
        %2618 = vmatprep.subr.mxu0 0.0
        %2619 = vmatpush2.msra.mxu0 0.0
        %2620 = vmatprep.subr.mxu0 0.0
        %2621 = vmatpush2.msra.mxu0 0.0
        %2622 = vmatprep.subr.mxu0 0.0
        %2623 = vmatpush2.msra.mxu0 0.0
        %2624 = vmatprep.subr.mxu0 0.0
        %2625 = vmatpush2.msra.mxu0 0.0
        %2626 = vmatprep.subr.mxu0 0.0
        %2627 = vmatpush2.msra.mxu0 0.0
        %2628 = vmatprep.subr.mxu0 0.0
        %2629 = vmatpush2.msra.mxu0 0.0
        %2630 = vmatprep.subr.mxu0 0.0
        %2631 = vmatpush2.msra.mxu0 0.0
        %2632 = vmatprep.subr.mxu0 0.0
        %2633 = vmatpush2.msra.mxu0 0.0
        %2634 = vmatprep.subr.mxu0 0.0
        %2635 = vmatpush2.msra.mxu0 0.0
        %2636 = vmatprep.mubr.f32.mxu0 0.0
        %2637 = vmatmul.mubr.f32.gmra.mxu0 %v2525
        %v2638 = vpop.f32.mrf.mxu0
        %v2639 = vadd.f32 0.0, %v2638
        %v2640 = vpop.f32.mrf.mxu0
        %2641 = vmatprep.mubr.f32.mxu0 0.0
        %2642 = vmatmul.mubr.f32.gmra.mxu0 %v2528
        %v2643 = vpop.f32.mrf.mxu0
        %v2644 = vadd.f32 0.0, %v2643
        %v2645 = vpop.f32.mrf.mxu0
        %2646 = vmatprep.mubr.f32.mxu0 0.0
        %2647 = vmatmul.mubr.f32.gmra.mxu0 %v2531
        %v2648 = vpop.f32.mrf.mxu0
        %v2649 = vadd.f32 0.0, %v2648
        %v2650 = vpop.f32.mrf.mxu0
        %2651 = vmatprep.mubr.f32.mxu0 0.0
        %2652 = vmatmul.mubr.f32.gmra.mxu0 %v2534
        %v2653 = vpop.f32.mrf.mxu0
        %v2654 = vadd.f32 0.0, %v2653
        %v2655 = vpop.f32.mrf.mxu0
        %2656 = vmatprep.mubr.f32.mxu0 0.0
        %2657 = vmatmul.mubr.f32.gmra.mxu0 %v2537
        %v2658 = vpop.f32.mrf.mxu0
        %v2659 = vadd.f32 0.0, %v2658
        %v2660 = vpop.f32.mrf.mxu0
        %2661 = vmatprep.mubr.f32.mxu0 0.0
        %2662 = vmatmul.mubr.f32.gmra.mxu0 %v2540
        %v2663 = vpop.f32.mrf.mxu0
        %v2664 = vadd.f32 0.0, %v2663
        %v2665 = vpop.f32.mrf.mxu0
        %2666 = vmatprep.mubr.f32.mxu0 0.0
        %2667 = vmatmul.mubr.f32.gmra.mxu0 %v2543
        %v2668 = vpop.f32.mrf.mxu0
        %v2669 = vadd.f32 0.0, %v2668
        %v2670 = vpop.f32.mrf.mxu0
        %2671 = vmatprep.mubr.f32.mxu0 0.0
        %2672 = vmatmul.mubr.f32.gmra.mxu0 %v2546
        %v2673 = vpop.f32.mrf.mxu0
        %v2674 = vadd.f32 0.0, %v2673
        %v2675 = vpop.f32.mrf.mxu0
        %2676 = vmatprep.mubr.f32.mxu0 0.0
        %2677 = vmatmul.mubr.f32.gmra.mxu0 %v2549
        %v2678 = vpop.f32.mrf.mxu0
        %v2679 = vadd.f32 0.0, %v2678
        %v2680 = vpop.f32.mrf.mxu0
        %2681 = vmatprep.mubr.f32.mxu0 0.0
        %2682 = vmatmul.mubr.f32.gmra.mxu0 %v2552
        %v2683 = vpop.f32.mrf.mxu0
        %v2684 = vadd.f32 0.0, %v2683
        %v2685 = vpop.f32.mrf.mxu0
        %2686 = vmatprep.mubr.f32.mxu0 0.0
        %2687 = vmatmul.mubr.f32.gmra.mxu0 %v2555
        %v2688 = vpop.f32.mrf.mxu0
        %v2689 = vadd.f32 0.0, %v2688
        %v2690 = vpop.f32.mrf.mxu0
        %2691 = vmatprep.mubr.f32.mxu0 0.0
        %2692 = vmatmul.mubr.f32.gmra.mxu0 %v2558
        %v2693 = vpop.f32.mrf.mxu0
        %v2694 = vadd.f32 0.0, %v2693
        %v2695 = vpop.f32.mrf.mxu0
        %2696 = vmatprep.mubr.f32.mxu0 0.0
        %2697 = vmatmul.mubr.f32.gmra.mxu0 %v2561
        %v2698 = vpop.f32.mrf.mxu0
        %v2699 = vadd.f32 0.0, %v2698
        %v2700 = vpop.f32.mrf.mxu0
        %2701 = vmatprep.mubr.f32.mxu0 0.0
        %2702 = vmatmul.mubr.f32.gmra.mxu0 %v2564
        %v2703 = vpop.f32.mrf.mxu0
        %v2704 = vadd.f32 0.0, %v2703
        %v2705 = vpop.f32.mrf.mxu0
        %2706 = vmatprep.mubr.f32.mxu0 0.0
        %2707 = vmatmul.mubr.f32.gmra.mxu0 %v2567
        %v2708 = vpop.f32.mrf.mxu0
        %v2709 = vadd.f32 0.0, %v2708
        %v2710 = vpop.f32.mrf.mxu0
        %2711 = vmatprep.mubr.f32.mxu0 0.0
        %2712 = vmatmul.mubr.f32.gmra.mxu0 %v2570
        %v2713 = vpop.f32.mrf.mxu0
        %v2714 = vadd.f32 0.0, %v2713
        %v2715 = vpop.f32.mrf.mxu0
        %2716 = vdwg.mxu0
        %v2717 = vld [vmem:[%s10] sm:$0x1]
        %v2718 = vld [vmem:[%s11] sm:$0x1]
        %v2719 = vsel %vm594, %v2639, 0.0
        %2720 = vadd.xlane.f32.xlu0 %v2719
        %v2721 = vpop.xlane.xlu0 %2720
        %v2722 = vsel %vm594, %v2644, 0.0
        %2723 = vadd.xlane.f32.xlu0 %v2722
        %v2724 = vpop.xlane.xlu0 %2723
        %v2725 = vsel %vm594, %v2649, 0.0
        %2726 = vadd.xlane.f32.xlu0 %v2725
        %v2727 = vpop.xlane.xlu0 %2726
        %v2728 = vsel %vm594, %v2654, 0.0
        %2729 = vadd.xlane.f32.xlu0 %v2728
        %v2730 = vpop.xlane.xlu0 %2729
        %v2731 = vsel %vm594, %v2659, 0.0
        %2732 = vadd.xlane.f32.xlu0 %v2731
        %v2733 = vpop.xlane.xlu0 %2732
        %v2734 = vsel %vm594, %v2664, 0.0
        %2735 = vadd.xlane.f32.xlu0 %v2734
        %v2736 = vpop.xlane.xlu0 %2735
        %v2737 = vsel %vm594, %v2669, 0.0
        %2738 = vadd.xlane.f32.xlu0 %v2737
        %v2739 = vpop.xlane.xlu0 %2738
        %v2740 = vsel %vm594, %v2674, 0.0
        %2741 = vadd.xlane.f32.xlu0 %v2740
        %v2742 = vpop.xlane.xlu0 %2741
        %v2743 = vsel %vm594, %v2679, 0.0
        %2744 = vadd.xlane.f32.xlu0 %v2743
        %v2745 = vpop.xlane.xlu0 %2744
        %v2746 = vsel %vm594, %v2684, 0.0
        %2747 = vadd.xlane.f32.xlu0 %v2746
        %v2748 = vpop.xlane.xlu0 %2747
        %v2749 = vsel %vm594, %v2689, 0.0
        %2750 = vadd.xlane.f32.xlu0 %v2749
        %v2751 = vpop.xlane.xlu0 %2750
        %v2752 = vsel %vm594, %v2694, 0.0
        %2753 = vadd.xlane.f32.xlu0 %v2752
        %v2754 = vpop.xlane.xlu0 %2753
        %v2755 = vsel %vm594, %v2699, 0.0
        %2756 = vadd.xlane.f32.xlu0 %v2755
        %v2757 = vpop.xlane.xlu0 %2756
        %v2758 = vsel %vm594, %v2704, 0.0
        %2759 = vadd.xlane.f32.xlu0 %v2758
        %v2760 = vpop.xlane.xlu0 %2759
        %v2761 = vsel %vm594, %v2709, 0.0
        %2762 = vadd.xlane.f32.xlu0 %v2761
        %v2763 = vpop.xlane.xlu0 %2762
        %v2764 = vsel %vm594, %v2714, 0.0
        %2765 = vadd.xlane.f32.xlu0 %v2764
        %v2766 = vpop.xlane.xlu0 %2765
        %v2767 = vrcp.pop 32.0
        %v2768 = vmul.f32 %v2721, %v2767
        %v2769 = vmul.f32 %v2724, %v2767
        %v2770 = vmul.f32 %v2727, %v2767
        %v2771 = vmul.f32 %v2730, %v2767
        %v2772 = vmul.f32 %v2733, %v2767
        %v2773 = vmul.f32 %v2736, %v2767
        %v2774 = vmul.f32 %v2739, %v2767
        %v2775 = vmul.f32 %v2742, %v2767
        %v2776 = vmul.f32 %v2745, %v2767
        %v2777 = vmul.f32 %v2748, %v2767
        %v2778 = vmul.f32 %v2751, %v2767
        %v2779 = vmul.f32 %v2754, %v2767
        %v2780 = vmul.f32 %v2757, %v2767
        %v2781 = vmul.f32 %v2760, %v2767
        %v2782 = vmul.f32 %v2763, %v2767
        %v2783 = vmul.f32 %v2766, %v2767
        %v2784 = vmul.f32 %v2639, %v2639
        %v2785 = vmul.f32 %v2644, %v2644
        %v2786 = vmul.f32 %v2649, %v2649
        %v2787 = vmul.f32 %v2654, %v2654
        %v2788 = vmul.f32 %v2659, %v2659
        %v2789 = vmul.f32 %v2664, %v2664
        %v2790 = vmul.f32 %v2669, %v2669
        %v2791 = vmul.f32 %v2674, %v2674
        %v2792 = vmul.f32 %v2679, %v2679
        %v2793 = vmul.f32 %v2684, %v2684
        %v2794 = vmul.f32 %v2689, %v2689
        %v2795 = vmul.f32 %v2694, %v2694
        %v2796 = vmul.f32 %v2699, %v2699
        %v2797 = vmul.f32 %v2704, %v2704
        %v2798 = vmul.f32 %v2709, %v2709
        %v2799 = vmul.f32 %v2714, %v2714
        %v2800 = vsel %vm594, %v2784, 0.0
        %2801 = vadd.xlane.f32.xlu0 %v2800
        %v2802 = vpop.xlane.xlu0 %2801
        %v2803 = vsel %vm594, %v2785, 0.0
        %2804 = vadd.xlane.f32.xlu0 %v2803
        %v2805 = vpop.xlane.xlu0 %2804
        %v2806 = vsel %vm594, %v2786, 0.0
        %2807 = vadd.xlane.f32.xlu0 %v2806
        %v2808 = vpop.xlane.xlu0 %2807
        %v2809 = vsel %vm594, %v2787, 0.0
        %2810 = vadd.xlane.f32.xlu0 %v2809
        %v2811 = vpop.xlane.xlu0 %2810
        %v2812 = vsel %vm594, %v2788, 0.0
        %2813 = vadd.xlane.f32.xlu0 %v2812
        %v2814 = vpop.xlane.xlu0 %2813
        %v2815 = vsel %vm594, %v2789, 0.0
        %2816 = vadd.xlane.f32.xlu0 %v2815
        %v2817 = vpop.xlane.xlu0 %2816
        %v2818 = vsel %vm594, %v2790, 0.0
        %2819 = vadd.xlane.f32.xlu0 %v2818
        %v2820 = vpop.xlane.xlu0 %2819
        %v2821 = vsel %vm594, %v2791, 0.0
        %2822 = vadd.xlane.f32.xlu0 %v2821
        %v2823 = vpop.xlane.xlu0 %2822
        %v2824 = vsel %vm594, %v2792, 0.0
        %2825 = vadd.xlane.f32.xlu0 %v2824
        %v2826 = vpop.xlane.xlu0 %2825
        %v2827 = vsel %vm594, %v2793, 0.0
        %2828 = vadd.xlane.f32.xlu0 %v2827
        %v2829 = vpop.xlane.xlu0 %2828
        %v2830 = vsel %vm594, %v2794, 0.0
        %2831 = vadd.xlane.f32.xlu0 %v2830
        %v2832 = vpop.xlane.xlu0 %2831
        %v2833 = vsel %vm594, %v2795, 0.0
        %2834 = vadd.xlane.f32.xlu0 %v2833
        %v2835 = vpop.xlane.xlu0 %2834
        %v2836 = vsel %vm594, %v2796, 0.0
        %2837 = vadd.xlane.f32.xlu0 %v2836
        %v2838 = vpop.xlane.xlu0 %2837
        %v2839 = vsel %vm594, %v2797, 0.0
        %2840 = vadd.xlane.f32.xlu0 %v2839
        %v2841 = vpop.xlane.xlu0 %2840
        %v2842 = vsel %vm594, %v2798, 0.0
        %2843 = vadd.xlane.f32.xlu0 %v2842
        %v2844 = vpop.xlane.xlu0 %2843
        %v2845 = vsel %vm594, %v2799, 0.0
        %2846 = vadd.xlane.f32.xlu0 %v2845
        %v2847 = vpop.xlane.xlu0 %2846
        %v2848 = vmul.f32 %v2802, %v2767
        %v2849 = vmul.f32 %v2805, %v2767
        %v2850 = vmul.f32 %v2808, %v2767
        %v2851 = vmul.f32 %v2811, %v2767
        %v2852 = vmul.f32 %v2814, %v2767
        %v2853 = vmul.f32 %v2817, %v2767
        %v2854 = vmul.f32 %v2820, %v2767
        %v2855 = vmul.f32 %v2823, %v2767
        %v2856 = vmul.f32 %v2826, %v2767
        %v2857 = vmul.f32 %v2829, %v2767
        %v2858 = vmul.f32 %v2832, %v2767
        %v2859 = vmul.f32 %v2835, %v2767
        %v2860 = vmul.f32 %v2838, %v2767
        %v2861 = vmul.f32 %v2841, %v2767
        %v2862 = vmul.f32 %v2844, %v2767
        %v2863 = vmul.f32 %v2847, %v2767
        %v2864 = vmul.f32 %v2768, %v2768
        %v2865 = vmul.f32 %v2769, %v2769
        %v2866 = vmul.f32 %v2770, %v2770
        %v2867 = vmul.f32 %v2771, %v2771
        %v2868 = vmul.f32 %v2772, %v2772
        %v2869 = vmul.f32 %v2773, %v2773
        %v2870 = vmul.f32 %v2774, %v2774
        %v2871 = vmul.f32 %v2775, %v2775
        %v2872 = vmul.f32 %v2776, %v2776
        %v2873 = vmul.f32 %v2777, %v2777
        %v2874 = vmul.f32 %v2778, %v2778
        %v2875 = vmul.f32 %v2779, %v2779
        %v2876 = vmul.f32 %v2780, %v2780
        %v2877 = vmul.f32 %v2781, %v2781
        %v2878 = vmul.f32 %v2782, %v2782
        %v2879 = vmul.f32 %v2783, %v2783
        %v2880 = vsub.f32 %v2848, %v2864
        %v2881 = vsub.f32 %v2849, %v2865
        %v2882 = vsub.f32 %v2850, %v2866
        %v2883 = vsub.f32 %v2851, %v2867
        %v2884 = vsub.f32 %v2852, %v2868
        %v2885 = vsub.f32 %v2853, %v2869
        %v2886 = vsub.f32 %v2854, %v2870
        %v2887 = vsub.f32 %v2855, %v2871
        %v2888 = vsub.f32 %v2856, %v2872
        %v2889 = vsub.f32 %v2857, %v2873
        %v2890 = vsub.f32 %v2858, %v2874
        %v2891 = vsub.f32 %v2859, %v2875
        %v2892 = vsub.f32 %v2860, %v2876
        %v2893 = vsub.f32 %v2861, %v2877
        %v2894 = vsub.f32 %v2862, %v2878
        %v2895 = vsub.f32 %v2863, %v2879
        %v2896 = vmax.f32 %v2880, 0.0
        %v2897 = vmax.f32 %v2881, 0.0
        %v2898 = vmax.f32 %v2882, 0.0
        %v2899 = vmax.f32 %v2883, 0.0
        %v2900 = vmax.f32 %v2884, 0.0
        %v2901 = vmax.f32 %v2885, 0.0
        %v2902 = vmax.f32 %v2886, 0.0
        %v2903 = vmax.f32 %v2887, 0.0
        %v2904 = vmax.f32 %v2888, 0.0
        %v2905 = vmax.f32 %v2889, 0.0
        %v2906 = vmax.f32 %v2890, 0.0
        %v2907 = vmax.f32 %v2891, 0.0
        %v2908 = vmax.f32 %v2892, 0.0
        %v2909 = vmax.f32 %v2893, 0.0
        %v2910 = vmax.f32 %v2894, 0.0
        %v2911 = vmax.f32 %v2895, 0.0
        %v2912 = vsub.f32 %v2639, %v2768
        %v2913 = vsub.f32 %v2644, %v2769
        %v2914 = vsub.f32 %v2649, %v2770
        %v2915 = vsub.f32 %v2654, %v2771
        %v2916 = vsub.f32 %v2659, %v2772
        %v2917 = vsub.f32 %v2664, %v2773
        %v2918 = vsub.f32 %v2669, %v2774
        %v2919 = vsub.f32 %v2674, %v2775
        %v2920 = vsub.f32 %v2679, %v2776
        %v2921 = vsub.f32 %v2684, %v2777
        %v2922 = vsub.f32 %v2689, %v2778
        %v2923 = vsub.f32 %v2694, %v2779
        %v2924 = vsub.f32 %v2699, %v2780
        %v2925 = vsub.f32 %v2704, %v2781
        %v2926 = vsub.f32 %v2709, %v2782
        %v2927 = vsub.f32 %v2714, %v2783
        %v2928 = vadd.f32 %v2896, 1e-06
        %v2929 = vadd.f32 %v2897, 1e-06
        %v2930 = vadd.f32 %v2898, 1e-06
        %v2931 = vadd.f32 %v2899, 1e-06
        %v2932 = vadd.f32 %v2900, 1e-06
        %v2933 = vadd.f32 %v2901, 1e-06
        %v2934 = vadd.f32 %v2902, 1e-06
        %v2935 = vadd.f32 %v2903, 1e-06
        %v2936 = vadd.f32 %v2904, 1e-06
        %v2937 = vadd.f32 %v2905, 1e-06
        %v2938 = vadd.f32 %v2906, 1e-06
        %v2939 = vadd.f32 %v2907, 1e-06
        %v2940 = vadd.f32 %v2908, 1e-06
        %v2941 = vadd.f32 %v2909, 1e-06
        %v2942 = vadd.f32 %v2910, 1e-06
        %v2943 = vadd.f32 %v2911, 1e-06
        %v2944 = vrsqrt.pop %v2928
        %v2945 = vrsqrt.pop %v2929
        %v2946 = vrsqrt.pop %v2930
        %v2947 = vrsqrt.pop %v2931
        %v2948 = vrsqrt.pop %v2932
        %v2949 = vrsqrt.pop %v2933
        %v2950 = vrsqrt.pop %v2934
        %v2951 = vrsqrt.pop %v2935
        %v2952 = vrsqrt.pop %v2936
        %v2953 = vrsqrt.pop %v2937
        %v2954 = vrsqrt.pop %v2938
        %v2955 = vrsqrt.pop %v2939
        %v2956 = vrsqrt.pop %v2940
        %v2957 = vrsqrt.pop %v2941
        %v2958 = vrsqrt.pop %v2942
        %v2959 = vrsqrt.pop %v2943
        %v2960 = vmul.f32 %v2912, %v2944
        %v2961 = vmul.f32 %v2913, %v2945
        %v2962 = vmul.f32 %v2914, %v2946
        %v2963 = vmul.f32 %v2915, %v2947
        %v2964 = vmul.f32 %v2916, %v2948
        %v2965 = vmul.f32 %v2917, %v2949
        %v2966 = vmul.f32 %v2918, %v2950
        %v2967 = vmul.f32 %v2919, %v2951
        %v2968 = vmul.f32 %v2920, %v2952
        %v2969 = vmul.f32 %v2921, %v2953
        %v2970 = vmul.f32 %v2922, %v2954
        %v2971 = vmul.f32 %v2923, %v2955
        %v2972 = vmul.f32 %v2924, %v2956
        %v2973 = vmul.f32 %v2925, %v2957
        %v2974 = vmul.f32 %v2926, %v2958
        %v2975 = vmul.f32 %v2927, %v2959
        %v2977 = vlaneseq
        %v2978 = vshrl.u32 %v2977, 7
        %v2979 = vsub.s32 0, %v2978
        %v2980 = vrot.slane %v2717, %v2979
        %v2982 = vmul.f32 %v2960, %v2980
        %v2983 = vmul.f32 %v2961, %v2980
        %v2984 = vmul.f32 %v2962, %v2980
        %v2985 = vmul.f32 %v2963, %v2980
        %v2986 = vmul.f32 %v2964, %v2980
        %v2987 = vmul.f32 %v2965, %v2980
        %v2988 = vmul.f32 %v2966, %v2980
        %v2989 = vmul.f32 %v2967, %v2980
        %v2990 = vmul.f32 %v2968, %v2980
        %v2991 = vmul.f32 %v2969, %v2980
        %v2992 = vmul.f32 %v2970, %v2980
        %v2993 = vmul.f32 %v2971, %v2980
        %v2994 = vmul.f32 %v2972, %v2980
        %v2995 = vmul.f32 %v2973, %v2980
        %v2996 = vmul.f32 %v2974, %v2980
        %v2997 = vmul.f32 %v2975, %v2980
        %v2999 = vlaneseq
        %v3000 = vshrl.u32 %v2999, 7
        %v3001 = vsub.s32 0, %v3000
        %v3002 = vrot.slane %v2718, %v3001
        %v3004 = vadd.f32 %v2982, %v3002
        %v3005 = vadd.f32 %v2983, %v3002
        %v3006 = vadd.f32 %v2984, %v3002
        %v3007 = vadd.f32 %v2985, %v3002
        %v3008 = vadd.f32 %v2986, %v3002
        %v3009 = vadd.f32 %v2987, %v3002
        %v3010 = vadd.f32 %v2988, %v3002
        %v3011 = vadd.f32 %v2989, %v3002
        %v3012 = vadd.f32 %v2990, %v3002
        %v3013 = vadd.f32 %v2991, %v3002
        %v3014 = vadd.f32 %v2992, %v3002
        %v3015 = vadd.f32 %v2993, %v3002
        %v3016 = vadd.f32 %v2994, %v3002
        %v3017 = vadd.f32 %v2995, %v3002
        %v3018 = vadd.f32 %v2996, %v3002
        %v3019 = vadd.f32 %v2997, %v3002
        %v3020 = vadd.f32 %v572, %v3004
        %v3021 = vadd.f32 %v573, %v3005
        %v3022 = vadd.f32 %v574, %v3006
        %v3023 = vadd.f32 %v575, %v3007
        %v3024 = vadd.f32 %v576, %v3008
        %v3025 = vadd.f32 %v577, %v3009
        %v3026 = vadd.f32 %v578, %v3010
        %v3027 = vadd.f32 %v579, %v3011
        %v3028 = vadd.f32 %v580, %v3012
        %v3029 = vadd.f32 %v581, %v3013
        %v3030 = vadd.f32 %v582, %v3014
        %v3031 = vadd.f32 %v583, %v3015
        %v3032 = vadd.f32 %v584, %v3016
        %v3033 = vadd.f32 %v585, %v3017
        %v3034 = vadd.f32 %v586, %v3018
        %v3035 = vadd.f32 %v587, %v3019
        %3036 = vst.msk [vmem:[%s559] sm:$0xff] %vm594, %v3020
        %3037 = vst.msk [vmem:[%s559 + $0x8] sm:$0xff] %vm594, %v3021
        %3038 = vst.msk [vmem:[%s559 + $0x10] sm:$0xff] %vm594, %v3022
        %3039 = vst.msk [vmem:[%s559 + $0x18] sm:$0xff] %vm594, %v3023
        %3040 = vst.msk [vmem:[%s559 + $0x20] sm:$0xff] %vm594, %v3024
        %3041 = vst.msk [vmem:[%s559 + $0x28] sm:$0xff] %vm594, %v3025
        %3042 = vst.msk [vmem:[%s559 + $0x30] sm:$0xff] %vm594, %v3026
        %3043 = vst.msk [vmem:[%s559 + $0x38] sm:$0xff] %vm594, %v3027
        %3044 = vst.msk [vmem:[%s559 + $0x40] sm:$0xff] %vm594, %v3028
        %3045 = vst.msk [vmem:[%s559 + $0x48] sm:$0xff] %vm594, %v3029
        %3046 = vst.msk [vmem:[%s559 + $0x50] sm:$0xff] %vm594, %v3030
        %3047 = vst.msk [vmem:[%s559 + $0x58] sm:$0xff] %vm594, %v3031
        %3048 = vst.msk [vmem:[%s559 + $0x60] sm:$0xff] %vm594, %v3032
        %3049 = vst.msk [vmem:[%s559 + $0x68] sm:$0xff] %vm594, %v3033
        %3050 = vst.msk [vmem:[%s559 + $0x70] sm:$0xff] %vm594, %v3034
        %3051 = vst.msk [vmem:[%s559 + $0x78] sm:$0xff] %vm594, %v3035
        %s3052 = sand.u32 %s343, 1
        %s3053 = scalar_lea.sflag [#allocation4], %s3052
        %s3054 = sand.u32 %s343, 1
        %s3055 = smul.addr %s3054, 128
        %s3056 = scalar_lea.vmem [#allocation8], %s3055
        // Predicated region
        $region81: #{res_bottleneck_block.1} parent=67 // pred_check
          %p3057 = pneg %p353
        $region82: #{res_bottleneck_block.1} parent=67 // pred_check_branch
          %3059 = sbr.rel (%p3057) target = $region84
        $region83: #{res_bottleneck_block.1} parent=67 // pred_region
          %s3060 = smul.u32 8, %s37
          %s3062 = ssub.s32 2048, 2048
          %3063 = vsyncadd %s3053, %s3062
          %s3064 = smul.addr %s3060, 2
          %s3065 = smul.addr %s36, 32
          %s3066 = sadd.s32 %s3064, %s3065
          %s3067 = smul.addr %s3066, 128
          %s3068 = scalar_lea.hbm %s12, %s3067
          %s3069 = sshll.u32 %s3056, 4
          %s3070 = int_to_ptr.vmem [resolvable:$true] %s3069
          %3075 = dma.vmem_to_hbm [thread:$0]  %s3070, 2048, %s3068, %s3053, 128, 128, 8
        $region84: #{res_bottleneck_block.1} parent=67 // pred_fallthru
          _
      $region68: #{res_bottleneck_block.1} parent=5 // pred_fallthru
        _
      %p3076 = scmp.le.s32.totalorder 2, %s27
      // Predicated region
      $region85: #{res_bottleneck_block.1} parent=5 // pred_check
        %p3077 = pneg %p3076
      $region86: #{res_bottleneck_block.1} parent=5 // pred_check_branch
        %3079 = sbr.rel (%p3077) target = $region88
      $region87: #{res_bottleneck_block.1} parent=5 // pred_region
        %s3080 = ssub.s32 %s27, 2
        // Predicated region
        $region89: #{res_bottleneck_block.1} parent=87 // pred_check
          %p3081 = pneg %p359
        $region90: #{res_bottleneck_block.1} parent=87 // pred_check_branch
          %3083 = sbr.rel (%p3081) target = $region92
        $region91: #{res_bottleneck_block.1} parent=87 // pred_region
          %s3084 = sand.u32 %s344, 1
          %s3085 = scalar_lea.sflag [#allocation4], %s3084
          %s3086 = sand.u32 %s344, 1
          %s3087 = smul.addr %s3086, 128
          %s3088 = scalar_lea.vmem [#allocation8], %s3087
          %3089 = dma.done %s3085, 2048
        $region92: #{res_bottleneck_block.1} parent=87 // pred_fallthru
          _
      $region88: #{res_bottleneck_block.1} parent=5 // pred_fallthru
        _
    $region6: #{res_bottleneck_block.1} parent=1 // loop_footer
      %s31 = sadd.s32 1, %s27
    $region7: #{res_bottleneck_block.1} parent=1 // loop_footer_branch
      %26 = sbr.rel target = $region3
    $region8: #{res_bottleneck_block.1} parent=1 // loop_exit
      _
    %3090 = vsyncpa [#allocation3], 1
    %s3091 = scalar_lea.sflag [#allocation3], 1
    %3092 = vsyncpa %s3091, 1
    %3093 = vsyncpa [#allocation6], 1
    %s3094 = scalar_lea.sflag [#allocation6], 1
    %3095 = vsyncpa %s3094, 1
    %3096 = vsyncpa [#allocation4], 1
    %s3097 = scalar_lea.sflag [#allocation4], 1
    %3098 = vsyncpa %s3097, 1

</llo_original>
